<compile_context>
chip_gen: v6e
topology: v6e:2x2x1
jax: 0.10.0
libtpu: 0.0.40
codegen_flags: <defaults>
</compile_context>

<pallas_src>
import functools

import jax
import jax.numpy as jnp
from jax.experimental import pallas as pl
from jax.experimental.pallas import tpu as pltpu

LANE = 128      # TPU vreg lane width
SUBLANE = 8     # TPU vreg sublane width


def _round_up(x, m):
    return (x + m - 1) // m * m


# ---------------------------------------------------------------------------
# Shared GRU recurrence.  gi_scratch holds the hoisted input-side term
# (x @ W_ih + folded bias) for ALL timesteps; only h @ W_hh runs per step.
# T is small and static -> fully unrolled Python loop (static slices are free).
# ---------------------------------------------------------------------------
def _gru_steps(gi_scratch, whh, bhh_n, h0, T, B, H, hs_scratch=None):
    h = h0                                               # [B, H] f32 carry
    for t in range(T):
        gi_t = gi_scratch[t * B:(t + 1) * B, :]          # [B, 3H] f32
        gh = jnp.dot(h.astype(jnp.bfloat16), whh,
                     preferred_element_type=jnp.float32)  # [B, 3H] f32
        # gate slices are lane-aligned because H % 128 == 0
        r = jax.nn.sigmoid(gi_t[:, :H] + gh[:, :H])
        z = jax.nn.sigmoid(gi_t[:, H:2 * H] + gh[:, H:2 * H])
        n = jnp.tanh(gi_t[:, 2 * H:] + r * (gh[:, 2 * H:] + bhh_n))
        h = (1.0 - z) * n + z * h
        if hs_scratch is not None:
            hs_scratch[t * B:(t + 1) * B, :] = h
    return h


# ---------------------------------------------------------------------------
# Encoder kernel: GRU over the whole sequence, emits only the final hidden.
# ---------------------------------------------------------------------------
def _gru_last_kernel(T, B, x_ref, wih_ref, whh_ref, gb_ref, bhhn_ref, h0_ref,
                     hT_ref, gi_scratch):
    H = h0_ref.shape[-1]
    # Phase 1: one big MXU matmul for all timesteps (input side hoisted).
    gi_scratch[...] = (
        jnp.dot(x_ref[...], wih_ref[...], preferred_element_type=jnp.float32)
        + gb_ref[...])
    # Phase 2: serial recurrence (h @ W_hh only).
    hT_ref[...] = _gru_steps(gi_scratch, whh_ref[...], bhhn_ref[...],
                             h0_ref[...], T, B, H)


# ---------------------------------------------------------------------------
# Decoder / voter kernel: GRU + fused output head (Linear + tanh|sigmoid),
# head output padded to a lane-dense width (multiple of 128).
# ---------------------------------------------------------------------------
def _gru_head_kernel(act, T, B, x_ref, wih_ref, whh_ref, gb_ref, bhhn_ref,
                     h0_ref, wout_ref, bout_ref, out_ref, hT_ref,
                     gi_scratch, hs_scratch):
    H = h0_ref.shape[-1]
    # Phase 1: hoisted input-side matmul for all timesteps.
    gi_scratch[...] = (
        jnp.dot(x_ref[...], wih_ref[...], preferred_element_type=jnp.float32)
        + gb_ref[...])
    # Phase 2: serial recurrence; collect every hidden state for the head.
    hT = _gru_steps(gi_scratch, whh_ref[...], bhhn_ref[...], h0_ref[...],
                    T, B, H, hs_scratch=hs_scratch)
    hT_ref[...] = hT
    # Phase 3: fused output head -- one big matmul over all timesteps,
    # lane-dense (padded) output, activation on the VPU/EUP.
    y = (jnp.dot(hs_scratch[...].astype(jnp.bfloat16), wout_ref[...],
                 preferred_element_type=jnp.float32) + bout_ref[...])
    out_ref[...] = jnp.tanh(y) if act == "tanh" else jax.nn.sigmoid(y)


# ---------------------------------------------------------------------------
# Wrappers (single pallas_call each, no grid -- everything fits in VMEM).
# ---------------------------------------------------------------------------
def gru_encoder(x_flat, gp, h0, T, B):
    """x_flat: [T*B, H] bf16 (time-major flattened). Returns final hidden [B,H] f32."""
    H = h0.shape[-1]
    assert B % SUBLANE == 0 and H % LANE == 0, "choose B % 8 == 0 and H % 128 == 0"
    return pl.pallas_call(
        functools.partial(_gru_last_kernel, T, B),
        out_shape=jax.ShapeDtypeStruct((B, H), jnp.float32),
        in_specs=[
            pl.BlockSpec((T * B, H), lambda: (0, 0)),
            pl.BlockSpec((H, 3 * H), lambda: (0, 0)),
            pl.BlockSpec((H, 3 * H), lambda: (0, 0)),
            pl.BlockSpec((1, 3 * H), lambda: (0, 0)),
            pl.BlockSpec((1, H), lambda: (0, 0)),
            pl.BlockSpec((B, H), lambda: (0, 0)),
        ],
        out_specs=pl.BlockSpec((B, H), lambda: (0, 0)),
        scratch_shapes=[pltpu.VMEM((T * B, 3 * H), jnp.float32)],
    )(x_flat, gp["w_ih"], gp["w_hh"], gp["gbias"], gp["bhh_n"], h0)


def gru_with_head(x_flat, gp, h0, w_out, b_out, act, T, B):
    """GRU + fused head. Returns (head output [T*B, V] f32, final hidden [B, H] f32)."""
    H = h0.shape[-1]
    V = w_out.shape[-1]
    Vp = _round_up(V, LANE)          # lane-dense head output
    assert B % SUBLANE == 0 and H % LANE == 0, "choose B % 8 == 0 and H % 128 == 0"
    w_pad = jnp.zeros((H, Vp), jnp.bfloat16).at[:, :V].set(w_out.astype(jnp.bfloat16))
    b_pad = jnp.zeros((1, Vp), jnp.float32).at[:, :V].set(b_out)

    out_p, hT = pl.pallas_call(
        functools.partial(_gru_head_kernel, act, T, B),
        out_shape=(jax.ShapeDtypeStruct((T * B, Vp), jnp.float32),
                   jax.ShapeDtypeStruct((B, H), jnp.float32)),
        in_specs=[
            pl.BlockSpec((T * B, H), lambda: (0, 0)),
            pl.BlockSpec((H, 3 * H), lambda: (0, 0)),
            pl.BlockSpec((H, 3 * H), lambda: (0, 0)),
            pl.BlockSpec((1, 3 * H), lambda: (0, 0)),
            pl.BlockSpec((1, H), lambda: (0, 0)),
            pl.BlockSpec((B, H), lambda: (0, 0)),
            pl.BlockSpec((H, Vp), lambda: (0, 0)),
            pl.BlockSpec((1, Vp), lambda: (0, 0)),
        ],
        out_specs=(pl.BlockSpec((T * B, Vp), lambda: (0, 0)),
                   pl.BlockSpec((B, H), lambda: (0, 0))),
        scratch_shapes=[pltpu.VMEM((T * B, 3 * H), jnp.float32),
                        pltpu.VMEM((T * B, H), jnp.float32)],
    )(x_flat, gp["w_ih"], gp["w_hh"], gp["gbias"], gp["bhh_n"], h0, w_pad, b_pad)
    return out_p[:, :V], hT


# ---------------------------------------------------------------------------
# Parameter construction (deterministic, synthetic); biases pre-folded,
# weights in bf16 (gate math stays f32 inside the kernels).
# ---------------------------------------------------------------------------
def make_gru_params(key, hin, h):
    k = jax.random.split(key, 4)
    w_ih = 0.1 * jax.random.normal(k[0], (hin, 3 * h), jnp.float32)
    w_hh = 0.1 * jax.random.normal(k[1], (h, 3 * h), jnp.float32)
    b_ih = 0.1 * jax.random.normal(k[2], (1, 3 * h), jnp.float32)
    b_hh = 0.1 * jax.random.normal(k[3], (1, 3 * h), jnp.float32)
    # r/z gates: b_ih + b_hh folded into the hoisted input matmul.
    # n gate: only b_ih folded; b_hh_n kept separate (multiplied by r).
    gbias = jnp.concatenate(
        [b_ih[:, :2 * h] + b_hh[:, :2 * h], b_ih[:, 2 * h:]], axis=1)
    return dict(
        w_ih=w_ih.astype(jnp.bfloat16),
        w_hh=w_hh.astype(jnp.bfloat16),
        gbias=gbias,                   # [1, 3H] f32
        bhh_n=b_hh[:, 2 * h:],         # [1, H]  f32
    )


def make_seq2seq_params(key, vocab, hidden, vote_dim):
    ks = jax.random.split(key, 9)
    return dict(
        enc_emb=(0.1 * jax.random.normal(ks[0], (vocab, hidden), jnp.float32)).astype(jnp.bfloat16),
        dec_emb=(0.1 * jax.random.normal(ks[1], (vocab, hidden), jnp.float32)).astype(jnp.bfloat16),
        vote_emb=(0.1 * jax.random.normal(ks[2], (vocab, hidden), jnp.float32)).astype(jnp.bfloat16),
        enc_gru=make_gru_params(ks[3], hidden, hidden),
        dec_gru=make_gru_params(ks[4], hidden, hidden),
        vote_gru=make_gru_params(ks[5], hidden, hidden),
        dec_out_w=0.1 * jax.random.normal(ks[6], (hidden, vocab), jnp.float32),
        dec_out_b=jnp.zeros((1, vocab), jnp.float32),
        vote_out_w=0.1 * jax.random.normal(ks[7], (hidden, vote_dim), jnp.float32),
        vote_out_b=jnp.zeros((1, vote_dim), jnp.float32),
    )


# ---------------------------------------------------------------------------
# Seq2seq forward (mirrors Seq2seq.forward: encoder -> decoder(tanh head),
#                  encoder_hidden -> voter(sigmoid head))
# ---------------------------------------------------------------------------
def seq2seq_forward(params, input_variable, target_variable, vote_answer):
    B = input_variable.shape[0]
    H = params["enc_emb"].shape[1]

    def embed_flat(emb, toks):
        # [B, T] int32 -> time-major flattened [T*B, H] bf16 (embedding lookup
        # and transpose are plain-JAX layout plumbing outside the kernels).
        x = emb[toks]                          # [B, T, H]
        return jnp.transpose(x, (1, 0, 2)).reshape(-1, H)

    # --- encoder ---
    T_in = input_variable.shape[1]
    enc_x = embed_flat(params["enc_emb"], input_variable)
    encoder_hidden = gru_encoder(enc_x, params["enc_gru"],
                                 jnp.zeros((B, H), jnp.float32), T_in, B)

    # --- decoder (teacher-forced on target_variable, fused tanh head) ---
    T_out = target_variable.shape[1]
    dec_x = embed_flat(params["dec_emb"], target_variable)
    dec_y, decoder_hidden = gru_with_head(
        dec_x, params["dec_gru"], encoder_hidden,
        params["dec_out_w"], params["dec_out_b"], "tanh", T_out, B)
    V = params["dec_out_w"].shape[-1]
    decoder_output = dec_y.reshape(T_out, B, V)

    # --- voter (runs on vote_answer, fused sigmoid head) ---
    T_vote = vote_answer.shape[1]
    vote_x = embed_flat(params["vote_emb"], vote_answer)
    vote_y, _ = gru_with_head(
        vote_x, params["vote_gru"], encoder_hidden,
        params["vote_out_w"], params["vote_out_b"], "sigmoid", T_vote, B)
    VD = params["vote_out_w"].shape[-1]
    voter_results = vote_y.reshape(T_vote, B, VD)

    return (decoder_output, decoder_hidden), voter_results


if __name__ == "__main__":
    # Small but TPU-friendly shapes: B multiple of 8 (sublanes), H multiple of
    # 128 (lanes) so gate slices / hidden tiles are exactly vreg-aligned.
    VOCAB, HIDDEN, VOTE_DIM = 16, 128, 1
    B, T_IN, T_OUT, T_VOTE = 8, 8, 6, 5

    root = jax.random.PRNGKey(0)
    k_params, k_in, k_tgt, k_vote = jax.random.split(root, 4)

    params = make_seq2seq_params(k_params, VOCAB, HIDDEN, VOTE_DIM)

    input_variable = jax.random.randint(k_in, (B, T_IN), 0, VOCAB)
    target_variable = jax.random.randint(k_tgt, (B, T_OUT), 0, VOCAB)
    vote_answer = jax.random.randint(k_vote, (B, T_VOTE), 0, VOCAB)

    (dec_out, dec_hidden), vote_out = jax.jit(seq2seq_forward)(
        params, input_variable, target_variable, vote_answer)
    jax.block_until_ready((dec_out, dec_hidden, vote_out))

    assert dec_out.shape == (T_OUT, B, VOCAB)
    assert dec_hidden.shape == (B, HIDDEN)
    assert vote_out.shape == (T_VOTE, B, VOTE_DIM)
    print("KERNEL_OK")
</pallas_src>

<mosaic_0001>
module attributes {stable_mosaic.version = 11 : i64} {
  func.func @_gru_last_kernel(%arg0: memref<64x128xbf16, #tpu.memory_space<vmem>>, %arg1: memref<128x384xbf16, #tpu.memory_space<vmem>>, %arg2: memref<128x384xbf16, #tpu.memory_space<vmem>>, %arg3: memref<1x384xf32, #tpu.memory_space<vmem>>, %arg4: memref<1x128xf32, #tpu.memory_space<vmem>>, %arg5: memref<8x128xf32, #tpu.memory_space<vmem>>, %arg6: memref<8x128xf32, #tpu.memory_space<vmem>>, %arg7: memref<64x384xf32, #tpu.memory_space<vmem>>) attributes {dimension_semantics = [], scalar_prefetch = 0 : i64, scratch_operands = 1 : i64, tpu.core_type = #tpu.core_type<tc>} {
    %c0 = arith.constant 0 : index
    %c0_0 = arith.constant 0 : index
    %0 = vector.load %arg0[%c0, %c0_0] : memref<64x128xbf16, #tpu.memory_space<vmem>>, vector<64x128xbf16>
    %c0_1 = arith.constant 0 : index
    %c0_2 = arith.constant 0 : index
    %1 = vector.load %arg1[%c0_1, %c0_2] : memref<128x384xbf16, #tpu.memory_space<vmem>>, vector<128x384xbf16>
    %cst = arith.constant dense<0.000000e+00> : vector<64x384xf32>
    %2 = tpu.matmul %0, %1, %cst {dimension_numbers = #tpu.dot_dimension_numbers<[1], [0], [0], [1], [0, 0, 1, 1], [], []>} : vector<64x128xbf16>, vector<128x384xbf16>, vector<64x384xf32> -> vector<64x384xf32>
    %c0_3 = arith.constant 0 : index
    %c0_4 = arith.constant 0 : index
    %3 = vector.load %arg3[%c0_3, %c0_4] : memref<1x384xf32, #tpu.memory_space<vmem>>, vector<1x384xf32>
    %4 = vector.broadcast %3 : vector<1x384xf32> to vector<64x384xf32>
    %5 = arith.addf %2, %4 : vector<64x384xf32>
    %c0_5 = arith.constant 0 : index
    %c0_6 = arith.constant 0 : index
    %6 = vector.load %arg7[%c0_5, %c0_6] : memref<64x384xf32, #tpu.memory_space<vmem>>, vector<64x384xf32>
    tpu.vector_store %arg7[%c0_5, %c0_6], %5 {strides = array<i32>} : memref<64x384xf32, #tpu.memory_space<vmem>>, vector<64x384xf32>,
    %c0_7 = arith.constant 0 : index
    %c0_8 = arith.constant 0 : index
    %7 = vector.load %arg2[%c0_7, %c0_8] : memref<128x384xbf16, #tpu.memory_space<vmem>>, vector<128x384xbf16>
    %c0_9 = arith.constant 0 : index
    %c0_10 = arith.constant 0 : index
    %8 = vector.load %arg4[%c0_9, %c0_10] : memref<1x128xf32, #tpu.memory_space<vmem>>, vector<1x128xf32>
    %c0_11 = arith.constant 0 : index
    %c0_12 = arith.constant 0 : index
    %9 = vector.load %arg5[%c0_11, %c0_12] : memref<8x128xf32, #tpu.memory_space<vmem>>, vector<8x128xf32>
    %c0_13 = arith.constant 0 : index
    %c0_14 = arith.constant 0 : index
    %10 = vector.load %arg7[%c0_13, %c0_14] : memref<64x384xf32, #tpu.memory_space<vmem>>, vector<8x384xf32>
    %11 = arith.truncf %9 : vector<8x128xf32> to vector<8x128xbf16>
    %cst_15 = arith.constant dense<0.000000e+00> : vector<8x384xf32>
    %12 = tpu.matmul %11, %7, %cst_15 {dimension_numbers = #tpu.dot_dimension_numbers<[1], [0], [0], [1], [0, 0, 1, 1], [], []>} : vector<8x128xbf16>, vector<128x384xbf16>, vector<8x384xf32> -> vector<8x384xf32>
    %13 = vector.extract_strided_slice %10 {offsets = [0, 0], sizes = [8, 128], strides = [1, 1]} : vector<8x384xf32> to vector<8x128xf32>
    %14 = vector.extract_strided_slice %12 {offsets = [0, 0], sizes = [8, 128], strides = [1, 1]} : vector<8x384xf32> to vector<8x128xf32>
    %15 = arith.addf %13, %14 : vector<8x128xf32>
    %16 = arith.negf %15 : vector<8x128xf32>
    %17 = math.exp %16 : vector<8x128xf32>
    %cst_16 = arith.constant 1.000000e+00 : f32
    %18 = vector.broadcast %cst_16 : f32 to vector<8x128xf32>
    %19 = arith.addf %18, %17 : vector<8x128xf32>
    %20 = arith.divf %18, %19 : vector<8x128xf32>
    %21 = vector.extract_strided_slice %10 {offsets = [0, 128], sizes = [8, 128], strides = [1, 1]} : vector<8x384xf32> to vector<8x128xf32>
    %22 = vector.extract_strided_slice %12 {offsets = [0, 128], sizes = [8, 128], strides = [1, 1]} : vector<8x384xf32> to vector<8x128xf32>
    %23 = arith.addf %21, %22 : vector<8x128xf32>
    %24 = arith.negf %23 : vector<8x128xf32>
    %25 = math.exp %24 : vector<8x128xf32>
    %cst_17 = arith.constant 1.000000e+00 : f32
    %26 = vector.broadcast %cst_17 : f32 to vector<8x128xf32>
    %27 = arith.addf %26, %25 : vector<8x128xf32>
    %28 = arith.divf %26, %27 : vector<8x128xf32>
    %29 = vector.extract_strided_slice %10 {offsets = [0, 256], sizes = [8, 128], strides = [1, 1]} : vector<8x384xf32> to vector<8x128xf32>
    %30 = vector.extract_strided_slice %12 {offsets = [0, 256], sizes = [8, 128], strides = [1, 1]} : vector<8x384xf32> to vector<8x128xf32>
    %31 = vector.broadcast %8 : vector<1x128xf32> to vector<8x128xf32>
    %32 = arith.addf %30, %31 : vector<8x128xf32>
    %33 = arith.mulf %20, %32 : vector<8x128xf32>
    %34 = arith.addf %29, %33 : vector<8x128xf32>
    %35 = math.tanh %34 : vector<8x128xf32>
    %cst_18 = arith.constant 1.000000e+00 : f32
    %36 = vector.broadcast %cst_18 : f32 to vector<8x128xf32>
    %37 = arith.subf %36, %28 : vector<8x128xf32>
    %38 = arith.mulf %37, %35 : vector<8x128xf32>
    %39 = arith.mulf %28, %9 : vector<8x128xf32>
    %40 = arith.addf %38, %39 : vector<8x128xf32>
    %c8 = arith.constant 8 : index
    %c0_19 = arith.constant 0 : index
    %41 = vector.load %arg7[%c8, %c0_19] : memref<64x384xf32, #tpu.memory_space<vmem>>, vector<8x384xf32>
    %42 = arith.truncf %40 : vector<8x128xf32> to vector<8x128xbf16>
    %cst_20 = arith.constant dense<0.000000e+00> : vector<8x384xf32>
    %43 = tpu.matmul %42, %7, %cst_20 {dimension_numbers = #tpu.dot_dimension_numbers<[1], [0], [0], [1], [0, 0, 1, 1], [], []>} : vector<8x128xbf16>, vector<128x384xbf16>, vector<8x384xf32> -> vector<8x384xf32>
    %44 = vector.extract_strided_slice %41 {offsets = [0, 0], sizes = [8, 128], strides = [1, 1]} : vector<8x384xf32> to vector<8x128xf32>
    %45 = vector.extract_strided_slice %43 {offsets = [0, 0], sizes = [8, 128], strides = [1, 1]} : vector<8x384xf32> to vector<8x128xf32>
    %46 = arith.addf %44, %45 : vector<8x128xf32>
    %47 = arith.negf %46 : vector<8x128xf32>
    %48 = math.exp %47 : vector<8x128xf32>
    %cst_21 = arith.constant 1.000000e+00 : f32
    %49 = vector.broadcast %cst_21 : f32 to vector<8x128xf32>
    %50 = arith.addf %49, %48 : vector<8x128xf32>
    %51 = arith.divf %49, %50 : vector<8x128xf32>
    %52 = vector.extract_strided_slice %41 {offsets = [0, 128], sizes = [8, 128], strides = [1, 1]} : vector<8x384xf32> to vector<8x128xf32>
    %53 = vector.extract_strided_slice %43 {offsets = [0, 128], sizes = [8, 128], strides = [1, 1]} : vector<8x384xf32> to vector<8x128xf32>
    %54 = arith.addf %52, %53 : vector<8x128xf32>
    %55 = arith.negf %54 : vector<8x128xf32>
    %56 = math.exp %55 : vector<8x128xf32>
    %cst_22 = arith.constant 1.000000e+00 : f32
    %57 = vector.broadcast %cst_22 : f32 to vector<8x128xf32>
    %58 = arith.addf %57, %56 : vector<8x128xf32>
    %59 = arith.divf %57, %58 : vector<8x128xf32>
    %60 = vector.extract_strided_slice %41 {offsets = [0, 256], sizes = [8, 128], strides = [1, 1]} : vector<8x384xf32> to vector<8x128xf32>
    %61 = vector.extract_strided_slice %43 {offsets = [0, 256], sizes = [8, 128], strides = [1, 1]} : vector<8x384xf32> to vector<8x128xf32>
    %62 = vector.broadcast %8 : vector<1x128xf32> to vector<8x128xf32>
    %63 = arith.addf %61, %62 : vector<8x128xf32>
    %64 = arith.mulf %51, %63 : vector<8x128xf32>
    %65 = arith.addf %60, %64 : vector<8x128xf32>
    %66 = math.tanh %65 : vector<8x128xf32>
    %cst_23 = arith.constant 1.000000e+00 : f32
    %67 = vector.broadcast %cst_23 : f32 to vector<8x128xf32>
    %68 = arith.subf %67, %59 : vector<8x128xf32>
    %69 = arith.mulf %68, %66 : vector<8x128xf32>
    %70 = arith.mulf %59, %40 : vector<8x128xf32>
    %71 = arith.addf %69, %70 : vector<8x128xf32>
    %c16 = arith.constant 16 : index
    %c0_24 = arith.constant 0 : index
    %72 = vector.load %arg7[%c16, %c0_24] : memref<64x384xf32, #tpu.memory_space<vmem>>, vector<8x384xf32>
    %73 = arith.truncf %71 : vector<8x128xf32> to vector<8x128xbf16>
    %cst_25 = arith.constant dense<0.000000e+00> : vector<8x384xf32>
    %74 = tpu.matmul %73, %7, %cst_25 {dimension_numbers = #tpu.dot_dimension_numbers<[1], [0], [0], [1], [0, 0, 1, 1], [], []>} : vector<8x128xbf16>, vector<128x384xbf16>, vector<8x384xf32> -> vector<8x384xf32>
    %75 = vector.extract_strided_slice %72 {offsets = [0, 0], sizes = [8, 128], strides = [1, 1]} : vector<8x384xf32> to vector<8x128xf32>
    %76 = vector.extract_strided_slice %74 {offsets = [0, 0], sizes = [8, 128], strides = [1, 1]} : vector<8x384xf32> to vector<8x128xf32>
    %77 = arith.addf %75, %76 : vector<8x128xf32>
    %78 = arith.negf %77 : vector<8x128xf32>
    %79 = math.exp %78 : vector<8x128xf32>
    %cst_26 = arith.constant 1.000000e+00 : f32
    %80 = vector.broadcast %cst_26 : f32 to vector<8x128xf32>
    %81 = arith.addf %80, %79 : vector<8x128xf32>
    %82 = arith.divf %80, %81 : vector<8x128xf32>
    %83 = vector.extract_strided_slice %72 {offsets = [0, 128], sizes = [8, 128], strides = [1, 1]} : vector<8x384xf32> to vector<8x128xf32>
    %84 = vector.extract_strided_slice %74 {offsets = [0, 128], sizes = [8, 128], strides = [1, 1]} : vector<8x384xf32> to vector<8x128xf32>
    %85 = arith.addf %83, %84 : vector<8x128xf32>
    %86 = arith.negf %85 : vector<8x128xf32>
    %87 = math.exp %86 : vector<8x128xf32>
    %cst_27 = arith.constant 1.000000e+00 : f32
    %88 = vector.broadcast %cst_27 : f32 to vector<8x128xf32>
    %89 = arith.addf %88, %87 : vector<8x128xf32>
    %90 = arith.divf %88, %89 : vector<8x128xf32>
    %91 = vector.extract_strided_slice %72 {offsets = [0, 256], sizes = [8, 128], strides = [1, 1]} : vector<8x384xf32> to vector<8x128xf32>
    %92 = vector.extract_strided_slice %74 {offsets = [0, 256], sizes = [8, 128], strides = [1, 1]} : vector<8x384xf32> to vector<8x128xf32>
    %93 = vector.broadcast %8 : vector<1x128xf32> to vector<8x128xf32>
    %94 = arith.addf %92, %93 : vector<8x128xf32>
    %95 = arith.mulf %82, %94 : vector<8x128xf32>
    %96 = arith.addf %91, %95 : vector<8x128xf32>
    %97 = math.tanh %96 : vector<8x128xf32>
    %cst_28 = arith.constant 1.000000e+00 : f32
    %98 = vector.broadcast %cst_28 : f32 to vector<8x128xf32>
    %99 = arith.subf %98, %90 : vector<8x128xf32>
    %100 = arith.mulf %99, %97 : vector<8x128xf32>
    %101 = arith.mulf %90, %71 : vector<8x128xf32>
    %102 = arith.addf %100, %101 : vector<8x128xf32>
    %c24 = arith.constant 24 : index
    %c0_29 = arith.constant 0 : index
    %103 = vector.load %arg7[%c24, %c0_29] : memref<64x384xf32, #tpu.memory_space<vmem>>, vector<8x384xf32>
    %104 = arith.truncf %102 : vector<8x128xf32> to vector<8x128xbf16>
    %cst_30 = arith.constant dense<0.000000e+00> : vector<8x384xf32>
    %105 = tpu.matmul %104, %7, %cst_30 {dimension_numbers = #tpu.dot_dimension_numbers<[1], [0], [0], [1], [0, 0, 1, 1], [], []>} : vector<8x128xbf16>, vector<128x384xbf16>, vector<8x384xf32> -> vector<8x384xf32>
    %106 = vector.extract_strided_slice %103 {offsets = [0, 0], sizes = [8, 128], strides = [1, 1]} : vector<8x384xf32> to vector<8x128xf32>
    %107 = vector.extract_strided_slice %105 {offsets = [0, 0], sizes = [8, 128], strides = [1, 1]} : vector<8x384xf32> to vector<8x128xf32>
    %108 = arith.addf %106, %107 : vector<8x128xf32>
    %109 = arith.negf %108 : vector<8x128xf32>
    %110 = math.exp %109 : vector<8x128xf32>
    %cst_31 = arith.constant 1.000000e+00 : f32
    %111 = vector.broadcast %cst_31 : f32 to vector<8x128xf32>
    %112 = arith.addf %111, %110 : vector<8x128xf32>
    %113 = arith.divf %111, %112 : vector<8x128xf32>
    %114 = vector.extract_strided_slice %103 {offsets = [0, 128], sizes = [8, 128], strides = [1, 1]} : vector<8x384xf32> to vector<8x128xf32>
    %115 = vector.extract_strided_slice %105 {offsets = [0, 128], sizes = [8, 128], strides = [1, 1]} : vector<8x384xf32> to vector<8x128xf32>
    %116 = arith.addf %114, %115 : vector<8x128xf32>
    %117 = arith.negf %116 : vector<8x128xf32>
    %118 = math.exp %117 : vector<8x128xf32>
    %cst_32 = arith.constant 1.000000e+00 : f32
    %119 = vector.broadcast %cst_32 : f32 to vector<8x128xf32>
    %120 = arith.addf %119, %118 : vector<8x128xf32>
    %121 = arith.divf %119, %120 : vector<8x128xf32>
    %122 = vector.extract_strided_slice %103 {offsets = [0, 256], sizes = [8, 128], strides = [1, 1]} : vector<8x384xf32> to vector<8x128xf32>
    %123 = vector.extract_strided_slice %105 {offsets = [0, 256], sizes = [8, 128], strides = [1, 1]} : vector<8x384xf32> to vector<8x128xf32>
    %124 = vector.broadcast %8 : vector<1x128xf32> to vector<8x128xf32>
    %125 = arith.addf %123, %124 : vector<8x128xf32>
    %126 = arith.mulf %113, %125 : vector<8x128xf32>
    %127 = arith.addf %122, %126 : vector<8x128xf32>
    %128 = math.tanh %127 : vector<8x128xf32>
    %cst_33 = arith.constant 1.000000e+00 : f32
    %129 = vector.broadcast %cst_33 : f32 to vector<8x128xf32>
    %130 = arith.subf %129, %121 : vector<8x128xf32>
    %131 = arith.mulf %130, %128 : vector<8x128xf32>
    %132 = arith.mulf %121, %102 : vector<8x128xf32>
    %133 = arith.addf %131, %132 : vector<8x128xf32>
    %c32 = arith.constant 32 : index
    %c0_34 = arith.constant 0 : index
    %134 = vector.load %arg7[%c32, %c0_34] : memref<64x384xf32, #tpu.memory_space<vmem>>, vector<8x384xf32>
    %135 = arith.truncf %133 : vector<8x128xf32> to vector<8x128xbf16>
    %cst_35 = arith.constant dense<0.000000e+00> : vector<8x384xf32>
    %136 = tpu.matmul %135, %7, %cst_35 {dimension_numbers = #tpu.dot_dimension_numbers<[1], [0], [0], [1], [0, 0, 1, 1], [], []>} : vector<8x128xbf16>, vector<128x384xbf16>, vector<8x384xf32> -> vector<8x384xf32>
    %137 = vector.extract_strided_slice %134 {offsets = [0, 0], sizes = [8, 128], strides = [1, 1]} : vector<8x384xf32> to vector<8x128xf32>
    %138 = vector.extract_strided_slice %136 {offsets = [0, 0], sizes = [8, 128], strides = [1, 1]} : vector<8x384xf32> to vector<8x128xf32>
    %139 = arith.addf %137, %138 : vector<8x128xf32>
    %140 = arith.negf %139 : vector<8x128xf32>
    %141 = math.exp %140 : vector<8x128xf32>
    %cst_36 = arith.constant 1.000000e+00 : f32
    %142 = vector.broadcast %cst_36 : f32 to vector<8x128xf32>
    %143 = arith.addf %142, %141 : vector<8x128xf32>
    %144 = arith.divf %142, %143 : vector<8x128xf32>
    %145 = vector.extract_strided_slice %134 {offsets = [0, 128], sizes = [8, 128], strides = [1, 1]} : vector<8x384xf32> to vector<8x128xf32>
    %146 = vector.extract_strided_slice %136 {offsets = [0, 128], sizes = [8, 128], strides = [1, 1]} : vector<8x384xf32> to vector<8x128xf32>
    %147 = arith.addf %145, %146 : vector<8x128xf32>
    %148 = arith.negf %147 : vector<8x128xf32>
    %149 = math.exp %148 : vector<8x128xf32>
    %cst_37 = arith.constant 1.000000e+00 : f32
    %150 = vector.broadcast %cst_37 : f32 to vector<8x128xf32>
    %151 = arith.addf %150, %149 : vector<8x128xf32>
    %152 = arith.divf %150, %151 : vector<8x128xf32>
    %153 = vector.extract_strided_slice %134 {offsets = [0, 256], sizes = [8, 128], strides = [1, 1]} : vector<8x384xf32> to vector<8x128xf32>
    %154 = vector.extract_strided_slice %136 {offsets = [0, 256], sizes = [8, 128], strides = [1, 1]} : vector<8x384xf32> to vector<8x128xf32>
    %155 = vector.broadcast %8 : vector<1x128xf32> to vector<8x128xf32>
    %156 = arith.addf %154, %155 : vector<8x128xf32>
    %157 = arith.mulf %144, %156 : vector<8x128xf32>
    %158 = arith.addf %153, %157 : vector<8x128xf32>
    %159 = math.tanh %158 : vector<8x128xf32>
    %cst_38 = arith.constant 1.000000e+00 : f32
    %160 = vector.broadcast %cst_38 : f32 to vector<8x128xf32>
    %161 = arith.subf %160, %152 : vector<8x128xf32>
    %162 = arith.mulf %161, %159 : vector<8x128xf32>
    %163 = arith.mulf %152, %133 : vector<8x128xf32>
    %164 = arith.addf %162, %163 : vector<8x128xf32>
    %c40 = arith.constant 40 : index
    %c0_39 = arith.constant 0 : index
    %165 = vector.load %arg7[%c40, %c0_39] : memref<64x384xf32, #tpu.memory_space<vmem>>, vector<8x384xf32>
    %166 = arith.truncf %164 : vector<8x128xf32> to vector<8x128xbf16>
    %cst_40 = arith.constant dense<0.000000e+00> : vector<8x384xf32>
    %167 = tpu.matmul %166, %7, %cst_40 {dimension_numbers = #tpu.dot_dimension_numbers<[1], [0], [0], [1], [0, 0, 1, 1], [], []>} : vector<8x128xbf16>, vector<128x384xbf16>, vector<8x384xf32> -> vector<8x384xf32>
    %168 = vector.extract_strided_slice %165 {offsets = [0, 0], sizes = [8, 128], strides = [1, 1]} : vector<8x384xf32> to vector<8x128xf32>
    %169 = vector.extract_strided_slice %167 {offsets = [0, 0], sizes = [8, 128], strides = [1, 1]} : vector<8x384xf32> to vector<8x128xf32>
    %170 = arith.addf %168, %169 : vector<8x128xf32>
    %171 = arith.negf %170 : vector<8x128xf32>
    %172 = math.exp %171 : vector<8x128xf32>
    %cst_41 = arith.constant 1.000000e+00 : f32
    %173 = vector.broadcast %cst_41 : f32 to vector<8x128xf32>
    %174 = arith.addf %173, %172 : vector<8x128xf32>
    %175 = arith.divf %173, %174 : vector<8x128xf32>
    %176 = vector.extract_strided_slice %165 {offsets = [0, 128], sizes = [8, 128], strides = [1, 1]} : vector<8x384xf32> to vector<8x128xf32>
    %177 = vector.extract_strided_slice %167 {offsets = [0, 128], sizes = [8, 128], strides = [1, 1]} : vector<8x384xf32> to vector<8x128xf32>
    %178 = arith.addf %176, %177 : vector<8x128xf32>
    %179 = arith.negf %178 : vector<8x128xf32>
    %180 = math.exp %179 : vector<8x128xf32>
    %cst_42 = arith.constant 1.000000e+00 : f32
    %181 = vector.broadcast %cst_42 : f32 to vector<8x128xf32>
    %182 = arith.addf %181, %180 : vector<8x128xf32>
    %183 = arith.divf %181, %182 : vector<8x128xf32>
    %184 = vector.extract_strided_slice %165 {offsets = [0, 256], sizes = [8, 128], strides = [1, 1]} : vector<8x384xf32> to vector<8x128xf32>
    %185 = vector.extract_strided_slice %167 {offsets = [0, 256], sizes = [8, 128], strides = [1, 1]} : vector<8x384xf32> to vector<8x128xf32>
    %186 = vector.broadcast %8 : vector<1x128xf32> to vector<8x128xf32>
    %187 = arith.addf %185, %186 : vector<8x128xf32>
    %188 = arith.mulf %175, %187 : vector<8x128xf32>
    %189 = arith.addf %184, %188 : vector<8x128xf32>
    %190 = math.tanh %189 : vector<8x128xf32>
    %cst_43 = arith.constant 1.000000e+00 : f32
    %191 = vector.broadcast %cst_43 : f32 to vector<8x128xf32>
    %192 = arith.subf %191, %183 : vector<8x128xf32>
    %193 = arith.mulf %192, %190 : vector<8x128xf32>
    %194 = arith.mulf %183, %164 : vector<8x128xf32>
    %195 = arith.addf %193, %194 : vector<8x128xf32>
    %c48 = arith.constant 48 : index
    %c0_44 = arith.constant 0 : index
    %196 = vector.load %arg7[%c48, %c0_44] : memref<64x384xf32, #tpu.memory_space<vmem>>, vector<8x384xf32>
    %197 = arith.truncf %195 : vector<8x128xf32> to vector<8x128xbf16>
    %cst_45 = arith.constant dense<0.000000e+00> : vector<8x384xf32>
    %198 = tpu.matmul %197, %7, %cst_45 {dimension_numbers = #tpu.dot_dimension_numbers<[1], [0], [0], [1], [0, 0, 1, 1], [], []>} : vector<8x128xbf16>, vector<128x384xbf16>, vector<8x384xf32> -> vector<8x384xf32>
    %199 = vector.extract_strided_slice %196 {offsets = [0, 0], sizes = [8, 128], strides = [1, 1]} : vector<8x384xf32> to vector<8x128xf32>
    %200 = vector.extract_strided_slice %198 {offsets = [0, 0], sizes = [8, 128], strides = [1, 1]} : vector<8x384xf32> to vector<8x128xf32>
    %201 = arith.addf %199, %200 : vector<8x128xf32>
    %202 = arith.negf %201 : vector<8x128xf32>
    %203 = math.exp %202 : vector<8x128xf32>
    %cst_46 = arith.constant 1.000000e+00 : f32
    %204 = vector.broadcast %cst_46 : f32 to vector<8x128xf32>
    %205 = arith.addf %204, %203 : vector<8x128xf32>
    %206 = arith.divf %204, %205 : vector<8x128xf32>
    %207 = vector.extract_strided_slice %196 {offsets = [0, 128], sizes = [8, 128], strides = [1, 1]} : vector<8x384xf32> to vector<8x128xf32>
    %208 = vector.extract_strided_slice %198 {offsets = [0, 128], sizes = [8, 128], strides = [1, 1]} : vector<8x384xf32> to vector<8x128xf32>
    %209 = arith.addf %207, %208 : vector<8x128xf32>
    %210 = arith.negf %209 : vector<8x128xf32>
    %211 = math.exp %210 : vector<8x128xf32>
    %cst_47 = arith.constant 1.000000e+00 : f32
    %212 = vector.broadcast %cst_47 : f32 to vector<8x128xf32>
    %213 = arith.addf %212, %211 : vector<8x128xf32>
    %214 = arith.divf %212, %213 : vector<8x128xf32>
    %215 = vector.extract_strided_slice %196 {offsets = [0, 256], sizes = [8, 128], strides = [1, 1]} : vector<8x384xf32> to vector<8x128xf32>
    %216 = vector.extract_strided_slice %198 {offsets = [0, 256], sizes = [8, 128], strides = [1, 1]} : vector<8x384xf32> to vector<8x128xf32>
    %217 = vector.broadcast %8 : vector<1x128xf32> to vector<8x128xf32>
    %218 = arith.addf %216, %217 : vector<8x128xf32>
    %219 = arith.mulf %206, %218 : vector<8x128xf32>
    %220 = arith.addf %215, %219 : vector<8x128xf32>
    %221 = math.tanh %220 : vector<8x128xf32>
    %cst_48 = arith.constant 1.000000e+00 : f32
    %222 = vector.broadcast %cst_48 : f32 to vector<8x128xf32>
    %223 = arith.subf %222, %214 : vector<8x128xf32>
    %224 = arith.mulf %223, %221 : vector<8x128xf32>
    %225 = arith.mulf %214, %195 : vector<8x128xf32>
    %226 = arith.addf %224, %225 : vector<8x128xf32>
    %c56 = arith.constant 56 : index
    %c0_49 = arith.constant 0 : index
    %227 = vector.load %arg7[%c56, %c0_49] : memref<64x384xf32, #tpu.memory_space<vmem>>, vector<8x384xf32>
    %228 = arith.truncf %226 : vector<8x128xf32> to vector<8x128xbf16>
    %cst_50 = arith.constant dense<0.000000e+00> : vector<8x384xf32>
    %229 = tpu.matmul %228, %7, %cst_50 {dimension_numbers = #tpu.dot_dimension_numbers<[1], [0], [0], [1], [0, 0, 1, 1], [], []>} : vector<8x128xbf16>, vector<128x384xbf16>, vector<8x384xf32> -> vector<8x384xf32>
    %230 = vector.extract_strided_slice %227 {offsets = [0, 0], sizes = [8, 128], strides = [1, 1]} : vector<8x384xf32> to vector<8x128xf32>
    %231 = vector.extract_strided_slice %229 {offsets = [0, 0], sizes = [8, 128], strides = [1, 1]} : vector<8x384xf32> to vector<8x128xf32>
    %232 = arith.addf %230, %231 : vector<8x128xf32>
    %233 = arith.negf %232 : vector<8x128xf32>
    %234 = math.exp %233 : vector<8x128xf32>
    %cst_51 = arith.constant 1.000000e+00 : f32
    %235 = vector.broadcast %cst_51 : f32 to vector<8x128xf32>
    %236 = arith.addf %235, %234 : vector<8x128xf32>
    %237 = arith.divf %235, %236 : vector<8x128xf32>
    %238 = vector.extract_strided_slice %227 {offsets = [0, 128], sizes = [8, 128], strides = [1, 1]} : vector<8x384xf32> to vector<8x128xf32>
    %239 = vector.extract_strided_slice %229 {offsets = [0, 128], sizes = [8, 128], strides = [1, 1]} : vector<8x384xf32> to vector<8x128xf32>
    %240 = arith.addf %238, %239 : vector<8x128xf32>
    %241 = arith.negf %240 : vector<8x128xf32>
    %242 = math.exp %241 : vector<8x128xf32>
    %cst_52 = arith.constant 1.000000e+00 : f32
    %243 = vector.broadcast %cst_52 : f32 to vector<8x128xf32>
    %244 = arith.addf %243, %242 : vector<8x128xf32>
    %245 = arith.divf %243, %244 : vector<8x128xf32>
    %246 = vector.extract_strided_slice %227 {offsets = [0, 256], sizes = [8, 128], strides = [1, 1]} : vector<8x384xf32> to vector<8x128xf32>
    %247 = vector.extract_strided_slice %229 {offsets = [0, 256], sizes = [8, 128], strides = [1, 1]} : vector<8x384xf32> to vector<8x128xf32>
    %248 = vector.broadcast %8 : vector<1x128xf32> to vector<8x128xf32>
    %249 = arith.addf %247, %248 : vector<8x128xf32>
    %250 = arith.mulf %237, %249 : vector<8x128xf32>
    %251 = arith.addf %246, %250 : vector<8x128xf32>
    %252 = math.tanh %251 : vector<8x128xf32>
    %cst_53 = arith.constant 1.000000e+00 : f32
    %253 = vector.broadcast %cst_53 : f32 to vector<8x128xf32>
    %254 = arith.subf %253, %245 : vector<8x128xf32>
    %255 = arith.mulf %254, %252 : vector<8x128xf32>
    %256 = arith.mulf %245, %226 : vector<8x128xf32>
    %257 = arith.addf %255, %256 : vector<8x128xf32>
    %c0_54 = arith.constant 0 : index
    %c0_55 = arith.constant 0 : index
    %258 = vector.load %arg6[%c0_54, %c0_55] : memref<8x128xf32, #tpu.memory_space<vmem>>, vector<8x128xf32>
    tpu.vector_store %arg6[%c0_54, %c0_55], %257 {strides = array<i32>} : memref<8x128xf32, #tpu.memory_space<vmem>>, vector<8x128xf32>,
    return
  }
}

module attributes {stable_mosaic.version = 11 : i64} {
  func.func @_gru_head_kernel(%arg0: memref<48x128xbf16, #tpu.memory_space<vmem>>, %arg1: memref<128x384xbf16, #tpu.memory_space<vmem>>, %arg2: memref<128x384xbf16, #tpu.memory_space<vmem>>, %arg3: memref<1x384xf32, #tpu.memory_space<vmem>>, %arg4: memref<1x128xf32, #tpu.memory_space<vmem>>, %arg5: memref<8x128xf32, #tpu.memory_space<vmem>>, %arg6: memref<128x128xbf16, #tpu.memory_space<vmem>>, %arg7: memref<1x128xf32, #tpu.memory_space<vmem>>, %arg8: memref<48x128xf32, #tpu.memory_space<vmem>>, %arg9: memref<8x128xf32, #tpu.memory_space<vmem>>, %arg10: memref<48x384xf32, #tpu.memory_space<vmem>>, %arg11: memref<48x128xf32, #tpu.memory_space<vmem>>) attributes {dimension_semantics = [], scalar_prefetch = 0 : i64, scratch_operands = 2 : i64, tpu.core_type = #tpu.core_type<tc>} {
    %c0 = arith.constant 0 : index
    %c0_0 = arith.constant 0 : index
    %0 = vector.load %arg0[%c0, %c0_0] : memref<48x128xbf16, #tpu.memory_space<vmem>>, vector<48x128xbf16>
    %c0_1 = arith.constant 0 : index
    %c0_2 = arith.constant 0 : index
    %1 = vector.load %arg1[%c0_1, %c0_2] : memref<128x384xbf16, #tpu.memory_space<vmem>>, vector<128x384xbf16>
    %cst = arith.constant dense<0.000000e+00> : vector<48x384xf32>
    %2 = tpu.matmul %0, %1, %cst {dimension_numbers = #tpu.dot_dimension_numbers<[1], [0], [0], [1], [0, 0, 1, 1], [], []>} : vector<48x128xbf16>, vector<128x384xbf16>, vector<48x384xf32> -> vector<48x384xf32>
    %c0_3 = arith.constant 0 : index
    %c0_4 = arith.constant 0 : index
    %3 = vector.load %arg3[%c0_3, %c0_4] : memref<1x384xf32, #tpu.memory_space<vmem>>, vector<1x384xf32>
    %4 = vector.broadcast %3 : vector<1x384xf32> to vector<48x384xf32>
    %5 = arith.addf %2, %4 : vector<48x384xf32>
    %c0_5 = arith.constant 0 : index
    %c0_6 = arith.constant 0 : index
    %6 = vector.load %arg10[%c0_5, %c0_6] : memref<48x384xf32, #tpu.memory_space<vmem>>, vector<48x384xf32>
    tpu.vector_store %arg10[%c0_5, %c0_6], %5 {strides = array<i32>} : memref<48x384xf32, #tpu.memory_space<vmem>>, vector<48x384xf32>,
    %c0_7 = arith.constant 0 : index
    %c0_8 = arith.constant 0 : index
    %7 = vector.load %arg2[%c0_7, %c0_8] : memref<128x384xbf16, #tpu.memory_space<vmem>>, vector<128x384xbf16>
    %c0_9 = arith.constant 0 : index
    %c0_10 = arith.constant 0 : index
    %8 = vector.load %arg4[%c0_9, %c0_10] : memref<1x128xf32, #tpu.memory_space<vmem>>, vector<1x128xf32>
    %c0_11 = arith.constant 0 : index
    %c0_12 = arith.constant 0 : index
    %9 = vector.load %arg5[%c0_11, %c0_12] : memref<8x128xf32, #tpu.memory_space<vmem>>, vector<8x128xf32>
    %c0_13 = arith.constant 0 : index
    %c0_14 = arith.constant 0 : index
    %10 = vector.load %arg10[%c0_13, %c0_14] : memref<48x384xf32, #tpu.memory_space<vmem>>, vector<8x384xf32>
    %11 = arith.truncf %9 : vector<8x128xf32> to vector<8x128xbf16>
    %cst_15 = arith.constant dense<0.000000e+00> : vector<8x384xf32>
    %12 = tpu.matmul %11, %7, %cst_15 {dimension_numbers = #tpu.dot_dimension_numbers<[1], [0], [0], [1], [0, 0, 1, 1], [], []>} : vector<8x128xbf16>, vector<128x384xbf16>, vector<8x384xf32> -> vector<8x384xf32>
    %13 = vector.extract_strided_slice %10 {offsets = [0, 0], sizes = [8, 128], strides = [1, 1]} : vector<8x384xf32> to vector<8x128xf32>
    %14 = vector.extract_strided_slice %12 {offsets = [0, 0], sizes = [8, 128], strides = [1, 1]} : vector<8x384xf32> to vector<8x128xf32>
    %15 = arith.addf %13, %14 : vector<8x128xf32>
    %16 = arith.negf %15 : vector<8x128xf32>
    %17 = math.exp %16 : vector<8x128xf32>
    %cst_16 = arith.constant 1.000000e+00 : f32
    %18 = vector.broadcast %cst_16 : f32 to vector<8x128xf32>
    %19 = arith.addf %18, %17 : vector<8x128xf32>
    %20 = arith.divf %18, %19 : vector<8x128xf32>
    %21 = vector.extract_strided_slice %10 {offsets = [0, 128], sizes = [8, 128], strides = [1, 1]} : vector<8x384xf32> to vector<8x128xf32>
    %22 = vector.extract_strided_slice %12 {offsets = [0, 128], sizes = [8, 128], strides = [1, 1]} : vector<8x384xf32> to vector<8x128xf32>
    %23 = arith.addf %21, %22 : vector<8x128xf32>
    %24 = arith.negf %23 : vector<8x128xf32>
    %25 = math.exp %24 : vector<8x128xf32>
    %cst_17 = arith.constant 1.000000e+00 : f32
    %26 = vector.broadcast %cst_17 : f32 to vector<8x128xf32>
    %27 = arith.addf %26, %25 : vector<8x128xf32>
    %28 = arith.divf %26, %27 : vector<8x128xf32>
    %29 = vector.extract_strided_slice %10 {offsets = [0, 256], sizes = [8, 128], strides = [1, 1]} : vector<8x384xf32> to vector<8x128xf32>
    %30 = vector.extract_strided_slice %12 {offsets = [0, 256], sizes = [8, 128], strides = [1, 1]} : vector<8x384xf32> to vector<8x128xf32>
    %31 = vector.broadcast %8 : vector<1x128xf32> to vector<8x128xf32>
    %32 = arith.addf %30, %31 : vector<8x128xf32>
    %33 = arith.mulf %20, %32 : vector<8x128xf32>
    %34 = arith.addf %29, %33 : vector<8x128xf32>
    %35 = math.tanh %34 : vector<8x128xf32>
    %cst_18 = arith.constant 1.000000e+00 : f32
    %36 = vector.broadcast %cst_18 : f32 to vector<8x128xf32>
    %37 = arith.subf %36, %28 : vector<8x128xf32>
    %38 = arith.mulf %37, %35 : vector<8x128xf32>
    %39 = arith.mulf %28, %9 : vector<8x128xf32>
    %40 = arith.addf %38, %39 : vector<8x128xf32>
    %c0_19 = arith.constant 0 : index
    %c0_20 = arith.constant 0 : index
    %41 = vector.load %arg11[%c0_19, %c0_20] : memref<48x128xf32, #tpu.memory_space<vmem>>, vector<8x128xf32>
    tpu.vector_store %arg11[%c0_19, %c0_20], %40 {strides = array<i32>} : memref<48x128xf32, #tpu.memory_space<vmem>>, vector<8x128xf32>,
    %c8 = arith.constant 8 : index
    %c0_21 = arith.constant 0 : index
    %42 = vector.load %arg10[%c8, %c0_21] : memref<48x384xf32, #tpu.memory_space<vmem>>, vector<8x384xf32>
    %43 = arith.truncf %40 : vector<8x128xf32> to vector<8x128xbf16>
    %cst_22 = arith.constant dense<0.000000e+00> : vector<8x384xf32>
    %44 = tpu.matmul %43, %7, %cst_22 {dimension_numbers = #tpu.dot_dimension_numbers<[1], [0], [0], [1], [0, 0, 1, 1], [], []>} : vector<8x128xbf16>, vector<128x384xbf16>, vector<8x384xf32> -> vector<8x384xf32>
    %45 = vector.extract_strided_slice %42 {offsets = [0, 0], sizes = [8, 128], strides = [1, 1]} : vector<8x384xf32> to vector<8x128xf32>
    %46 = vector.extract_strided_slice %44 {offsets = [0, 0], sizes = [8, 128], strides = [1, 1]} : vector<8x384xf32> to vector<8x128xf32>
    %47 = arith.addf %45, %46 : vector<8x128xf32>
    %48 = arith.negf %47 : vector<8x128xf32>
    %49 = math.exp %48 : vector<8x128xf32>
    %cst_23 = arith.constant 1.000000e+00 : f32
    %50 = vector.broadcast %cst_23 : f32 to vector<8x128xf32>
    %51 = arith.addf %50, %49 : vector<8x128xf32>
    %52 = arith.divf %50, %51 : vector<8x128xf32>
    %53 = vector.extract_strided_slice %42 {offsets = [0, 128], sizes = [8, 128], strides = [1, 1]} : vector<8x384xf32> to vector<8x128xf32>
    %54 = vector.extract_strided_slice %44 {offsets = [0, 128], sizes = [8, 128], strides = [1, 1]} : vector<8x384xf32> to vector<8x128xf32>
    %55 = arith.addf %53, %54 : vector<8x128xf32>
    %56 = arith.negf %55 : vector<8x128xf32>
    %57 = math.exp %56 : vector<8x128xf32>
    %cst_24 = arith.constant 1.000000e+00 : f32
    %58 = vector.broadcast %cst_24 : f32 to vector<8x128xf32>
    %59 = arith.addf %58, %57 : vector<8x128xf32>
    %60 = arith.divf %58, %59 : vector<8x128xf32>
    %61 = vector.extract_strided_slice %42 {offsets = [0, 256], sizes = [8, 128], strides = [1, 1]} : vector<8x384xf32> to vector<8x128xf32>
    %62 = vector.extract_strided_slice %44 {offsets = [0, 256], sizes = [8, 128], strides = [1, 1]} : vector<8x384xf32> to vector<8x128xf32>
    %63 = vector.broadcast %8 : vector<1x128xf32> to vector<8x128xf32>
    %64 = arith.addf %62, %63 : vector<8x128xf32>
    %65 = arith.mulf %52, %64 : vector<8x128xf32>
    %66 = arith.addf %61, %65 : vector<8x128xf32>
    %67 = math.tanh %66 : vector<8x128xf32>
    %cst_25 = arith.constant 1.000000e+00 : f32
    %68 = vector.broadcast %cst_25 : f32 to vector<8x128xf32>
    %69 = arith.subf %68, %60 : vector<8x128xf32>
    %70 = arith.mulf %69, %67 : vector<8x128xf32>
    %71 = arith.mulf %60, %40 : vector<8x128xf32>
    %72 = arith.addf %70, %71 : vector<8x128xf32>
    %c8_26 = arith.constant 8 : index
    %c0_27 = arith.constant 0 : index
    %73 = vector.load %arg11[%c8_26, %c0_27] : memref<48x128xf32, #tpu.memory_space<vmem>>, vector<8x128xf32>
    tpu.vector_store %arg11[%c8_26, %c0_27], %72 {strides = array<i32>} : memref<48x128xf32, #tpu.memory_space<vmem>>, vector<8x128xf32>,
    %c16 = arith.constant 16 : index
    %c0_28 = arith.constant 0 : index
    %74 = vector.load %arg10[%c16, %c0_28] : memref<48x384xf32, #tpu.memory_space<vmem>>, vector<8x384xf32>
    %75 = arith.truncf %72 : vector<8x128xf32> to vector<8x128xbf16>
    %cst_29 = arith.constant dense<0.000000e+00> : vector<8x384xf32>
    %76 = tpu.matmul %75, %7, %cst_29 {dimension_numbers = #tpu.dot_dimension_numbers<[1], [0], [0], [1], [0, 0, 1, 1], [], []>} : vector<8x128xbf16>, vector<128x384xbf16>, vector<8x384xf32> -> vector<8x384xf32>
    %77 = vector.extract_strided_slice %74 {offsets = [0, 0], sizes = [8, 128], strides = [1, 1]} : vector<8x384xf32> to vector<8x128xf32>
    %78 = vector.extract_strided_slice %76 {offsets = [0, 0], sizes = [8, 128], strides = [1, 1]} : vector<8x384xf32> to vector<8x128xf32>
    %79 = arith.addf %77, %78 : vector<8x128xf32>
    %80 = arith.negf %79 : vector<8x128xf32>
    %81 = math.exp %80 : vector<8x128xf32>
    %cst_30 = arith.constant 1.000000e+00 : f32
    %82 = vector.broadcast %cst_30 : f32 to vector<8x128xf32>
    %83 = arith.addf %82, %81 : vector<8x128xf32>
    %84 = arith.divf %82, %83 : vector<8x128xf32>
    %85 = vector.extract_strided_slice %74 {offsets = [0, 128], sizes = [8, 128], strides = [1, 1]} : vector<8x384xf32> to vector<8x128xf32>
    %86 = vector.extract_strided_slice %76 {offsets = [0, 128], sizes = [8, 128], strides = [1, 1]} : vector<8x384xf32> to vector<8x128xf32>
    %87 = arith.addf %85, %86 : vector<8x128xf32>
    %88 = arith.negf %87 : vector<8x128xf32>
    %89 = math.exp %88 : vector<8x128xf32>
    %cst_31 = arith.constant 1.000000e+00 : f32
    %90 = vector.broadcast %cst_31 : f32 to vector<8x128xf32>
    %91 = arith.addf %90, %89 : vector<8x128xf32>
    %92 = arith.divf %90, %91 : vector<8x128xf32>
    %93 = vector.extract_strided_slice %74 {offsets = [0, 256], sizes = [8, 128], strides = [1, 1]} : vector<8x384xf32> to vector<8x128xf32>
    %94 = vector.extract_strided_slice %76 {offsets = [0, 256], sizes = [8, 128], strides = [1, 1]} : vector<8x384xf32> to vector<8x128xf32>
    %95 = vector.broadcast %8 : vector<1x128xf32> to vector<8x128xf32>
    %96 = arith.addf %94, %95 : vector<8x128xf32>
    %97 = arith.mulf %84, %96 : vector<8x128xf32>
    %98 = arith.addf %93, %97 : vector<8x128xf32>
    %99 = math.tanh %98 : vector<8x128xf32>
    %cst_32 = arith.constant 1.000000e+00 : f32
    %100 = vector.broadcast %cst_32 : f32 to vector<8x128xf32>
    %101 = arith.subf %100, %92 : vector<8x128xf32>
    %102 = arith.mulf %101, %99 : vector<8x128xf32>
    %103 = arith.mulf %92, %72 : vector<8x128xf32>
    %104 = arith.addf %102, %103 : vector<8x128xf32>
    %c16_33 = arith.constant 16 : index
    %c0_34 = arith.constant 0 : index
    %105 = vector.load %arg11[%c16_33, %c0_34] : memref<48x128xf32, #tpu.memory_space<vmem>>, vector<8x128xf32>
    tpu.vector_store %arg11[%c16_33, %c0_34], %104 {strides = array<i32>} : memref<48x128xf32, #tpu.memory_space<vmem>>, vector<8x128xf32>,
    %c24 = arith.constant 24 : index
    %c0_35 = arith.constant 0 : index
    %106 = vector.load %arg10[%c24, %c0_35] : memref<48x384xf32, #tpu.memory_space<vmem>>, vector<8x384xf32>
    %107 = arith.truncf %104 : vector<8x128xf32> to vector<8x128xbf16>
    %cst_36 = arith.constant dense<0.000000e+00> : vector<8x384xf32>
    %108 = tpu.matmul %107, %7, %cst_36 {dimension_numbers = #tpu.dot_dimension_numbers<[1], [0], [0], [1], [0, 0, 1, 1], [], []>} : vector<8x128xbf16>, vector<128x384xbf16>, vector<8x384xf32> -> vector<8x384xf32>
    %109 = vector.extract_strided_slice %106 {offsets = [0, 0], sizes = [8, 128], strides = [1, 1]} : vector<8x384xf32> to vector<8x128xf32>
    %110 = vector.extract_strided_slice %108 {offsets = [0, 0], sizes = [8, 128], strides = [1, 1]} : vector<8x384xf32> to vector<8x128xf32>
    %111 = arith.addf %109, %110 : vector<8x128xf32>
    %112 = arith.negf %111 : vector<8x128xf32>
    %113 = math.exp %112 : vector<8x128xf32>
    %cst_37 = arith.constant 1.000000e+00 : f32
    %114 = vector.broadcast %cst_37 : f32 to vector<8x128xf32>
    %115 = arith.addf %114, %113 : vector<8x128xf32>
    %116 = arith.divf %114, %115 : vector<8x128xf32>
    %117 = vector.extract_strided_slice %106 {offsets = [0, 128], sizes = [8, 128], strides = [1, 1]} : vector<8x384xf32> to vector<8x128xf32>
    %118 = vector.extract_strided_slice %108 {offsets = [0, 128], sizes = [8, 128], strides = [1, 1]} : vector<8x384xf32> to vector<8x128xf32>
    %119 = arith.addf %117, %118 : vector<8x128xf32>
    %120 = arith.negf %119 : vector<8x128xf32>
    %121 = math.exp %120 : vector<8x128xf32>
    %cst_38 = arith.constant 1.000000e+00 : f32
    %122 = vector.broadcast %cst_38 : f32 to vector<8x128xf32>
    %123 = arith.addf %122, %121 : vector<8x128xf32>
    %124 = arith.divf %122, %123 : vector<8x128xf32>
    %125 = vector.extract_strided_slice %106 {offsets = [0, 256], sizes = [8, 128], strides = [1, 1]} : vector<8x384xf32> to vector<8x128xf32>
    %126 = vector.extract_strided_slice %108 {offsets = [0, 256], sizes = [8, 128], strides = [1, 1]} : vector<8x384xf32> to vector<8x128xf32>
    %127 = vector.broadcast %8 : vector<1x128xf32> to vector<8x128xf32>
    %128 = arith.addf %126, %127 : vector<8x128xf32>
    %129 = arith.mulf %116, %128 : vector<8x128xf32>
    %130 = arith.addf %125, %129 : vector<8x128xf32>
    %131 = math.tanh %130 : vector<8x128xf32>
    %cst_39 = arith.constant 1.000000e+00 : f32
    %132 = vector.broadcast %cst_39 : f32 to vector<8x128xf32>
    %133 = arith.subf %132, %124 : vector<8x128xf32>
    %134 = arith.mulf %133, %131 : vector<8x128xf32>
    %135 = arith.mulf %124, %104 : vector<8x128xf32>
    %136 = arith.addf %134, %135 : vector<8x128xf32>
    %c24_40 = arith.constant 24 : index
    %c0_41 = arith.constant 0 : index
    %137 = vector.load %arg11[%c24_40, %c0_41] : memref<48x128xf32, #tpu.memory_space<vmem>>, vector<8x128xf32>
    tpu.vector_store %arg11[%c24_40, %c0_41], %136 {strides = array<i32>} : memref<48x128xf32, #tpu.memory_space<vmem>>, vector<8x128xf32>,
    %c32 = arith.constant 32 : index
    %c0_42 = arith.constant 0 : index
    %138 = vector.load %arg10[%c32, %c0_42] : memref<48x384xf32, #tpu.memory_space<vmem>>, vector<8x384xf32>
    %139 = arith.truncf %136 : vector<8x128xf32> to vector<8x128xbf16>
    %cst_43 = arith.constant dense<0.000000e+00> : vector<8x384xf32>
    %140 = tpu.matmul %139, %7, %cst_43 {dimension_numbers = #tpu.dot_dimension_numbers<[1], [0], [0], [1], [0, 0, 1, 1], [], []>} : vector<8x128xbf16>, vector<128x384xbf16>, vector<8x384xf32> -> vector<8x384xf32>
    %141 = vector.extract_strided_slice %138 {offsets = [0, 0], sizes = [8, 128], strides = [1, 1]} : vector<8x384xf32> to vector<8x128xf32>
    %142 = vector.extract_strided_slice %140 {offsets = [0, 0], sizes = [8, 128], strides = [1, 1]} : vector<8x384xf32> to vector<8x128xf32>
    %143 = arith.addf %141, %142 : vector<8x128xf32>
    %144 = arith.negf %143 : vector<8x128xf32>
    %145 = math.exp %144 : vector<8x128xf32>
    %cst_44 = arith.constant 1.000000e+00 : f32
    %146 = vector.broadcast %cst_44 : f32 to vector<8x128xf32>
    %147 = arith.addf %146, %145 : vector<8x128xf32>
    %148 = arith.divf %146, %147 : vector<8x128xf32>
    %149 = vector.extract_strided_slice %138 {offsets = [0, 128], sizes = [8, 128], strides = [1, 1]} : vector<8x384xf32> to vector<8x128xf32>
    %150 = vector.extract_strided_slice %140 {offsets = [0, 128], sizes = [8, 128], strides = [1, 1]} : vector<8x384xf32> to vector<8x128xf32>
    %151 = arith.addf %149, %150 : vector<8x128xf32>
    %152 = arith.negf %151 : vector<8x128xf32>
    %153 = math.exp %152 : vector<8x128xf32>
    %cst_45 = arith.constant 1.000000e+00 : f32
    %154 = vector.broadcast %cst_45 : f32 to vector<8x128xf32>
    %155 = arith.addf %154, %153 : vector<8x128xf32>
    %156 = arith.divf %154, %155 : vector<8x128xf32>
    %157 = vector.extract_strided_slice %138 {offsets = [0, 256], sizes = [8, 128], strides = [1, 1]} : vector<8x384xf32> to vector<8x128xf32>
    %158 = vector.extract_strided_slice %140 {offsets = [0, 256], sizes = [8, 128], strides = [1, 1]} : vector<8x384xf32> to vector<8x128xf32>
    %159 = vector.broadcast %8 : vector<1x128xf32> to vector<8x128xf32>
    %160 = arith.addf %158, %159 : vector<8x128xf32>
    %161 = arith.mulf %148, %160 : vector<8x128xf32>
    %162 = arith.addf %157, %161 : vector<8x128xf32>
    %163 = math.tanh %162 : vector<8x128xf32>
    %cst_46 = arith.constant 1.000000e+00 : f32
    %164 = vector.broadcast %cst_46 : f32 to vector<8x128xf32>
    %165 = arith.subf %164, %156 : vector<8x128xf32>
    %166 = arith.mulf %165, %163 : vector<8x128xf32>
    %167 = arith.mulf %156, %136 : vector<8x128xf32>
    %168 = arith.addf %166, %167 : vector<8x128xf32>
    %c32_47 = arith.constant 32 : index
    %c0_48 = arith.constant 0 : index
    %169 = vector.load %arg11[%c32_47, %c0_48] : memref<48x128xf32, #tpu.memory_space<vmem>>, vector<8x128xf32>
    tpu.vector_store %arg11[%c32_47, %c0_48], %168 {strides = array<i32>} : memref<48x128xf32, #tpu.memory_space<vmem>>, vector<8x128xf32>,
    %c40 = arith.constant 40 : index
    %c0_49 = arith.constant 0 : index
    %170 = vector.load %arg10[%c40, %c0_49] : memref<48x384xf32, #tpu.memory_space<vmem>>, vector<8x384xf32>
    %171 = arith.truncf %168 : vector<8x128xf32> to vector<8x128xbf16>
    %cst_50 = arith.constant dense<0.000000e+00> : vector<8x384xf32>
    %172 = tpu.matmul %171, %7, %cst_50 {dimension_numbers = #tpu.dot_dimension_numbers<[1], [0], [0], [1], [0, 0, 1, 1], [], []>} : vector<8x128xbf16>, vector<128x384xbf16>, vector<8x384xf32> -> vector<8x384xf32>
    %173 = vector.extract_strided_slice %170 {offsets = [0, 0], sizes = [8, 128], strides = [1, 1]} : vector<8x384xf32> to vector<8x128xf32>
    %174 = vector.extract_strided_slice %172 {offsets = [0, 0], sizes = [8, 128], strides = [1, 1]} : vector<8x384xf32> to vector<8x128xf32>
    %175 = arith.addf %173, %174 : vector<8x128xf32>
    %176 = arith.negf %175 : vector<8x128xf32>
    %177 = math.exp %176 : vector<8x128xf32>
    %cst_51 = arith.constant 1.000000e+00 : f32
    %178 = vector.broadcast %cst_51 : f32 to vector<8x128xf32>
    %179 = arith.addf %178, %177 : vector<8x128xf32>
    %180 = arith.divf %178, %179 : vector<8x128xf32>
    %181 = vector.extract_strided_slice %170 {offsets = [0, 128], sizes = [8, 128], strides = [1, 1]} : vector<8x384xf32> to vector<8x128xf32>
    %182 = vector.extract_strided_slice %172 {offsets = [0, 128], sizes = [8, 128], strides = [1, 1]} : vector<8x384xf32> to vector<8x128xf32>
    %183 = arith.addf %181, %182 : vector<8x128xf32>
    %184 = arith.negf %183 : vector<8x128xf32>
    %185 = math.exp %184 : vector<8x128xf32>
    %cst_52 = arith.constant 1.000000e+00 : f32
    %186 = vector.broadcast %cst_52 : f32 to vector<8x128xf32>
    %187 = arith.addf %186, %185 : vector<8x128xf32>
    %188 = arith.divf %186, %187 : vector<8x128xf32>
    %189 = vector.extract_strided_slice %170 {offsets = [0, 256], sizes = [8, 128], strides = [1, 1]} : vector<8x384xf32> to vector<8x128xf32>
    %190 = vector.extract_strided_slice %172 {offsets = [0, 256], sizes = [8, 128], strides = [1, 1]} : vector<8x384xf32> to vector<8x128xf32>
    %191 = vector.broadcast %8 : vector<1x128xf32> to vector<8x128xf32>
    %192 = arith.addf %190, %191 : vector<8x128xf32>
    %193 = arith.mulf %180, %192 : vector<8x128xf32>
    %194 = arith.addf %189, %193 : vector<8x128xf32>
    %195 = math.tanh %194 : vector<8x128xf32>
    %cst_53 = arith.constant 1.000000e+00 : f32
    %196 = vector.broadcast %cst_53 : f32 to vector<8x128xf32>
    %197 = arith.subf %196, %188 : vector<8x128xf32>
    %198 = arith.mulf %197, %195 : vector<8x128xf32>
    %199 = arith.mulf %188, %168 : vector<8x128xf32>
    %200 = arith.addf %198, %199 : vector<8x128xf32>
    %c40_54 = arith.constant 40 : index
    %c0_55 = arith.constant 0 : index
    %201 = vector.load %arg11[%c40_54, %c0_55] : memref<48x128xf32, #tpu.memory_space<vmem>>, vector<8x128xf32>
    tpu.vector_store %arg11[%c40_54, %c0_55], %200 {strides = array<i32>} : memref<48x128xf32, #tpu.memory_space<vmem>>, vector<8x128xf32>,
    %c0_56 = arith.constant 0 : index
    %c0_57 = arith.constant 0 : index
    %202 = vector.load %arg9[%c0_56, %c0_57] : memref<8x128xf32, #tpu.memory_space<vmem>>, vector<8x128xf32>
    tpu.vector_store %arg9[%c0_56, %c0_57], %200 {strides = array<i32>} : memref<8x128xf32, #tpu.memory_space<vmem>>, vector<8x128xf32>,
    %c0_58 = arith.constant 0 : index
    %c0_59 = arith.constant 0 : index
    %203 = vector.load %arg11[%c0_58, %c0_59] : memref<48x128xf32, #tpu.memory_space<vmem>>, vector<48x128xf32>
    %204 = arith.truncf %203 : vector<48x128xf32> to vector<48x128xbf16>
    %c0_60 = arith.constant 0 : index
    %c0_61 = arith.constant 0 : index
    %205 = vector.load %arg6[%c0_60, %c0_61] : memref<128x128xbf16, #tpu.memory_space<vmem>>, vector<128x128xbf16>
    %cst_62 = arith.constant dense<0.000000e+00> : vector<48x128xf32>
    %206 = tpu.matmul %204, %205, %cst_62 {dimension_numbers = #tpu.dot_dimension_numbers<[1], [0], [0], [1], [0, 0, 1, 1], [], []>} : vector<48x128xbf16>, vector<128x128xbf16>, vector<48x128xf32> -> vector<48x128xf32>
    %c0_63 = arith.constant 0 : index
    %c0_64 = arith.constant 0 : index
    %207 = vector.load %arg7[%c0_63, %c0_64] : memref<1x128xf32, #tpu.memory_space<vmem>>, vector<1x128xf32>
    %208 = vector.broadcast %207 : vector<1x128xf32> to vector<48x128xf32>
    %209 = arith.addf %206, %208 : vector<48x128xf32>
    %210 = math.tanh %209 : vector<48x128xf32>
    %c0_65 = arith.constant 0 : index
    %c0_66 = arith.constant 0 : index
    %211 = vector.load %arg8[%c0_65, %c0_66] : memref<48x128xf32, #tpu.memory_space<vmem>>, vector<48x128xf32>
    tpu.vector_store %arg8[%c0_65, %c0_66], %210 {strides = array<i32>} : memref<48x128xf32, #tpu.memory_space<vmem>>, vector<48x128xf32>,
    return
  }
}

module attributes {stable_mosaic.version = 11 : i64} {
  func.func @_gru_head_kernel(%arg0: memref<40x128xbf16, #tpu.memory_space<vmem>>, %arg1: memref<128x384xbf16, #tpu.memory_space<vmem>>, %arg2: memref<128x384xbf16, #tpu.memory_space<vmem>>, %arg3: memref<1x384xf32, #tpu.memory_space<vmem>>, %arg4: memref<1x128xf32, #tpu.memory_space<vmem>>, %arg5: memref<8x128xf32, #tpu.memory_space<vmem>>, %arg6: memref<128x128xbf16, #tpu.memory_space<vmem>>, %arg7: memref<1x128xf32, #tpu.memory_space<vmem>>, %arg8: memref<40x128xf32, #tpu.memory_space<vmem>>, %arg9: memref<8x128xf32, #tpu.memory_space<vmem>>, %arg10: memref<40x384xf32, #tpu.memory_space<vmem>>, %arg11: memref<40x128xf32, #tpu.memory_space<vmem>>) attributes {dimension_semantics = [], scalar_prefetch = 0 : i64, scratch_operands = 2 : i64, tpu.core_type = #tpu.core_type<tc>} {
    %c0 = arith.constant 0 : index
    %c0_0 = arith.constant 0 : index
    %0 = vector.load %arg0[%c0, %c0_0] : memref<40x128xbf16, #tpu.memory_space<vmem>>, vector<40x128xbf16>
    %c0_1 = arith.constant 0 : index
    %c0_2 = arith.constant 0 : index
    %1 = vector.load %arg1[%c0_1, %c0_2] : memref<128x384xbf16, #tpu.memory_space<vmem>>, vector<128x384xbf16>
    %cst = arith.constant dense<0.000000e+00> : vector<40x384xf32>
    %2 = tpu.matmul %0, %1, %cst {dimension_numbers = #tpu.dot_dimension_numbers<[1], [0], [0], [1], [0, 0, 1, 1], [], []>} : vector<40x128xbf16>, vector<128x384xbf16>, vector<40x384xf32> -> vector<40x384xf32>
    %c0_3 = arith.constant 0 : index
    %c0_4 = arith.constant 0 : index
    %3 = vector.load %arg3[%c0_3, %c0_4] : memref<1x384xf32, #tpu.memory_space<vmem>>, vector<1x384xf32>
    %4 = vector.broadcast %3 : vector<1x384xf32> to vector<40x384xf32>
    %5 = arith.addf %2, %4 : vector<40x384xf32>
    %c0_5 = arith.constant 0 : index
    %c0_6 = arith.constant 0 : index
    %6 = vector.load %arg10[%c0_5, %c0_6] : memref<40x384xf32, #tpu.memory_space<vmem>>, vector<40x384xf32>
    tpu.vector_store %arg10[%c0_5, %c0_6], %5 {strides = array<i32>} : memref<40x384xf32, #tpu.memory_space<vmem>>, vector<40x384xf32>,
    %c0_7 = arith.constant 0 : index
    %c0_8 = arith.constant 0 : index
    %7 = vector.load %arg2[%c0_7, %c0_8] : memref<128x384xbf16, #tpu.memory_space<vmem>>, vector<128x384xbf16>
    %c0_9 = arith.constant 0 : index
    %c0_10 = arith.constant 0 : index
    %8 = vector.load %arg4[%c0_9, %c0_10] : memref<1x128xf32, #tpu.memory_space<vmem>>, vector<1x128xf32>
    %c0_11 = arith.constant 0 : index
    %c0_12 = arith.constant 0 : index
    %9 = vector.load %arg5[%c0_11, %c0_12] : memref<8x128xf32, #tpu.memory_space<vmem>>, vector<8x128xf32>
    %c0_13 = arith.constant 0 : index
    %c0_14 = arith.constant 0 : index
    %10 = vector.load %arg10[%c0_13, %c0_14] : memref<40x384xf32, #tpu.memory_space<vmem>>, vector<8x384xf32>
    %11 = arith.truncf %9 : vector<8x128xf32> to vector<8x128xbf16>
    %cst_15 = arith.constant dense<0.000000e+00> : vector<8x384xf32>
    %12 = tpu.matmul %11, %7, %cst_15 {dimension_numbers = #tpu.dot_dimension_numbers<[1], [0], [0], [1], [0, 0, 1, 1], [], []>} : vector<8x128xbf16>, vector<128x384xbf16>, vector<8x384xf32> -> vector<8x384xf32>
    %13 = vector.extract_strided_slice %10 {offsets = [0, 0], sizes = [8, 128], strides = [1, 1]} : vector<8x384xf32> to vector<8x128xf32>
    %14 = vector.extract_strided_slice %12 {offsets = [0, 0], sizes = [8, 128], strides = [1, 1]} : vector<8x384xf32> to vector<8x128xf32>
    %15 = arith.addf %13, %14 : vector<8x128xf32>
    %16 = arith.negf %15 : vector<8x128xf32>
    %17 = math.exp %16 : vector<8x128xf32>
    %cst_16 = arith.constant 1.000000e+00 : f32
    %18 = vector.broadcast %cst_16 : f32 to vector<8x128xf32>
    %19 = arith.addf %18, %17 : vector<8x128xf32>
    %20 = arith.divf %18, %19 : vector<8x128xf32>
    %21 = vector.extract_strided_slice %10 {offsets = [0, 128], sizes = [8, 128], strides = [1, 1]} : vector<8x384xf32> to vector<8x128xf32>
    %22 = vector.extract_strided_slice %12 {offsets = [0, 128], sizes = [8, 128], strides = [1, 1]} : vector<8x384xf32> to vector<8x128xf32>
    %23 = arith.addf %21, %22 : vector<8x128xf32>
    %24 = arith.negf %23 : vector<8x128xf32>
    %25 = math.exp %24 : vector<8x128xf32>
    %cst_17 = arith.constant 1.000000e+00 : f32
    %26 = vector.broadcast %cst_17 : f32 to vector<8x128xf32>
    %27 = arith.addf %26, %25 : vector<8x128xf32>
    %28 = arith.divf %26, %27 : vector<8x128xf32>
    %29 = vector.extract_strided_slice %10 {offsets = [0, 256], sizes = [8, 128], strides = [1, 1]} : vector<8x384xf32> to vector<8x128xf32>
    %30 = vector.extract_strided_slice %12 {offsets = [0, 256], sizes = [8, 128], strides = [1, 1]} : vector<8x384xf32> to vector<8x128xf32>
    %31 = vector.broadcast %8 : vector<1x128xf32> to vector<8x128xf32>
    %32 = arith.addf %30, %31 : vector<8x128xf32>
    %33 = arith.mulf %20, %32 : vector<8x128xf32>
    %34 = arith.addf %29, %33 : vector<8x128xf32>
    %35 = math.tanh %34 : vector<8x128xf32>
    %cst_18 = arith.constant 1.000000e+00 : f32
    %36 = vector.broadcast %cst_18 : f32 to vector<8x128xf32>
    %37 = arith.subf %36, %28 : vector<8x128xf32>
    %38 = arith.mulf %37, %35 : vector<8x128xf32>
    %39 = arith.mulf %28, %9 : vector<8x128xf32>
    %40 = arith.addf %38, %39 : vector<8x128xf32>
    %c0_19 = arith.constant 0 : index
    %c0_20 = arith.constant 0 : index
    %41 = vector.load %arg11[%c0_19, %c0_20] : memref<40x128xf32, #tpu.memory_space<vmem>>, vector<8x128xf32>
    tpu.vector_store %arg11[%c0_19, %c0_20], %40 {strides = array<i32>} : memref<40x128xf32, #tpu.memory_space<vmem>>, vector<8x128xf32>,
    %c8 = arith.constant 8 : index
    %c0_21 = arith.constant 0 : index
    %42 = vector.load %arg10[%c8, %c0_21] : memref<40x384xf32, #tpu.memory_space<vmem>>, vector<8x384xf32>
    %43 = arith.truncf %40 : vector<8x128xf32> to vector<8x128xbf16>
    %cst_22 = arith.constant dense<0.000000e+00> : vector<8x384xf32>
    %44 = tpu.matmul %43, %7, %cst_22 {dimension_numbers = #tpu.dot_dimension_numbers<[1], [0], [0], [1], [0, 0, 1, 1], [], []>} : vector<8x128xbf16>, vector<128x384xbf16>, vector<8x384xf32> -> vector<8x384xf32>
    %45 = vector.extract_strided_slice %42 {offsets = [0, 0], sizes = [8, 128], strides = [1, 1]} : vector<8x384xf32> to vector<8x128xf32>
    %46 = vector.extract_strided_slice %44 {offsets = [0, 0], sizes = [8, 128], strides = [1, 1]} : vector<8x384xf32> to vector<8x128xf32>
    %47 = arith.addf %45, %46 : vector<8x128xf32>
    %48 = arith.negf %47 : vector<8x128xf32>
    %49 = math.exp %48 : vector<8x128xf32>
    %cst_23 = arith.constant 1.000000e+00 : f32
    %50 = vector.broadcast %cst_23 : f32 to vector<8x128xf32>
    %51 = arith.addf %50, %49 : vector<8x128xf32>
    %52 = arith.divf %50, %51 : vector<8x128xf32>
    %53 = vector.extract_strided_slice %42 {offsets = [0, 128], sizes = [8, 128], strides = [1, 1]} : vector<8x384xf32> to vector<8x128xf32>
    %54 = vector.extract_strided_slice %44 {offsets = [0, 128], sizes = [8, 128], strides = [1, 1]} : vector<8x384xf32> to vector<8x128xf32>
    %55 = arith.addf %53, %54 : vector<8x128xf32>
    %56 = arith.negf %55 : vector<8x128xf32>
    %57 = math.exp %56 : vector<8x128xf32>
    %cst_24 = arith.constant 1.000000e+00 : f32
    %58 = vector.broadcast %cst_24 : f32 to vector<8x128xf32>
    %59 = arith.addf %58, %57 : vector<8x128xf32>
    %60 = arith.divf %58, %59 : vector<8x128xf32>
    %61 = vector.extract_strided_slice %42 {offsets = [0, 256], sizes = [8, 128], strides = [1, 1]} : vector<8x384xf32> to vector<8x128xf32>
    %62 = vector.extract_strided_slice %44 {offsets = [0, 256], sizes = [8, 128], strides = [1, 1]} : vector<8x384xf32> to vector<8x128xf32>
    %63 = vector.broadcast %8 : vector<1x128xf32> to vector<8x128xf32>
    %64 = arith.addf %62, %63 : vector<8x128xf32>
    %65 = arith.mulf %52, %64 : vector<8x128xf32>
    %66 = arith.addf %61, %65 : vector<8x128xf32>
    %67 = math.tanh %66 : vector<8x128xf32>
    %cst_25 = arith.constant 1.000000e+00 : f32
    %68 = vector.broadcast %cst_25 : f32 to vector<8x128xf32>
    %69 = arith.subf %68, %60 : vector<8x128xf32>
    %70 = arith.mulf %69, %67 : vector<8x128xf32>
    %71 = arith.mulf %60, %40 : vector<8x128xf32>
    %72 = arith.addf %70, %71 : vector<8x128xf32>
    %c8_26 = arith.constant 8 : index
    %c0_27 = arith.constant 0 : index
    %73 = vector.load %arg11[%c8_26, %c0_27] : memref<40x128xf32, #tpu.memory_space<vmem>>, vector<8x128xf32>
    tpu.vector_store %arg11[%c8_26, %c0_27], %72 {strides = array<i32>} : memref<40x128xf32, #tpu.memory_space<vmem>>, vector<8x128xf32>,
    %c16 = arith.constant 16 : index
    %c0_28 = arith.constant 0 : index
    %74 = vector.load %arg10[%c16, %c0_28] : memref<40x384xf32, #tpu.memory_space<vmem>>, vector<8x384xf32>
    %75 = arith.truncf %72 : vector<8x128xf32> to vector<8x128xbf16>
    %cst_29 = arith.constant dense<0.000000e+00> : vector<8x384xf32>
    %76 = tpu.matmul %75, %7, %cst_29 {dimension_numbers = #tpu.dot_dimension_numbers<[1], [0], [0], [1], [0, 0, 1, 1], [], []>} : vector<8x128xbf16>, vector<128x384xbf16>, vector<8x384xf32> -> vector<8x384xf32>
    %77 = vector.extract_strided_slice %74 {offsets = [0, 0], sizes = [8, 128], strides = [1, 1]} : vector<8x384xf32> to vector<8x128xf32>
    %78 = vector.extract_strided_slice %76 {offsets = [0, 0], sizes = [8, 128], strides = [1, 1]} : vector<8x384xf32> to vector<8x128xf32>
    %79 = arith.addf %77, %78 : vector<8x128xf32>
    %80 = arith.negf %79 : vector<8x128xf32>
    %81 = math.exp %80 : vector<8x128xf32>
    %cst_30 = arith.constant 1.000000e+00 : f32
    %82 = vector.broadcast %cst_30 : f32 to vector<8x128xf32>
    %83 = arith.addf %82, %81 : vector<8x128xf32>
    %84 = arith.divf %82, %83 : vector<8x128xf32>
    %85 = vector.extract_strided_slice %74 {offsets = [0, 128], sizes = [8, 128], strides = [1, 1]} : vector<8x384xf32> to vector<8x128xf32>
    %86 = vector.extract_strided_slice %76 {offsets = [0, 128], sizes = [8, 128], strides = [1, 1]} : vector<8x384xf32> to vector<8x128xf32>
    %87 = arith.addf %85, %86 : vector<8x128xf32>
    %88 = arith.negf %87 : vector<8x128xf32>
    %89 = math.exp %88 : vector<8x128xf32>
    %cst_31 = arith.constant 1.000000e+00 : f32
    %90 = vector.broadcast %cst_31 : f32 to vector<8x128xf32>
    %91 = arith.addf %90, %89 : vector<8x128xf32>
    %92 = arith.divf %90, %91 : vector<8x128xf32>
    %93 = vector.extract_strided_slice %74 {offsets = [0, 256], sizes = [8, 128], strides = [1, 1]} : vector<8x384xf32> to vector<8x128xf32>
    %94 = vector.extract_strided_slice %76 {offsets = [0, 256], sizes = [8, 128], strides = [1, 1]} : vector<8x384xf32> to vector<8x128xf32>
    %95 = vector.broadcast %8 : vector<1x128xf32> to vector<8x128xf32>
    %96 = arith.addf %94, %95 : vector<8x128xf32>
    %97 = arith.mulf %84, %96 : vector<8x128xf32>
    %98 = arith.addf %93, %97 : vector<8x128xf32>
    %99 = math.tanh %98 : vector<8x128xf32>
    %cst_32 = arith.constant 1.000000e+00 : f32
    %100 = vector.broadcast %cst_32 : f32 to vector<8x128xf32>
    %101 = arith.subf %100, %92 : vector<8x128xf32>
    %102 = arith.mulf %101, %99 : vector<8x128xf32>
    %103 = arith.mulf %92, %72 : vector<8x128xf32>
    %104 = arith.addf %102, %103 : vector<8x128xf32>
    %c16_33 = arith.constant 16 : index
    %c0_34 = arith.constant 0 : index
    %105 = vector.load %arg11[%c16_33, %c0_34] : memref<40x128xf32, #tpu.memory_space<vmem>>, vector<8x128xf32>
    tpu.vector_store %arg11[%c16_33, %c0_34], %104 {strides = array<i32>} : memref<40x128xf32, #tpu.memory_space<vmem>>, vector<8x128xf32>,
    %c24 = arith.constant 24 : index
    %c0_35 = arith.constant 0 : index
    %106 = vector.load %arg10[%c24, %c0_35] : memref<40x384xf32, #tpu.memory_space<vmem>>, vector<8x384xf32>
    %107 = arith.truncf %104 : vector<8x128xf32> to vector<8x128xbf16>
    %cst_36 = arith.constant dense<0.000000e+00> : vector<8x384xf32>
    %108 = tpu.matmul %107, %7, %cst_36 {dimension_numbers = #tpu.dot_dimension_numbers<[1], [0], [0], [1], [0, 0, 1, 1], [], []>} : vector<8x128xbf16>, vector<128x384xbf16>, vector<8x384xf32> -> vector<8x384xf32>
    %109 = vector.extract_strided_slice %106 {offsets = [0, 0], sizes = [8, 128], strides = [1, 1]} : vector<8x384xf32> to vector<8x128xf32>
    %110 = vector.extract_strided_slice %108 {offsets = [0, 0], sizes = [8, 128], strides = [1, 1]} : vector<8x384xf32> to vector<8x128xf32>
    %111 = arith.addf %109, %110 : vector<8x128xf32>
    %112 = arith.negf %111 : vector<8x128xf32>
    %113 = math.exp %112 : vector<8x128xf32>
    %cst_37 = arith.constant 1.000000e+00 : f32
    %114 = vector.broadcast %cst_37 : f32 to vector<8x128xf32>
    %115 = arith.addf %114, %113 : vector<8x128xf32>
    %116 = arith.divf %114, %115 : vector<8x128xf32>
    %117 = vector.extract_strided_slice %106 {offsets = [0, 128], sizes = [8, 128], strides = [1, 1]} : vector<8x384xf32> to vector<8x128xf32>
    %118 = vector.extract_strided_slice %108 {offsets = [0, 128], sizes = [8, 128], strides = [1, 1]} : vector<8x384xf32> to vector<8x128xf32>
    %119 = arith.addf %117, %118 : vector<8x128xf32>
    %120 = arith.negf %119 : vector<8x128xf32>
    %121 = math.exp %120 : vector<8x128xf32>
    %cst_38 = arith.constant 1.000000e+00 : f32
    %122 = vector.broadcast %cst_38 : f32 to vector<8x128xf32>
    %123 = arith.addf %122, %121 : vector<8x128xf32>
    %124 = arith.divf %122, %123 : vector<8x128xf32>
    %125 = vector.extract_strided_slice %106 {offsets = [0, 256], sizes = [8, 128], strides = [1, 1]} : vector<8x384xf32> to vector<8x128xf32>
    %126 = vector.extract_strided_slice %108 {offsets = [0, 256], sizes = [8, 128], strides = [1, 1]} : vector<8x384xf32> to vector<8x128xf32>
    %127 = vector.broadcast %8 : vector<1x128xf32> to vector<8x128xf32>
    %128 = arith.addf %126, %127 : vector<8x128xf32>
    %129 = arith.mulf %116, %128 : vector<8x128xf32>
    %130 = arith.addf %125, %129 : vector<8x128xf32>
    %131 = math.tanh %130 : vector<8x128xf32>
    %cst_39 = arith.constant 1.000000e+00 : f32
    %132 = vector.broadcast %cst_39 : f32 to vector<8x128xf32>
    %133 = arith.subf %132, %124 : vector<8x128xf32>
    %134 = arith.mulf %133, %131 : vector<8x128xf32>
    %135 = arith.mulf %124, %104 : vector<8x128xf32>
    %136 = arith.addf %134, %135 : vector<8x128xf32>
    %c24_40 = arith.constant 24 : index
    %c0_41 = arith.constant 0 : index
    %137 = vector.load %arg11[%c24_40, %c0_41] : memref<40x128xf32, #tpu.memory_space<vmem>>, vector<8x128xf32>
    tpu.vector_store %arg11[%c24_40, %c0_41], %136 {strides = array<i32>} : memref<40x128xf32, #tpu.memory_space<vmem>>, vector<8x128xf32>,
    %c32 = arith.constant 32 : index
    %c0_42 = arith.constant 0 : index
    %138 = vector.load %arg10[%c32, %c0_42] : memref<40x384xf32, #tpu.memory_space<vmem>>, vector<8x384xf32>
    %139 = arith.truncf %136 : vector<8x128xf32> to vector<8x128xbf16>
    %cst_43 = arith.constant dense<0.000000e+00> : vector<8x384xf32>
    %140 = tpu.matmul %139, %7, %cst_43 {dimension_numbers = #tpu.dot_dimension_numbers<[1], [0], [0], [1], [0, 0, 1, 1], [], []>} : vector<8x128xbf16>, vector<128x384xbf16>, vector<8x384xf32> -> vector<8x384xf32>
    %141 = vector.extract_strided_slice %138 {offsets = [0, 0], sizes = [8, 128], strides = [1, 1]} : vector<8x384xf32> to vector<8x128xf32>
    %142 = vector.extract_strided_slice %140 {offsets = [0, 0], sizes = [8, 128], strides = [1, 1]} : vector<8x384xf32> to vector<8x128xf32>
    %143 = arith.addf %141, %142 : vector<8x128xf32>
    %144 = arith.negf %143 : vector<8x128xf32>
    %145 = math.exp %144 : vector<8x128xf32>
    %cst_44 = arith.constant 1.000000e+00 : f32
    %146 = vector.broadcast %cst_44 : f32 to vector<8x128xf32>
    %147 = arith.addf %146, %145 : vector<8x128xf32>
    %148 = arith.divf %146, %147 : vector<8x128xf32>
    %149 = vector.extract_strided_slice %138 {offsets = [0, 128], sizes = [8, 128], strides = [1, 1]} : vector<8x384xf32> to vector<8x128xf32>
    %150 = vector.extract_strided_slice %140 {offsets = [0, 128], sizes = [8, 128], strides = [1, 1]} : vector<8x384xf32> to vector<8x128xf32>
    %151 = arith.addf %149, %150 : vector<8x128xf32>
    %152 = arith.negf %151 : vector<8x128xf32>
    %153 = math.exp %152 : vector<8x128xf32>
    %cst_45 = arith.constant 1.000000e+00 : f32
    %154 = vector.broadcast %cst_45 : f32 to vector<8x128xf32>
    %155 = arith.addf %154, %153 : vector<8x128xf32>
    %156 = arith.divf %154, %155 : vector<8x128xf32>
    %157 = vector.extract_strided_slice %138 {offsets = [0, 256], sizes = [8, 128], strides = [1, 1]} : vector<8x384xf32> to vector<8x128xf32>
    %158 = vector.extract_strided_slice %140 {offsets = [0, 256], sizes = [8, 128], strides = [1, 1]} : vector<8x384xf32> to vector<8x128xf32>
    %159 = vector.broadcast %8 : vector<1x128xf32> to vector<8x128xf32>
    %160 = arith.addf %158, %159 : vector<8x128xf32>
    %161 = arith.mulf %148, %160 : vector<8x128xf32>
    %162 = arith.addf %157, %161 : vector<8x128xf32>
    %163 = math.tanh %162 : vector<8x128xf32>
    %cst_46 = arith.constant 1.000000e+00 : f32
    %164 = vector.broadcast %cst_46 : f32 to vector<8x128xf32>
    %165 = arith.subf %164, %156 : vector<8x128xf32>
    %166 = arith.mulf %165, %163 : vector<8x128xf32>
    %167 = arith.mulf %156, %136 : vector<8x128xf32>
    %168 = arith.addf %166, %167 : vector<8x128xf32>
    %c32_47 = arith.constant 32 : index
    %c0_48 = arith.constant 0 : index
    %169 = vector.load %arg11[%c32_47, %c0_48] : memref<40x128xf32, #tpu.memory_space<vmem>>, vector<8x128xf32>
    tpu.vector_store %arg11[%c32_47, %c0_48], %168 {strides = array<i32>} : memref<40x128xf32, #tpu.memory_space<vmem>>, vector<8x128xf32>,
    %c0_49 = arith.constant 0 : index
    %c0_50 = arith.constant 0 : index
    %170 = vector.load %arg9[%c0_49, %c0_50] : memref<8x128xf32, #tpu.memory_space<vmem>>, vector<8x128xf32>
    tpu.vector_store %arg9[%c0_49, %c0_50], %168 {strides = array<i32>} : memref<8x128xf32, #tpu.memory_space<vmem>>, vector<8x128xf32>,
    %c0_51 = arith.constant 0 : index
    %c0_52 = arith.constant 0 : index
    %171 = vector.load %arg11[%c0_51, %c0_52] : memref<40x128xf32, #tpu.memory_space<vmem>>, vector<40x128xf32>
    %172 = arith.truncf %171 : vector<40x128xf32> to vector<40x128xbf16>
    %c0_53 = arith.constant 0 : index
    %c0_54 = arith.constant 0 : index
    %173 = vector.load %arg6[%c0_53, %c0_54] : memref<128x128xbf16, #tpu.memory_space<vmem>>, vector<128x128xbf16>
    %cst_55 = arith.constant dense<0.000000e+00> : vector<40x128xf32>
    %174 = tpu.matmul %172, %173, %cst_55 {dimension_numbers = #tpu.dot_dimension_numbers<[1], [0], [0], [1], [0, 0, 1, 1], [], []>} : vector<40x128xbf16>, vector<128x128xbf16>, vector<40x128xf32> -> vector<40x128xf32>
    %c0_56 = arith.constant 0 : index
    %c0_57 = arith.constant 0 : index
    %175 = vector.load %arg7[%c0_56, %c0_57] : memref<1x128xf32, #tpu.memory_space<vmem>>, vector<1x128xf32>
    %176 = vector.broadcast %175 : vector<1x128xf32> to vector<40x128xf32>
    %177 = arith.addf %174, %176 : vector<40x128xf32>
    %178 = arith.negf %177 : vector<40x128xf32>
    %179 = math.exp %178 : vector<40x128xf32>
    %cst_58 = arith.constant 1.000000e+00 : f32
    %180 = vector.broadcast %cst_58 : f32 to vector<40x128xf32>
    %181 = arith.addf %180, %179 : vector<40x128xf32>
    %182 = arith.divf %180, %181 : vector<40x128xf32>
    %c0_59 = arith.constant 0 : index
    %c0_60 = arith.constant 0 : index
    %183 = vector.load %arg8[%c0_59, %c0_60] : memref<40x128xf32, #tpu.memory_space<vmem>>, vector<40x128xf32>
    tpu.vector_store %arg8[%c0_59, %c0_60], %182 {strides = array<i32>} : memref<40x128xf32, #tpu.memory_space<vmem>>, vector<40x128xf32>,
    return
  }
}

</mosaic_0001>

<llo_original>
// kernel: seq2seq_forward.4
$region0: #{seq2seq_forward.4}
  #allocation0 [shape = 'u32[]', space=smem, size = 0x4, offset = 0x4, fixed_abs, tag = 'smem constant byte address 0x4 - core index']
  #allocation1 [shape = 'u32[144,128]{1,0:T(1,128)}', space=vmem, size = 0x12000, scoped, tag = 'internal scratch']
  #allocation2 [shape = 'f32[48,384]{1,0:T(8,128)}', space=vmem, size = 0x12000, scoped, tag = 'scratch operand']
  #allocation3 [shape = 'f32[48,128]{1,0:T(8,128)}', space=vmem, size = 0x6000, scoped, tag = 'scratch operand']
  %s0 = inlined_call_operand.vmem [shape: bf16[48,128], index: 0, kind: input, shape index: {}]
  %s1 = inlined_call_operand.vmem [shape: bf16[128,384], index: 1, kind: input, shape index: {}]
  %s2 = inlined_call_operand.vmem [shape: bf16[128,384], index: 2, kind: input, shape index: {}]
  %s3 = inlined_call_operand.vmem [shape: f32[1,384], index: 3, kind: input, shape index: {}]
  %s4 = inlined_call_operand.vmem [shape: f32[1,128], index: 4, kind: input, shape index: {}]
  %s5 = inlined_call_operand.vmem [shape: f32[8,128], index: 5, kind: input, shape index: {}]
  %s6 = inlined_call_operand.vmem [shape: bf16[128,128], index: 6, kind: input, shape index: {}]
  %s7 = inlined_call_operand.vmem [shape: f32[1,128], index: 7, kind: input, shape index: {}]
  %s8 = inlined_call_operand.vmem [shape: f32[48,128], index: 8, kind: output, shape index: {0}]
  %s9 = inlined_call_operand.hbm [shape: f32[8,128], index: 9, kind: output, shape index: {1}]
  %10 = xla_tuple %s8, %s9
  %s11 = sld [smem:[#allocation0]]
  $region50: #{seq2seq_forward.4} parent=0
    _
  %s13 = ssub.s32 1, %s11
  %s14 = scalar_select 0, %s13, %s11
  $region1: #{seq2seq_forward.4} parent=0
    #allocation4 [shape = 'u8[4096]{0}', space=vmem, size = 0x1000, scoped, tag = 'output window, operand 1, single buffered']
    #allocation5 [shape = 's32[1]{0}', space=sflag, size = 0x4, scoped, tag = 'scoped memory for seq2seq_forward.4']
    %15 = vsyncpa [#allocation5], 0
    // Predicated region
    $region2: #{seq2seq_forward.4} parent=1 // pred_check
      _
    $region3: #{seq2seq_forward.4} parent=1 // pred_check_branch
      %17 = sbr.rel (0) target = $region5
    $region4: #{seq2seq_forward.4} parent=1 // pred_region
      _
    $region5: #{seq2seq_forward.4} parent=1 // pred_fallthru
      _
    // Predicated region
    $region6: #{seq2seq_forward.4} parent=1 // pred_check
      _
    $region7: #{seq2seq_forward.4} parent=1 // pred_check_branch
      %19 = sbr.rel (0) target = $region9
    $region8: #{seq2seq_forward.4} parent=1 // pred_region
      _
    $region9: #{seq2seq_forward.4} parent=1 // pred_fallthru
      _
    // Predicated region
    $region10: #{seq2seq_forward.4} parent=1 // pred_check
      _
    $region11: #{seq2seq_forward.4} parent=1 // pred_check_branch
      %21 = sbr.rel (0) target = $region13
    $region12: #{seq2seq_forward.4} parent=1 // pred_region
      _
    $region13: #{seq2seq_forward.4} parent=1 // pred_fallthru
      _
    // Predicated region
    $region14: #{seq2seq_forward.4} parent=1 // pred_check
      _
    $region15: #{seq2seq_forward.4} parent=1 // pred_check_branch
      %23 = sbr.rel (0) target = $region17
    $region16: #{seq2seq_forward.4} parent=1 // pred_region
      _
    $region17: #{seq2seq_forward.4} parent=1 // pred_fallthru
      _
    // Predicated region
    $region18: #{seq2seq_forward.4} parent=1 // pred_check
      _
    $region19: #{seq2seq_forward.4} parent=1 // pred_check_branch
      %25 = sbr.rel (0) target = $region21
    $region20: #{seq2seq_forward.4} parent=1 // pred_region
      _
    $region21: #{seq2seq_forward.4} parent=1 // pred_fallthru
      _
    // Predicated region
    $region22: #{seq2seq_forward.4} parent=1 // pred_check
      _
    $region23: #{seq2seq_forward.4} parent=1 // pred_check_branch
      %27 = sbr.rel (0) target = $region25
    $region24: #{seq2seq_forward.4} parent=1 // pred_region
      _
    $region25: #{seq2seq_forward.4} parent=1 // pred_fallthru
      _
    // Predicated region
    $region26: #{seq2seq_forward.4} parent=1 // pred_check
      _
    $region27: #{seq2seq_forward.4} parent=1 // pred_check_branch
      %29 = sbr.rel (0) target = $region29
    $region28: #{seq2seq_forward.4} parent=1 // pred_region
      _
    $region29: #{seq2seq_forward.4} parent=1 // pred_fallthru
      _
    // Predicated region
    $region30: #{seq2seq_forward.4} parent=1 // pred_check
      _
    $region31: #{seq2seq_forward.4} parent=1 // pred_check_branch
      %31 = sbr.rel (0) target = $region33
    $region32: #{seq2seq_forward.4} parent=1 // pred_region
      _
    $region33: #{seq2seq_forward.4} parent=1 // pred_fallthru
      _
    %v33 = vld [vmem:[%s0] sm:$0xf]
    %v34 = vld [vmem:[%s0 + $0x4] sm:$0xf]
    %v35 = vld [vmem:[%s0 + $0x8] sm:$0xf]
    %v36 = vld [vmem:[%s0 + $0xc] sm:$0xf]
    %v37 = vld [vmem:[%s0 + $0x10] sm:$0xf]
    %v38 = vld [vmem:[%s0 + $0x14] sm:$0xf]
    %v39 = vld [vmem:[%s1] sm:$0xff]
    %v40 = vld [vmem:[%s1 + $0x8] sm:$0xf]
    %v41 = vld [vmem:[%s1 + $0xc] sm:$0xff]
    %v42 = vld [vmem:[%s1 + $0x14] sm:$0xf]
    %v43 = vld [vmem:[%s1 + $0x18] sm:$0xff]
    %v44 = vld [vmem:[%s1 + $0x20] sm:$0xf]
    %v45 = vld [vmem:[%s1 + $0x24] sm:$0xff]
    %v46 = vld [vmem:[%s1 + $0x2c] sm:$0xf]
    %v47 = vld [vmem:[%s1 + $0x30] sm:$0xff]
    %v48 = vld [vmem:[%s1 + $0x38] sm:$0xf]
    %v49 = vld [vmem:[%s1 + $0x3c] sm:$0xff]
    %v50 = vld [vmem:[%s1 + $0x44] sm:$0xf]
    %v51 = vld [vmem:[%s1 + $0x48] sm:$0xff]
    %v52 = vld [vmem:[%s1 + $0x50] sm:$0xf]
    %v53 = vld [vmem:[%s1 + $0x54] sm:$0xff]
    %v54 = vld [vmem:[%s1 + $0x5c] sm:$0xf]
    %v55 = vld [vmem:[%s1 + $0x60] sm:$0xff]
    %v56 = vld [vmem:[%s1 + $0x68] sm:$0xf]
    %v57 = vld [vmem:[%s1 + $0x6c] sm:$0xff]
    %v58 = vld [vmem:[%s1 + $0x74] sm:$0xf]
    %v59 = vld [vmem:[%s1 + $0x78] sm:$0xff]
    %v60 = vld [vmem:[%s1 + $0x80] sm:$0xf]
    %v61 = vld [vmem:[%s1 + $0x84] sm:$0xff]
    %v62 = vld [vmem:[%s1 + $0x8c] sm:$0xf]
    %v63 = vld [vmem:[%s1 + $0x90] sm:$0xff]
    %v64 = vld [vmem:[%s1 + $0x98] sm:$0xf]
    %v65 = vld [vmem:[%s1 + $0x9c] sm:$0xff]
    %v66 = vld [vmem:[%s1 + $0xa4] sm:$0xf]
    %v67 = vld [vmem:[%s1 + $0xa8] sm:$0xff]
    %v68 = vld [vmem:[%s1 + $0xb0] sm:$0xf]
    %v69 = vld [vmem:[%s1 + $0xb4] sm:$0xff]
    %v70 = vld [vmem:[%s1 + $0xbc] sm:$0xf]
    %v71 = vld [vmem:[%s3] sm:$0x7]
    %v73 = vlaneseq
    %v74 = vshrl.u32 %v73, 7
    %v75 = vsub.s32 0, %v74
    %v76 = vrot.slane %v71, %v75
    %v77 = vlaneseq
    %v78 = vshrl.u32 %v77, 7
    %v79 = vsub.s32 1, %v78
    %v80 = vrot.slane %v71, %v79
    %v81 = vlaneseq
    %v82 = vshrl.u32 %v81, 7
    %v83 = vsub.s32 2, %v82
    %v84 = vrot.slane %v71, %v83
    %v94 = vunpack.c.l.b16 %v33
    %v95 = vunpack.c.l.b16 %v34
    %v96 = vunpack.c.l.b16 %v35
    %v97 = vunpack.c.l.b16 %v36
    %v98 = vunpack.c.l.b16 %v37
    %v99 = vunpack.c.l.b16 %v38
    %v100 = vpack.c.b16 %v95, %v94
    %v101 = vpack.c.b16 %v97, %v96
    %v102 = vpack.c.b16 %v99, %v98
    %v138 = vunpack.c.l.b16 %v39
    %v139 = vunpack.c.h.b16 %v39
    %v140 = vunpack.c.l.b16 %v40
    %v141 = vunpack.c.l.b16 %v41
    %v142 = vunpack.c.h.b16 %v41
    %v143 = vunpack.c.l.b16 %v42
    %v144 = vunpack.c.l.b16 %v43
    %v145 = vunpack.c.h.b16 %v43
    %v146 = vunpack.c.l.b16 %v44
    %v147 = vunpack.c.l.b16 %v45
    %v148 = vunpack.c.h.b16 %v45
    %v149 = vunpack.c.l.b16 %v46
    %v150 = vunpack.c.l.b16 %v47
    %v151 = vunpack.c.h.b16 %v47
    %v152 = vunpack.c.l.b16 %v48
    %v153 = vunpack.c.l.b16 %v49
    %v154 = vunpack.c.h.b16 %v49
    %v155 = vunpack.c.l.b16 %v50
    %v156 = vunpack.c.l.b16 %v51
    %v157 = vunpack.c.h.b16 %v51
    %v158 = vunpack.c.l.b16 %v52
    %v159 = vunpack.c.l.b16 %v53
    %v160 = vunpack.c.h.b16 %v53
    %v161 = vunpack.c.l.b16 %v54
    %v162 = vunpack.c.l.b16 %v55
    %v163 = vunpack.c.h.b16 %v55
    %v164 = vunpack.c.l.b16 %v56
    %v165 = vunpack.c.l.b16 %v57
    %v166 = vunpack.c.h.b16 %v57
    %v167 = vunpack.c.l.b16 %v58
    %v168 = vunpack.c.l.b16 %v59
    %v169 = vunpack.c.h.b16 %v59
    %v170 = vunpack.c.l.b16 %v60
    %v171 = vunpack.c.l.b16 %v61
    %v172 = vunpack.c.h.b16 %v61
    %v173 = vunpack.c.l.b16 %v62
    %v174 = vunpack.c.l.b16 %v63
    %v175 = vunpack.c.h.b16 %v63
    %v176 = vunpack.c.l.b16 %v64
    %v177 = vunpack.c.l.b16 %v65
    %v178 = vunpack.c.h.b16 %v65
    %v179 = vunpack.c.l.b16 %v66
    %v180 = vunpack.c.l.b16 %v67
    %v181 = vunpack.c.h.b16 %v67
    %v182 = vunpack.c.l.b16 %v68
    %v183 = vunpack.c.l.b16 %v69
    %v184 = vunpack.c.h.b16 %v69
    %v185 = vunpack.c.l.b16 %v70
    %v186 = vpack.c.b16 %v141, %v138
    %v187 = vpack.c.b16 %v142, %v139
    %v188 = vpack.c.b16 %v143, %v140
    %v189 = vpack.c.b16 %v147, %v144
    %v190 = vpack.c.b16 %v148, %v145
    %v191 = vpack.c.b16 %v149, %v146
    %v192 = vpack.c.b16 %v153, %v150
    %v193 = vpack.c.b16 %v154, %v151
    %v194 = vpack.c.b16 %v155, %v152
    %v195 = vpack.c.b16 %v159, %v156
    %v196 = vpack.c.b16 %v160, %v157
    %v197 = vpack.c.b16 %v161, %v158
    %v198 = vpack.c.b16 %v165, %v162
    %v199 = vpack.c.b16 %v166, %v163
    %v200 = vpack.c.b16 %v167, %v164
    %v201 = vpack.c.b16 %v171, %v168
    %v202 = vpack.c.b16 %v172, %v169
    %v203 = vpack.c.b16 %v173, %v170
    %v204 = vpack.c.b16 %v177, %v174
    %v205 = vpack.c.b16 %v178, %v175
    %v206 = vpack.c.b16 %v179, %v176
    %v207 = vpack.c.b16 %v183, %v180
    %v208 = vpack.c.b16 %v184, %v181
    %v209 = vpack.c.b16 %v185, %v182
    %234 = vmatprep.subr.bf16.mxu0 %v208
    %235 = vmatpush1.bf16.msra.mxu0 %v207
    %236 = vmatprep.subr.bf16.mxu0 %v205
    %237 = vmatpush1.bf16.msra.mxu0 %v204
    %238 = vmatprep.subr.bf16.mxu0 %v202
    %239 = vmatpush1.bf16.msra.mxu0 %v201
    %240 = vmatprep.subr.bf16.mxu0 %v199
    %241 = vmatpush1.bf16.msra.mxu0 %v198
    %242 = vmatprep.subr.bf16.mxu0 %v196
    %243 = vmatpush1.bf16.msra.mxu0 %v195
    %244 = vmatprep.subr.bf16.mxu0 %v193
    %245 = vmatpush1.bf16.msra.mxu0 %v192
    %246 = vmatprep.subr.bf16.mxu0 %v190
    %247 = vmatpush1.bf16.msra.mxu0 %v189
    %248 = vmatprep.subr.bf16.mxu0 %v187
    %249 = vmatpush1.bf16.msra.mxu0 %v186
    %250 = vmatprep.subr.bf16.mxu0 0
    %251 = vmatpush2.bf16.msra.mxu0 0
    %252 = vmatprep.subr.bf16.mxu0 0
    %253 = vmatpush2.bf16.msra.mxu0 0
    %254 = vmatprep.subr.bf16.mxu0 0
    %255 = vmatpush2.bf16.msra.mxu0 0
    %256 = vmatprep.subr.bf16.mxu0 0
    %257 = vmatpush2.bf16.msra.mxu0 0
    %258 = vmatprep.subr.bf16.mxu0 0
    %259 = vmatpush2.bf16.msra.mxu0 0
    %260 = vmatprep.subr.bf16.mxu0 0
    %261 = vmatpush2.bf16.msra.mxu0 0
    %262 = vmatprep.subr.bf16.mxu0 0
    %263 = vmatpush2.bf16.msra.mxu0 0
    %264 = vmatprep.subr.bf16.mxu0 0
    %265 = vmatpush2.bf16.msra.mxu0 0
    %266 = vmatprep.mubr.bf16.mxu0 0
    %267 = vmatmul.mubr.bf16.gmra.mxu0 %v100
    %v268 = vpop.f32.mrf.mxu0
    %v269 = vadd.f32 %v76, %v268
    %v270 = vpop.f32.mrf.mxu0
    %v271 = vadd.f32 %v80, %v270
    %v272 = vpop.f32.mrf.mxu0
    %v273 = vadd.f32 %v76, %v272
    %v274 = vpop.f32.mrf.mxu0
    %v275 = vadd.f32 %v80, %v274
    %276 = vmatprep.mubr.bf16.mxu0 0
    %277 = vmatmul.mubr.bf16.gmra.mxu0 %v101
    %v278 = vpop.f32.mrf.mxu0
    %v279 = vadd.f32 %v76, %v278
    %v280 = vpop.f32.mrf.mxu0
    %v281 = vadd.f32 %v80, %v280
    %v282 = vpop.f32.mrf.mxu0
    %v283 = vadd.f32 %v76, %v282
    %v284 = vpop.f32.mrf.mxu0
    %v285 = vadd.f32 %v80, %v284
    %286 = vmatprep.mubr.bf16.mxu0 0
    %287 = vmatmul.mubr.bf16.gmra.mxu0 %v102
    %v288 = vpop.f32.mrf.mxu0
    %v289 = vadd.f32 %v76, %v288
    %v290 = vpop.f32.mrf.mxu0
    %v291 = vadd.f32 %v80, %v290
    %v292 = vpop.f32.mrf.mxu0
    %v293 = vadd.f32 %v76, %v292
    %v294 = vpop.f32.mrf.mxu0
    %v295 = vadd.f32 %v80, %v294
    %296 = vdwg.mxu0
    %297 = vmatprep.subr.bf16.mxu0 0
    %298 = vmatpush1.bf16.msra.mxu0 %v209
    %299 = vmatprep.subr.bf16.mxu0 0
    %300 = vmatpush1.bf16.msra.mxu0 %v206
    %301 = vmatprep.subr.bf16.mxu0 0
    %302 = vmatpush1.bf16.msra.mxu0 %v203
    %303 = vmatprep.subr.bf16.mxu0 0
    %304 = vmatpush1.bf16.msra.mxu0 %v200
    %305 = vmatprep.subr.bf16.mxu0 0
    %306 = vmatpush1.bf16.msra.mxu0 %v197
    %307 = vmatprep.subr.bf16.mxu0 0
    %308 = vmatpush1.bf16.msra.mxu0 %v194
    %309 = vmatprep.subr.bf16.mxu0 0
    %310 = vmatpush1.bf16.msra.mxu0 %v191
    %311 = vmatprep.subr.bf16.mxu0 0
    %312 = vmatpush1.bf16.msra.mxu0 %v188
    %313 = vmatprep.subr.bf16.mxu0 0
    %314 = vmatpush2.bf16.msra.mxu0 0
    %315 = vmatprep.subr.bf16.mxu0 0
    %316 = vmatpush2.bf16.msra.mxu0 0
    %317 = vmatprep.subr.bf16.mxu0 0
    %318 = vmatpush2.bf16.msra.mxu0 0
    %319 = vmatprep.subr.bf16.mxu0 0
    %320 = vmatpush2.bf16.msra.mxu0 0
    %321 = vmatprep.subr.bf16.mxu0 0
    %322 = vmatpush2.bf16.msra.mxu0 0
    %323 = vmatprep.subr.bf16.mxu0 0
    %324 = vmatpush2.bf16.msra.mxu0 0
    %325 = vmatprep.subr.bf16.mxu0 0
    %326 = vmatpush2.bf16.msra.mxu0 0
    %327 = vmatprep.subr.bf16.mxu0 0
    %328 = vmatpush2.bf16.msra.mxu0 0
    %329 = vmatprep.mubr.bf16.mxu0 0
    %330 = vmatmul.mubr.bf16.gmra.mxu0 %v100
    %v331 = vpop.f32.mrf.mxu0
    %v332 = vadd.f32 %v84, %v331
    %v333 = vpop.f32.mrf.mxu0
    %v334 = vpop.f32.mrf.mxu0
    %v335 = vadd.f32 %v84, %v334
    %v336 = vpop.f32.mrf.mxu0
    %337 = vmatprep.mubr.bf16.mxu0 0
    %338 = vmatmul.mubr.bf16.gmra.mxu0 %v101
    %v339 = vpop.f32.mrf.mxu0
    %v340 = vadd.f32 %v84, %v339
    %v341 = vpop.f32.mrf.mxu0
    %v342 = vpop.f32.mrf.mxu0
    %v343 = vadd.f32 %v84, %v342
    %v344 = vpop.f32.mrf.mxu0
    %345 = vmatprep.mubr.bf16.mxu0 0
    %346 = vmatmul.mubr.bf16.gmra.mxu0 %v102
    %v347 = vpop.f32.mrf.mxu0
    %v348 = vadd.f32 %v84, %v347
    %v349 = vpop.f32.mrf.mxu0
    %v350 = vpop.f32.mrf.mxu0
    %v351 = vadd.f32 %v84, %v350
    %v352 = vpop.f32.mrf.mxu0
    %353 = vdwg.mxu0
    %354 = vst [vmem:[#allocation2] sm:$0xff] %v269
    %355 = vst [vmem:[#allocation2 + $0x8] sm:$0xff] %v271
    %356 = vst [vmem:[#allocation2 + $0x10] sm:$0xff] %v332
    %357 = vst [vmem:[#allocation2 + $0x18] sm:$0xff] %v273
    %358 = vst [vmem:[#allocation2 + $0x20] sm:$0xff] %v275
    %359 = vst [vmem:[#allocation2 + $0x28] sm:$0xff] %v335
    %360 = vst [vmem:[#allocation2 + $0x30] sm:$0xff] %v279
    %361 = vst [vmem:[#allocation2 + $0x38] sm:$0xff] %v281
    %362 = vst [vmem:[#allocation2 + $0x40] sm:$0xff] %v340
    %363 = vst [vmem:[#allocation2 + $0x48] sm:$0xff] %v283
    %364 = vst [vmem:[#allocation2 + $0x50] sm:$0xff] %v285
    %365 = vst [vmem:[#allocation2 + $0x58] sm:$0xff] %v343
    %366 = vst [vmem:[#allocation2 + $0x60] sm:$0xff] %v289
    %367 = vst [vmem:[#allocation2 + $0x68] sm:$0xff] %v291
    %368 = vst [vmem:[#allocation2 + $0x70] sm:$0xff] %v348
    %369 = vst [vmem:[#allocation2 + $0x78] sm:$0xff] %v293
    %370 = vst [vmem:[#allocation2 + $0x80] sm:$0xff] %v295
    %371 = vst [vmem:[#allocation2 + $0x88] sm:$0xff] %v351
    %v372 = vld [vmem:[%s2] sm:$0xff]
    %v373 = vld [vmem:[%s2 + $0x8] sm:$0xf]
    %v374 = vld [vmem:[%s2 + $0xc] sm:$0xff]
    %v375 = vld [vmem:[%s2 + $0x14] sm:$0xf]
    %v376 = vld [vmem:[%s2 + $0x18] sm:$0xff]
    %v377 = vld [vmem:[%s2 + $0x20] sm:$0xf]
    %v378 = vld [vmem:[%s2 + $0x24] sm:$0xff]
    %v379 = vld [vmem:[%s2 + $0x2c] sm:$0xf]
    %v380 = vld [vmem:[%s2 + $0x30] sm:$0xff]
    %v381 = vld [vmem:[%s2 + $0x38] sm:$0xf]
    %v382 = vld [vmem:[%s2 + $0x3c] sm:$0xff]
    %v383 = vld [vmem:[%s2 + $0x44] sm:$0xf]
    %v384 = vld [vmem:[%s2 + $0x48] sm:$0xff]
    %v385 = vld [vmem:[%s2 + $0x50] sm:$0xf]
    %v386 = vld [vmem:[%s2 + $0x54] sm:$0xff]
    %v387 = vld [vmem:[%s2 + $0x5c] sm:$0xf]
    %v388 = vld [vmem:[%s2 + $0x60] sm:$0xff]
    %v389 = vld [vmem:[%s2 + $0x68] sm:$0xf]
    %v390 = vld [vmem:[%s2 + $0x6c] sm:$0xff]
    %v391 = vld [vmem:[%s2 + $0x74] sm:$0xf]
    %v392 = vld [vmem:[%s2 + $0x78] sm:$0xff]
    %v393 = vld [vmem:[%s2 + $0x80] sm:$0xf]
    %v394 = vld [vmem:[%s2 + $0x84] sm:$0xff]
    %v395 = vld [vmem:[%s2 + $0x8c] sm:$0xf]
    %v396 = vld [vmem:[%s2 + $0x90] sm:$0xff]
    %v397 = vld [vmem:[%s2 + $0x98] sm:$0xf]
    %v398 = vld [vmem:[%s2 + $0x9c] sm:$0xff]
    %v399 = vld [vmem:[%s2 + $0xa4] sm:$0xf]
    %v400 = vld [vmem:[%s2 + $0xa8] sm:$0xff]
    %v401 = vld [vmem:[%s2 + $0xb0] sm:$0xf]
    %v402 = vld [vmem:[%s2 + $0xb4] sm:$0xff]
    %v403 = vld [vmem:[%s2 + $0xbc] sm:$0xf]
    %v404 = vld [vmem:[%s4] sm:$0x1]
    %v405 = vld [vmem:[%s5] sm:$0xff]
    %v406 = vld [vmem:[#allocation2] sm:$0xff]
    %v407 = vld [vmem:[#allocation2 + $0x8] sm:$0xff]
    %v408 = vld [vmem:[#allocation2 + $0x10] sm:$0xff]
    %v409 = vpack.c.bf16 %v405, %v405
    %v442 = vunpack.c.l.b16 %v372
    %v443 = vunpack.c.h.b16 %v372
    %v444 = vunpack.c.l.b16 %v373
    %v445 = vunpack.c.l.b16 %v374
    %v446 = vunpack.c.h.b16 %v374
    %v447 = vunpack.c.l.b16 %v375
    %v448 = vunpack.c.l.b16 %v376
    %v449 = vunpack.c.h.b16 %v376
    %v450 = vunpack.c.l.b16 %v377
    %v451 = vunpack.c.l.b16 %v378
    %v452 = vunpack.c.h.b16 %v378
    %v453 = vunpack.c.l.b16 %v379
    %v454 = vunpack.c.l.b16 %v380
    %v455 = vunpack.c.h.b16 %v380
    %v456 = vunpack.c.l.b16 %v381
    %v457 = vunpack.c.l.b16 %v382
    %v458 = vunpack.c.h.b16 %v382
    %v459 = vunpack.c.l.b16 %v383
    %v460 = vunpack.c.l.b16 %v384
    %v461 = vunpack.c.h.b16 %v384
    %v462 = vunpack.c.l.b16 %v385
    %v463 = vunpack.c.l.b16 %v386
    %v464 = vunpack.c.h.b16 %v386
    %v465 = vunpack.c.l.b16 %v387
    %v466 = vunpack.c.l.b16 %v388
    %v467 = vunpack.c.h.b16 %v388
    %v468 = vunpack.c.l.b16 %v389
    %v469 = vunpack.c.l.b16 %v390
    %v470 = vunpack.c.h.b16 %v390
    %v471 = vunpack.c.l.b16 %v391
    %v472 = vunpack.c.l.b16 %v392
    %v473 = vunpack.c.h.b16 %v392
    %v474 = vunpack.c.l.b16 %v393
    %v475 = vunpack.c.l.b16 %v394
    %v476 = vunpack.c.h.b16 %v394
    %v477 = vunpack.c.l.b16 %v395
    %v478 = vunpack.c.l.b16 %v396
    %v479 = vunpack.c.h.b16 %v396
    %v480 = vunpack.c.l.b16 %v397
    %v481 = vunpack.c.l.b16 %v398
    %v482 = vunpack.c.h.b16 %v398
    %v483 = vunpack.c.l.b16 %v399
    %v484 = vunpack.c.l.b16 %v400
    %v485 = vunpack.c.h.b16 %v400
    %v486 = vunpack.c.l.b16 %v401
    %v487 = vunpack.c.l.b16 %v402
    %v488 = vunpack.c.h.b16 %v402
    %v489 = vunpack.c.l.b16 %v403
    %v490 = vpack.c.b16 %v445, %v442
    %v491 = vpack.c.b16 %v446, %v443
    %v492 = vpack.c.b16 %v447, %v444
    %v493 = vpack.c.b16 %v451, %v448
    %v494 = vpack.c.b16 %v452, %v449
    %v495 = vpack.c.b16 %v453, %v450
    %v496 = vpack.c.b16 %v457, %v454
    %v497 = vpack.c.b16 %v458, %v455
    %v498 = vpack.c.b16 %v459, %v456
    %v499 = vpack.c.b16 %v463, %v460
    %v500 = vpack.c.b16 %v464, %v461
    %v501 = vpack.c.b16 %v465, %v462
    %v502 = vpack.c.b16 %v469, %v466
    %v503 = vpack.c.b16 %v470, %v467
    %v504 = vpack.c.b16 %v471, %v468
    %v505 = vpack.c.b16 %v475, %v472
    %v506 = vpack.c.b16 %v476, %v473
    %v507 = vpack.c.b16 %v477, %v474
    %v508 = vpack.c.b16 %v481, %v478
    %v509 = vpack.c.b16 %v482, %v479
    %v510 = vpack.c.b16 %v483, %v480
    %v511 = vpack.c.b16 %v487, %v484
    %v512 = vpack.c.b16 %v488, %v485
    %v513 = vpack.c.b16 %v489, %v486
    %538 = vmatprep.subr.bf16.mxu0 %v512
    %539 = vmatpush1.bf16.msra.mxu0 %v511
    %540 = vmatprep.subr.bf16.mxu0 %v509
    %541 = vmatpush1.bf16.msra.mxu0 %v508
    %542 = vmatprep.subr.bf16.mxu0 %v506
    %543 = vmatpush1.bf16.msra.mxu0 %v505
    %544 = vmatprep.subr.bf16.mxu0 %v503
    %545 = vmatpush1.bf16.msra.mxu0 %v502
    %546 = vmatprep.subr.bf16.mxu0 %v500
    %547 = vmatpush1.bf16.msra.mxu0 %v499
    %548 = vmatprep.subr.bf16.mxu0 %v497
    %549 = vmatpush1.bf16.msra.mxu0 %v496
    %550 = vmatprep.subr.bf16.mxu0 %v494
    %551 = vmatpush1.bf16.msra.mxu0 %v493
    %552 = vmatprep.subr.bf16.mxu0 %v491
    %553 = vmatpush1.bf16.msra.mxu0 %v490
    %554 = vmatprep.subr.bf16.mxu0 0
    %555 = vmatpush2.bf16.msra.mxu0 0
    %556 = vmatprep.subr.bf16.mxu0 0
    %557 = vmatpush2.bf16.msra.mxu0 0
    %558 = vmatprep.subr.bf16.mxu0 0
    %559 = vmatpush2.bf16.msra.mxu0 0
    %560 = vmatprep.subr.bf16.mxu0 0
    %561 = vmatpush2.bf16.msra.mxu0 0
    %562 = vmatprep.subr.bf16.mxu0 0
    %563 = vmatpush2.bf16.msra.mxu0 0
    %564 = vmatprep.subr.bf16.mxu0 0
    %565 = vmatpush2.bf16.msra.mxu0 0
    %566 = vmatprep.subr.bf16.mxu0 0
    %567 = vmatpush2.bf16.msra.mxu0 0
    %568 = vmatprep.subr.bf16.mxu0 0
    %569 = vmatpush2.bf16.msra.mxu0 0
    %570 = vmatprep.mubr.bf16.mxu0 0
    %571 = vmatmul.mubr.bf16.gmra.mxu0 %v409
    %v572 = vpop.f32.mrf.mxu0
    %v573 = vadd.f32 0.0, %v572
    %v574 = vpop.f32.mrf.mxu0
    %v575 = vadd.f32 0.0, %v574
    %v576 = vpop.f32.mrf.mxu0
    %v577 = vpop.f32.mrf.mxu0
    %578 = vdwg.mxu0
    %579 = vmatprep.subr.bf16.mxu0 0
    %580 = vmatpush1.bf16.msra.mxu0 %v513
    %581 = vmatprep.subr.bf16.mxu0 0
    %582 = vmatpush1.bf16.msra.mxu0 %v510
    %583 = vmatprep.subr.bf16.mxu0 0
    %584 = vmatpush1.bf16.msra.mxu0 %v507
    %585 = vmatprep.subr.bf16.mxu0 0
    %586 = vmatpush1.bf16.msra.mxu0 %v504
    %587 = vmatprep.subr.bf16.mxu0 0
    %588 = vmatpush1.bf16.msra.mxu0 %v501
    %589 = vmatprep.subr.bf16.mxu0 0
    %590 = vmatpush1.bf16.msra.mxu0 %v498
    %591 = vmatprep.subr.bf16.mxu0 0
    %592 = vmatpush1.bf16.msra.mxu0 %v495
    %593 = vmatprep.subr.bf16.mxu0 0
    %594 = vmatpush1.bf16.msra.mxu0 %v492
    %595 = vmatprep.subr.bf16.mxu0 0
    %596 = vmatpush2.bf16.msra.mxu0 0
    %597 = vmatprep.subr.bf16.mxu0 0
    %598 = vmatpush2.bf16.msra.mxu0 0
    %599 = vmatprep.subr.bf16.mxu0 0
    %600 = vmatpush2.bf16.msra.mxu0 0
    %601 = vmatprep.subr.bf16.mxu0 0
    %602 = vmatpush2.bf16.msra.mxu0 0
    %603 = vmatprep.subr.bf16.mxu0 0
    %604 = vmatpush2.bf16.msra.mxu0 0
    %605 = vmatprep.subr.bf16.mxu0 0
    %606 = vmatpush2.bf16.msra.mxu0 0
    %607 = vmatprep.subr.bf16.mxu0 0
    %608 = vmatpush2.bf16.msra.mxu0 0
    %609 = vmatprep.subr.bf16.mxu0 0
    %610 = vmatpush2.bf16.msra.mxu0 0
    %611 = vmatprep.mubr.bf16.mxu0 0
    %612 = vmatmul.mubr.bf16.gmra.mxu0 %v409
    %v613 = vpop.f32.mrf.mxu0
    %v614 = vadd.f32 0.0, %v613
    %v615 = vpop.f32.mrf.mxu0
    %v616 = vpop.f32.mrf.mxu0
    %v617 = vpop.f32.mrf.mxu0
    %618 = vdwg.mxu0
    %v619 = vadd.f32 %v406, %v573
    %v620 = vxor.u32 %v619, 2147483648
    %v621 = vmul.f32 %v620, 1.442695
    %v622 = vpow.pop %v621
    %v623 = vadd.f32 %v622, 1.0
    %v624 = vrcp.pop %v623
    %v625 = vmul.f32 1.0, %v624
    %v626 = vadd.f32 %v407, %v575
    %v627 = vxor.u32 %v626, 2147483648
    %v628 = vmul.f32 %v627, 1.442695
    %v629 = vpow.pop %v628
    %v630 = vadd.f32 %v629, 1.0
    %v631 = vrcp.pop %v630
    %v632 = vmul.f32 1.0, %v631
    %v634 = vlaneseq
    %v635 = vshrl.u32 %v634, 7
    %v636 = vsub.s32 0, %v635
    %v637 = vrot.slane %v404, %v636
    %v639 = vadd.f32 %v614, %v637
    %v640 = vmul.f32 %v625, %v639
    %v641 = vadd.f32 %v408, %v640
    %v642 = vtanh.pop %v641
    %v643 = vsub.f32 1.0, %v632
    %v644 = vmul.f32 %v643, %v642
    %v645 = vmul.f32 %v632, %v405
    %v646 = vadd.f32 %v644, %v645
    %647 = vst [vmem:[#allocation3] sm:$0xff] %v646
    %v648 = vld [vmem:[#allocation2 + $0x18] sm:$0xff]
    %v649 = vld [vmem:[#allocation2 + $0x20] sm:$0xff]
    %v650 = vld [vmem:[#allocation2 + $0x28] sm:$0xff]
    %v651 = vpack.c.bf16 %v646, %v646
    %652 = vmatprep.subr.bf16.mxu0 %v512
    %653 = vmatpush1.bf16.msra.mxu0 %v511
    %654 = vmatprep.subr.bf16.mxu0 %v509
    %655 = vmatpush1.bf16.msra.mxu0 %v508
    %656 = vmatprep.subr.bf16.mxu0 %v506
    %657 = vmatpush1.bf16.msra.mxu0 %v505
    %658 = vmatprep.subr.bf16.mxu0 %v503
    %659 = vmatpush1.bf16.msra.mxu0 %v502
    %660 = vmatprep.subr.bf16.mxu0 %v500
    %661 = vmatpush1.bf16.msra.mxu0 %v499
    %662 = vmatprep.subr.bf16.mxu0 %v497
    %663 = vmatpush1.bf16.msra.mxu0 %v496
    %664 = vmatprep.subr.bf16.mxu0 %v494
    %665 = vmatpush1.bf16.msra.mxu0 %v493
    %666 = vmatprep.subr.bf16.mxu0 %v491
    %667 = vmatpush1.bf16.msra.mxu0 %v490
    %668 = vmatprep.subr.bf16.mxu0 0
    %669 = vmatpush2.bf16.msra.mxu0 0
    %670 = vmatprep.subr.bf16.mxu0 0
    %671 = vmatpush2.bf16.msra.mxu0 0
    %672 = vmatprep.subr.bf16.mxu0 0
    %673 = vmatpush2.bf16.msra.mxu0 0
    %674 = vmatprep.subr.bf16.mxu0 0
    %675 = vmatpush2.bf16.msra.mxu0 0
    %676 = vmatprep.subr.bf16.mxu0 0
    %677 = vmatpush2.bf16.msra.mxu0 0
    %678 = vmatprep.subr.bf16.mxu0 0
    %679 = vmatpush2.bf16.msra.mxu0 0
    %680 = vmatprep.subr.bf16.mxu0 0
    %681 = vmatpush2.bf16.msra.mxu0 0
    %682 = vmatprep.subr.bf16.mxu0 0
    %683 = vmatpush2.bf16.msra.mxu0 0
    %684 = vmatprep.mubr.bf16.mxu0 0
    %685 = vmatmul.mubr.bf16.gmra.mxu0 %v651
    %v686 = vpop.f32.mrf.mxu0
    %v687 = vadd.f32 0.0, %v686
    %v688 = vpop.f32.mrf.mxu0
    %v689 = vadd.f32 0.0, %v688
    %v690 = vpop.f32.mrf.mxu0
    %v691 = vpop.f32.mrf.mxu0
    %692 = vdwg.mxu0
    %693 = vmatprep.subr.bf16.mxu0 0
    %694 = vmatpush1.bf16.msra.mxu0 %v513
    %695 = vmatprep.subr.bf16.mxu0 0
    %696 = vmatpush1.bf16.msra.mxu0 %v510
    %697 = vmatprep.subr.bf16.mxu0 0
    %698 = vmatpush1.bf16.msra.mxu0 %v507
    %699 = vmatprep.subr.bf16.mxu0 0
    %700 = vmatpush1.bf16.msra.mxu0 %v504
    %701 = vmatprep.subr.bf16.mxu0 0
    %702 = vmatpush1.bf16.msra.mxu0 %v501
    %703 = vmatprep.subr.bf16.mxu0 0
    %704 = vmatpush1.bf16.msra.mxu0 %v498
    %705 = vmatprep.subr.bf16.mxu0 0
    %706 = vmatpush1.bf16.msra.mxu0 %v495
    %707 = vmatprep.subr.bf16.mxu0 0
    %708 = vmatpush1.bf16.msra.mxu0 %v492
    %709 = vmatprep.subr.bf16.mxu0 0
    %710 = vmatpush2.bf16.msra.mxu0 0
    %711 = vmatprep.subr.bf16.mxu0 0
    %712 = vmatpush2.bf16.msra.mxu0 0
    %713 = vmatprep.subr.bf16.mxu0 0
    %714 = vmatpush2.bf16.msra.mxu0 0
    %715 = vmatprep.subr.bf16.mxu0 0
    %716 = vmatpush2.bf16.msra.mxu0 0
    %717 = vmatprep.subr.bf16.mxu0 0
    %718 = vmatpush2.bf16.msra.mxu0 0
    %719 = vmatprep.subr.bf16.mxu0 0
    %720 = vmatpush2.bf16.msra.mxu0 0
    %721 = vmatprep.subr.bf16.mxu0 0
    %722 = vmatpush2.bf16.msra.mxu0 0
    %723 = vmatprep.subr.bf16.mxu0 0
    %724 = vmatpush2.bf16.msra.mxu0 0
    %725 = vmatprep.mubr.bf16.mxu0 0
    %726 = vmatmul.mubr.bf16.gmra.mxu0 %v651
    %v727 = vpop.f32.mrf.mxu0
    %v728 = vadd.f32 0.0, %v727
    %v729 = vpop.f32.mrf.mxu0
    %v730 = vpop.f32.mrf.mxu0
    %v731 = vpop.f32.mrf.mxu0
    %732 = vdwg.mxu0
    %v733 = vadd.f32 %v648, %v687
    %v734 = vxor.u32 %v733, 2147483648
    %v735 = vmul.f32 %v734, 1.442695
    %v736 = vpow.pop %v735
    %v737 = vadd.f32 %v736, 1.0
    %v738 = vrcp.pop %v737
    %v739 = vmul.f32 1.0, %v738
    %v740 = vadd.f32 %v649, %v689
    %v741 = vxor.u32 %v740, 2147483648
    %v742 = vmul.f32 %v741, 1.442695
    %v743 = vpow.pop %v742
    %v744 = vadd.f32 %v743, 1.0
    %v745 = vrcp.pop %v744
    %v746 = vmul.f32 1.0, %v745
    %v747 = vadd.f32 %v728, %v637
    %v748 = vmul.f32 %v739, %v747
    %v749 = vadd.f32 %v650, %v748
    %v750 = vtanh.pop %v749
    %v751 = vsub.f32 1.0, %v746
    %v752 = vmul.f32 %v751, %v750
    %v753 = vmul.f32 %v746, %v646
    %v754 = vadd.f32 %v752, %v753
    %755 = vst [vmem:[#allocation3 + $0x8] sm:$0xff] %v754
    %v756 = vld [vmem:[#allocation2 + $0x30] sm:$0xff]
    %v757 = vld [vmem:[#allocation2 + $0x38] sm:$0xff]
    %v758 = vld [vmem:[#allocation2 + $0x40] sm:$0xff]
    %v759 = vpack.c.bf16 %v754, %v754
    %760 = vmatprep.subr.bf16.mxu0 %v512
    %761 = vmatpush1.bf16.msra.mxu0 %v511
    %762 = vmatprep.subr.bf16.mxu0 %v509
    %763 = vmatpush1.bf16.msra.mxu0 %v508
    %764 = vmatprep.subr.bf16.mxu0 %v506
    %765 = vmatpush1.bf16.msra.mxu0 %v505
    %766 = vmatprep.subr.bf16.mxu0 %v503
    %767 = vmatpush1.bf16.msra.mxu0 %v502
    %768 = vmatprep.subr.bf16.mxu0 %v500
    %769 = vmatpush1.bf16.msra.mxu0 %v499
    %770 = vmatprep.subr.bf16.mxu0 %v497
    %771 = vmatpush1.bf16.msra.mxu0 %v496
    %772 = vmatprep.subr.bf16.mxu0 %v494
    %773 = vmatpush1.bf16.msra.mxu0 %v493
    %774 = vmatprep.subr.bf16.mxu0 %v491
    %775 = vmatpush1.bf16.msra.mxu0 %v490
    %776 = vmatprep.subr.bf16.mxu0 0
    %777 = vmatpush2.bf16.msra.mxu0 0
    %778 = vmatprep.subr.bf16.mxu0 0
    %779 = vmatpush2.bf16.msra.mxu0 0
    %780 = vmatprep.subr.bf16.mxu0 0
    %781 = vmatpush2.bf16.msra.mxu0 0
    %782 = vmatprep.subr.bf16.mxu0 0
    %783 = vmatpush2.bf16.msra.mxu0 0
    %784 = vmatprep.subr.bf16.mxu0 0
    %785 = vmatpush2.bf16.msra.mxu0 0
    %786 = vmatprep.subr.bf16.mxu0 0
    %787 = vmatpush2.bf16.msra.mxu0 0
    %788 = vmatprep.subr.bf16.mxu0 0
    %789 = vmatpush2.bf16.msra.mxu0 0
    %790 = vmatprep.subr.bf16.mxu0 0
    %791 = vmatpush2.bf16.msra.mxu0 0
    %792 = vmatprep.mubr.bf16.mxu0 0
    %793 = vmatmul.mubr.bf16.gmra.mxu0 %v759
    %v794 = vpop.f32.mrf.mxu0
    %v795 = vadd.f32 0.0, %v794
    %v796 = vpop.f32.mrf.mxu0
    %v797 = vadd.f32 0.0, %v796
    %v798 = vpop.f32.mrf.mxu0
    %v799 = vpop.f32.mrf.mxu0
    %800 = vdwg.mxu0
    %801 = vmatprep.subr.bf16.mxu0 0
    %802 = vmatpush1.bf16.msra.mxu0 %v513
    %803 = vmatprep.subr.bf16.mxu0 0
    %804 = vmatpush1.bf16.msra.mxu0 %v510
    %805 = vmatprep.subr.bf16.mxu0 0
    %806 = vmatpush1.bf16.msra.mxu0 %v507
    %807 = vmatprep.subr.bf16.mxu0 0
    %808 = vmatpush1.bf16.msra.mxu0 %v504
    %809 = vmatprep.subr.bf16.mxu0 0
    %810 = vmatpush1.bf16.msra.mxu0 %v501
    %811 = vmatprep.subr.bf16.mxu0 0
    %812 = vmatpush1.bf16.msra.mxu0 %v498
    %813 = vmatprep.subr.bf16.mxu0 0
    %814 = vmatpush1.bf16.msra.mxu0 %v495
    %815 = vmatprep.subr.bf16.mxu0 0
    %816 = vmatpush1.bf16.msra.mxu0 %v492
    %817 = vmatprep.subr.bf16.mxu0 0
    %818 = vmatpush2.bf16.msra.mxu0 0
    %819 = vmatprep.subr.bf16.mxu0 0
    %820 = vmatpush2.bf16.msra.mxu0 0
    %821 = vmatprep.subr.bf16.mxu0 0
    %822 = vmatpush2.bf16.msra.mxu0 0
    %823 = vmatprep.subr.bf16.mxu0 0
    %824 = vmatpush2.bf16.msra.mxu0 0
    %825 = vmatprep.subr.bf16.mxu0 0
    %826 = vmatpush2.bf16.msra.mxu0 0
    %827 = vmatprep.subr.bf16.mxu0 0
    %828 = vmatpush2.bf16.msra.mxu0 0
    %829 = vmatprep.subr.bf16.mxu0 0
    %830 = vmatpush2.bf16.msra.mxu0 0
    %831 = vmatprep.subr.bf16.mxu0 0
    %832 = vmatpush2.bf16.msra.mxu0 0
    %833 = vmatprep.mubr.bf16.mxu0 0
    %834 = vmatmul.mubr.bf16.gmra.mxu0 %v759
    %v835 = vpop.f32.mrf.mxu0
    %v836 = vadd.f32 0.0, %v835
    %v837 = vpop.f32.mrf.mxu0
    %v838 = vpop.f32.mrf.mxu0
    %v839 = vpop.f32.mrf.mxu0
    %840 = vdwg.mxu0
    %v841 = vadd.f32 %v756, %v795
    %v842 = vxor.u32 %v841, 2147483648
    %v843 = vmul.f32 %v842, 1.442695
    %v844 = vpow.pop %v843
    %v845 = vadd.f32 %v844, 1.0
    %v846 = vrcp.pop %v845
    %v847 = vmul.f32 1.0, %v846
    %v848 = vadd.f32 %v757, %v797
    %v849 = vxor.u32 %v848, 2147483648
    %v850 = vmul.f32 %v849, 1.442695
    %v851 = vpow.pop %v850
    %v852 = vadd.f32 %v851, 1.0
    %v853 = vrcp.pop %v852
    %v854 = vmul.f32 1.0, %v853
    %v855 = vadd.f32 %v836, %v637
    %v856 = vmul.f32 %v847, %v855
    %v857 = vadd.f32 %v758, %v856
    %v858 = vtanh.pop %v857
    %v859 = vsub.f32 1.0, %v854
    %v860 = vmul.f32 %v859, %v858
    %v861 = vmul.f32 %v854, %v754
    %v862 = vadd.f32 %v860, %v861
    %863 = vst [vmem:[#allocation3 + $0x10] sm:$0xff] %v862
    %v864 = vld [vmem:[#allocation2 + $0x48] sm:$0xff]
    %v865 = vld [vmem:[#allocation2 + $0x50] sm:$0xff]
    %v866 = vld [vmem:[#allocation2 + $0x58] sm:$0xff]
    %v867 = vpack.c.bf16 %v862, %v862
    %868 = vmatprep.subr.bf16.mxu0 %v512
    %869 = vmatpush1.bf16.msra.mxu0 %v511
    %870 = vmatprep.subr.bf16.mxu0 %v509
    %871 = vmatpush1.bf16.msra.mxu0 %v508
    %872 = vmatprep.subr.bf16.mxu0 %v506
    %873 = vmatpush1.bf16.msra.mxu0 %v505
    %874 = vmatprep.subr.bf16.mxu0 %v503
    %875 = vmatpush1.bf16.msra.mxu0 %v502
    %876 = vmatprep.subr.bf16.mxu0 %v500
    %877 = vmatpush1.bf16.msra.mxu0 %v499
    %878 = vmatprep.subr.bf16.mxu0 %v497
    %879 = vmatpush1.bf16.msra.mxu0 %v496
    %880 = vmatprep.subr.bf16.mxu0 %v494
    %881 = vmatpush1.bf16.msra.mxu0 %v493
    %882 = vmatprep.subr.bf16.mxu0 %v491
    %883 = vmatpush1.bf16.msra.mxu0 %v490
    %884 = vmatprep.subr.bf16.mxu0 0
    %885 = vmatpush2.bf16.msra.mxu0 0
    %886 = vmatprep.subr.bf16.mxu0 0
    %887 = vmatpush2.bf16.msra.mxu0 0
    %888 = vmatprep.subr.bf16.mxu0 0
    %889 = vmatpush2.bf16.msra.mxu0 0
    %890 = vmatprep.subr.bf16.mxu0 0
    %891 = vmatpush2.bf16.msra.mxu0 0
    %892 = vmatprep.subr.bf16.mxu0 0
    %893 = vmatpush2.bf16.msra.mxu0 0
    %894 = vmatprep.subr.bf16.mxu0 0
    %895 = vmatpush2.bf16.msra.mxu0 0
    %896 = vmatprep.subr.bf16.mxu0 0
    %897 = vmatpush2.bf16.msra.mxu0 0
    %898 = vmatprep.subr.bf16.mxu0 0
    %899 = vmatpush2.bf16.msra.mxu0 0
    %900 = vmatprep.mubr.bf16.mxu0 0
    %901 = vmatmul.mubr.bf16.gmra.mxu0 %v867
    %v902 = vpop.f32.mrf.mxu0
    %v903 = vadd.f32 0.0, %v902
    %v904 = vpop.f32.mrf.mxu0
    %v905 = vadd.f32 0.0, %v904
    %v906 = vpop.f32.mrf.mxu0
    %v907 = vpop.f32.mrf.mxu0
    %908 = vdwg.mxu0
    %909 = vmatprep.subr.bf16.mxu0 0
    %910 = vmatpush1.bf16.msra.mxu0 %v513
    %911 = vmatprep.subr.bf16.mxu0 0
    %912 = vmatpush1.bf16.msra.mxu0 %v510
    %913 = vmatprep.subr.bf16.mxu0 0
    %914 = vmatpush1.bf16.msra.mxu0 %v507
    %915 = vmatprep.subr.bf16.mxu0 0
    %916 = vmatpush1.bf16.msra.mxu0 %v504
    %917 = vmatprep.subr.bf16.mxu0 0
    %918 = vmatpush1.bf16.msra.mxu0 %v501
    %919 = vmatprep.subr.bf16.mxu0 0
    %920 = vmatpush1.bf16.msra.mxu0 %v498
    %921 = vmatprep.subr.bf16.mxu0 0
    %922 = vmatpush1.bf16.msra.mxu0 %v495
    %923 = vmatprep.subr.bf16.mxu0 0
    %924 = vmatpush1.bf16.msra.mxu0 %v492
    %925 = vmatprep.subr.bf16.mxu0 0
    %926 = vmatpush2.bf16.msra.mxu0 0
    %927 = vmatprep.subr.bf16.mxu0 0
    %928 = vmatpush2.bf16.msra.mxu0 0
    %929 = vmatprep.subr.bf16.mxu0 0
    %930 = vmatpush2.bf16.msra.mxu0 0
    %931 = vmatprep.subr.bf16.mxu0 0
    %932 = vmatpush2.bf16.msra.mxu0 0
    %933 = vmatprep.subr.bf16.mxu0 0
    %934 = vmatpush2.bf16.msra.mxu0 0
    %935 = vmatprep.subr.bf16.mxu0 0
    %936 = vmatpush2.bf16.msra.mxu0 0
    %937 = vmatprep.subr.bf16.mxu0 0
    %938 = vmatpush2.bf16.msra.mxu0 0
    %939 = vmatprep.subr.bf16.mxu0 0
    %940 = vmatpush2.bf16.msra.mxu0 0
    %941 = vmatprep.mubr.bf16.mxu0 0
    %942 = vmatmul.mubr.bf16.gmra.mxu0 %v867
    %v943 = vpop.f32.mrf.mxu0
    %v944 = vadd.f32 0.0, %v943
    %v945 = vpop.f32.mrf.mxu0
    %v946 = vpop.f32.mrf.mxu0
    %v947 = vpop.f32.mrf.mxu0
    %948 = vdwg.mxu0
    %v949 = vadd.f32 %v864, %v903
    %v950 = vxor.u32 %v949, 2147483648
    %v951 = vmul.f32 %v950, 1.442695
    %v952 = vpow.pop %v951
    %v953 = vadd.f32 %v952, 1.0
    %v954 = vrcp.pop %v953
    %v955 = vmul.f32 1.0, %v954
    %v956 = vadd.f32 %v865, %v905
    %v957 = vxor.u32 %v956, 2147483648
    %v958 = vmul.f32 %v957, 1.442695
    %v959 = vpow.pop %v958
    %v960 = vadd.f32 %v959, 1.0
    %v961 = vrcp.pop %v960
    %v962 = vmul.f32 1.0, %v961
    %v963 = vadd.f32 %v944, %v637
    %v964 = vmul.f32 %v955, %v963
    %v965 = vadd.f32 %v866, %v964
    %v966 = vtanh.pop %v965
    %v967 = vsub.f32 1.0, %v962
    %v968 = vmul.f32 %v967, %v966
    %v969 = vmul.f32 %v962, %v862
    %v970 = vadd.f32 %v968, %v969
    %971 = vst [vmem:[#allocation3 + $0x18] sm:$0xff] %v970
    %v972 = vld [vmem:[#allocation2 + $0x60] sm:$0xff]
    %v973 = vld [vmem:[#allocation2 + $0x68] sm:$0xff]
    %v974 = vld [vmem:[#allocation2 + $0x70] sm:$0xff]
    %v975 = vpack.c.bf16 %v970, %v970
    %976 = vmatprep.subr.bf16.mxu0 %v512
    %977 = vmatpush1.bf16.msra.mxu0 %v511
    %978 = vmatprep.subr.bf16.mxu0 %v509
    %979 = vmatpush1.bf16.msra.mxu0 %v508
    %980 = vmatprep.subr.bf16.mxu0 %v506
    %981 = vmatpush1.bf16.msra.mxu0 %v505
    %982 = vmatprep.subr.bf16.mxu0 %v503
    %983 = vmatpush1.bf16.msra.mxu0 %v502
    %984 = vmatprep.subr.bf16.mxu0 %v500
    %985 = vmatpush1.bf16.msra.mxu0 %v499
    %986 = vmatprep.subr.bf16.mxu0 %v497
    %987 = vmatpush1.bf16.msra.mxu0 %v496
    %988 = vmatprep.subr.bf16.mxu0 %v494
    %989 = vmatpush1.bf16.msra.mxu0 %v493
    %990 = vmatprep.subr.bf16.mxu0 %v491
    %991 = vmatpush1.bf16.msra.mxu0 %v490
    %992 = vmatprep.subr.bf16.mxu0 0
    %993 = vmatpush2.bf16.msra.mxu0 0
    %994 = vmatprep.subr.bf16.mxu0 0
    %995 = vmatpush2.bf16.msra.mxu0 0
    %996 = vmatprep.subr.bf16.mxu0 0
    %997 = vmatpush2.bf16.msra.mxu0 0
    %998 = vmatprep.subr.bf16.mxu0 0
    %999 = vmatpush2.bf16.msra.mxu0 0
    %1000 = vmatprep.subr.bf16.mxu0 0
    %1001 = vmatpush2.bf16.msra.mxu0 0
    %1002 = vmatprep.subr.bf16.mxu0 0
    %1003 = vmatpush2.bf16.msra.mxu0 0
    %1004 = vmatprep.subr.bf16.mxu0 0
    %1005 = vmatpush2.bf16.msra.mxu0 0
    %1006 = vmatprep.subr.bf16.mxu0 0
    %1007 = vmatpush2.bf16.msra.mxu0 0
    %1008 = vmatprep.mubr.bf16.mxu0 0
    %1009 = vmatmul.mubr.bf16.gmra.mxu0 %v975
    %v1010 = vpop.f32.mrf.mxu0
    %v1011 = vadd.f32 0.0, %v1010
    %v1012 = vpop.f32.mrf.mxu0
    %v1013 = vadd.f32 0.0, %v1012
    %v1014 = vpop.f32.mrf.mxu0
    %v1015 = vpop.f32.mrf.mxu0
    %1016 = vdwg.mxu0
    %1017 = vmatprep.subr.bf16.mxu0 0
    %1018 = vmatpush1.bf16.msra.mxu0 %v513
    %1019 = vmatprep.subr.bf16.mxu0 0
    %1020 = vmatpush1.bf16.msra.mxu0 %v510
    %1021 = vmatprep.subr.bf16.mxu0 0
    %1022 = vmatpush1.bf16.msra.mxu0 %v507
    %1023 = vmatprep.subr.bf16.mxu0 0
    %1024 = vmatpush1.bf16.msra.mxu0 %v504
    %1025 = vmatprep.subr.bf16.mxu0 0
    %1026 = vmatpush1.bf16.msra.mxu0 %v501
    %1027 = vmatprep.subr.bf16.mxu0 0
    %1028 = vmatpush1.bf16.msra.mxu0 %v498
    %1029 = vmatprep.subr.bf16.mxu0 0
    %1030 = vmatpush1.bf16.msra.mxu0 %v495
    %1031 = vmatprep.subr.bf16.mxu0 0
    %1032 = vmatpush1.bf16.msra.mxu0 %v492
    %1033 = vmatprep.subr.bf16.mxu0 0
    %1034 = vmatpush2.bf16.msra.mxu0 0
    %1035 = vmatprep.subr.bf16.mxu0 0
    %1036 = vmatpush2.bf16.msra.mxu0 0
    %1037 = vmatprep.subr.bf16.mxu0 0
    %1038 = vmatpush2.bf16.msra.mxu0 0
    %1039 = vmatprep.subr.bf16.mxu0 0
    %1040 = vmatpush2.bf16.msra.mxu0 0
    %1041 = vmatprep.subr.bf16.mxu0 0
    %1042 = vmatpush2.bf16.msra.mxu0 0
    %1043 = vmatprep.subr.bf16.mxu0 0
    %1044 = vmatpush2.bf16.msra.mxu0 0
    %1045 = vmatprep.subr.bf16.mxu0 0
    %1046 = vmatpush2.bf16.msra.mxu0 0
    %1047 = vmatprep.subr.bf16.mxu0 0
    %1048 = vmatpush2.bf16.msra.mxu0 0
    %1049 = vmatprep.mubr.bf16.mxu0 0
    %1050 = vmatmul.mubr.bf16.gmra.mxu0 %v975
    %v1051 = vpop.f32.mrf.mxu0
    %v1052 = vadd.f32 0.0, %v1051
    %v1053 = vpop.f32.mrf.mxu0
    %v1054 = vpop.f32.mrf.mxu0
    %v1055 = vpop.f32.mrf.mxu0
    %1056 = vdwg.mxu0
    %v1057 = vadd.f32 %v972, %v1011
    %v1058 = vxor.u32 %v1057, 2147483648
    %v1059 = vmul.f32 %v1058, 1.442695
    %v1060 = vpow.pop %v1059
    %v1061 = vadd.f32 %v1060, 1.0
    %v1062 = vrcp.pop %v1061
    %v1063 = vmul.f32 1.0, %v1062
    %v1064 = vadd.f32 %v973, %v1013
    %v1065 = vxor.u32 %v1064, 2147483648
    %v1066 = vmul.f32 %v1065, 1.442695
    %v1067 = vpow.pop %v1066
    %v1068 = vadd.f32 %v1067, 1.0
    %v1069 = vrcp.pop %v1068
    %v1070 = vmul.f32 1.0, %v1069
    %v1071 = vadd.f32 %v1052, %v637
    %v1072 = vmul.f32 %v1063, %v1071
    %v1073 = vadd.f32 %v974, %v1072
    %v1074 = vtanh.pop %v1073
    %v1075 = vsub.f32 1.0, %v1070
    %v1076 = vmul.f32 %v1075, %v1074
    %v1077 = vmul.f32 %v1070, %v970
    %v1078 = vadd.f32 %v1076, %v1077
    %1079 = vst [vmem:[#allocation3 + $0x20] sm:$0xff] %v1078
    %v1080 = vld [vmem:[#allocation2 + $0x78] sm:$0xff]
    %v1081 = vld [vmem:[#allocation2 + $0x80] sm:$0xff]
    %v1082 = vld [vmem:[#allocation2 + $0x88] sm:$0xff]
    %v1083 = vpack.c.bf16 %v1078, %v1078
    %1084 = vmatprep.subr.bf16.mxu0 %v512
    %1085 = vmatpush1.bf16.msra.mxu0 %v511
    %1086 = vmatprep.subr.bf16.mxu0 %v509
    %1087 = vmatpush1.bf16.msra.mxu0 %v508
    %1088 = vmatprep.subr.bf16.mxu0 %v506
    %1089 = vmatpush1.bf16.msra.mxu0 %v505
    %1090 = vmatprep.subr.bf16.mxu0 %v503
    %1091 = vmatpush1.bf16.msra.mxu0 %v502
    %1092 = vmatprep.subr.bf16.mxu0 %v500
    %1093 = vmatpush1.bf16.msra.mxu0 %v499
    %1094 = vmatprep.subr.bf16.mxu0 %v497
    %1095 = vmatpush1.bf16.msra.mxu0 %v496
    %1096 = vmatprep.subr.bf16.mxu0 %v494
    %1097 = vmatpush1.bf16.msra.mxu0 %v493
    %1098 = vmatprep.subr.bf16.mxu0 %v491
    %1099 = vmatpush1.bf16.msra.mxu0 %v490
    %1100 = vmatprep.subr.bf16.mxu0 0
    %1101 = vmatpush2.bf16.msra.mxu0 0
    %1102 = vmatprep.subr.bf16.mxu0 0
    %1103 = vmatpush2.bf16.msra.mxu0 0
    %1104 = vmatprep.subr.bf16.mxu0 0
    %1105 = vmatpush2.bf16.msra.mxu0 0
    %1106 = vmatprep.subr.bf16.mxu0 0
    %1107 = vmatpush2.bf16.msra.mxu0 0
    %1108 = vmatprep.subr.bf16.mxu0 0
    %1109 = vmatpush2.bf16.msra.mxu0 0
    %1110 = vmatprep.subr.bf16.mxu0 0
    %1111 = vmatpush2.bf16.msra.mxu0 0
    %1112 = vmatprep.subr.bf16.mxu0 0
    %1113 = vmatpush2.bf16.msra.mxu0 0
    %1114 = vmatprep.subr.bf16.mxu0 0
    %1115 = vmatpush2.bf16.msra.mxu0 0
    %1116 = vmatprep.mubr.bf16.mxu0 0
    %1117 = vmatmul.mubr.bf16.gmra.mxu0 %v1083
    %v1118 = vpop.f32.mrf.mxu0
    %v1119 = vadd.f32 0.0, %v1118
    %v1120 = vpop.f32.mrf.mxu0
    %v1121 = vadd.f32 0.0, %v1120
    %v1122 = vpop.f32.mrf.mxu0
    %v1123 = vpop.f32.mrf.mxu0
    %1124 = vdwg.mxu0
    %1125 = vmatprep.subr.bf16.mxu0 0
    %1126 = vmatpush1.bf16.msra.mxu0 %v513
    %1127 = vmatprep.subr.bf16.mxu0 0
    %1128 = vmatpush1.bf16.msra.mxu0 %v510
    %1129 = vmatprep.subr.bf16.mxu0 0
    %1130 = vmatpush1.bf16.msra.mxu0 %v507
    %1131 = vmatprep.subr.bf16.mxu0 0
    %1132 = vmatpush1.bf16.msra.mxu0 %v504
    %1133 = vmatprep.subr.bf16.mxu0 0
    %1134 = vmatpush1.bf16.msra.mxu0 %v501
    %1135 = vmatprep.subr.bf16.mxu0 0
    %1136 = vmatpush1.bf16.msra.mxu0 %v498
    %1137 = vmatprep.subr.bf16.mxu0 0
    %1138 = vmatpush1.bf16.msra.mxu0 %v495
    %1139 = vmatprep.subr.bf16.mxu0 0
    %1140 = vmatpush1.bf16.msra.mxu0 %v492
    %1141 = vmatprep.subr.bf16.mxu0 0
    %1142 = vmatpush2.bf16.msra.mxu0 0
    %1143 = vmatprep.subr.bf16.mxu0 0
    %1144 = vmatpush2.bf16.msra.mxu0 0
    %1145 = vmatprep.subr.bf16.mxu0 0
    %1146 = vmatpush2.bf16.msra.mxu0 0
    %1147 = vmatprep.subr.bf16.mxu0 0
    %1148 = vmatpush2.bf16.msra.mxu0 0
    %1149 = vmatprep.subr.bf16.mxu0 0
    %1150 = vmatpush2.bf16.msra.mxu0 0
    %1151 = vmatprep.subr.bf16.mxu0 0
    %1152 = vmatpush2.bf16.msra.mxu0 0
    %1153 = vmatprep.subr.bf16.mxu0 0
    %1154 = vmatpush2.bf16.msra.mxu0 0
    %1155 = vmatprep.subr.bf16.mxu0 0
    %1156 = vmatpush2.bf16.msra.mxu0 0
    %1157 = vmatprep.mubr.bf16.mxu0 0
    %1158 = vmatmul.mubr.bf16.gmra.mxu0 %v1083
    %v1159 = vpop.f32.mrf.mxu0
    %v1160 = vadd.f32 0.0, %v1159
    %v1161 = vpop.f32.mrf.mxu0
    %v1162 = vpop.f32.mrf.mxu0
    %v1163 = vpop.f32.mrf.mxu0
    %1164 = vdwg.mxu0
    %v1165 = vadd.f32 %v1080, %v1119
    %v1166 = vxor.u32 %v1165, 2147483648
    %v1167 = vmul.f32 %v1166, 1.442695
    %v1168 = vpow.pop %v1167
    %v1169 = vadd.f32 %v1168, 1.0
    %v1170 = vrcp.pop %v1169
    %v1171 = vmul.f32 1.0, %v1170
    %v1172 = vadd.f32 %v1081, %v1121
    %v1173 = vxor.u32 %v1172, 2147483648
    %v1174 = vmul.f32 %v1173, 1.442695
    %v1175 = vpow.pop %v1174
    %v1176 = vadd.f32 %v1175, 1.0
    %v1177 = vrcp.pop %v1176
    %v1178 = vmul.f32 1.0, %v1177
    %v1179 = vadd.f32 %v1160, %v637
    %v1180 = vmul.f32 %v1171, %v1179
    %v1181 = vadd.f32 %v1082, %v1180
    %v1182 = vtanh.pop %v1181
    %v1183 = vsub.f32 1.0, %v1178
    %v1184 = vmul.f32 %v1183, %v1182
    %v1185 = vmul.f32 %v1178, %v1078
    %v1186 = vadd.f32 %v1184, %v1185
    %1187 = vst [vmem:[#allocation3 + $0x28] sm:$0xff] %v1186
    %1188 = vst [vmem:[#allocation4] sm:$0xff] %v1186
    %v1189 = vld [vmem:[#allocation3] sm:$0xff]
    %v1190 = vld [vmem:[#allocation3 + $0x8] sm:$0xff]
    %v1191 = vld [vmem:[#allocation3 + $0x10] sm:$0xff]
    %v1192 = vld [vmem:[#allocation3 + $0x18] sm:$0xff]
    %v1193 = vld [vmem:[#allocation3 + $0x20] sm:$0xff]
    %v1194 = vld [vmem:[#allocation3 + $0x28] sm:$0xff]
    %v1195 = vpack.c.bf16 %v1190, %v1189
    %v1196 = vpack.c.bf16 %v1192, %v1191
    %v1197 = vpack.c.bf16 %v1194, %v1193
    %v1198 = vld [vmem:[%s6] sm:$0xf]
    %v1199 = vld [vmem:[%s6 + $0x4] sm:$0xf]
    %v1200 = vld [vmem:[%s6 + $0x8] sm:$0xf]
    %v1201 = vld [vmem:[%s6 + $0xc] sm:$0xf]
    %v1202 = vld [vmem:[%s6 + $0x10] sm:$0xf]
    %v1203 = vld [vmem:[%s6 + $0x14] sm:$0xf]
    %v1204 = vld [vmem:[%s6 + $0x18] sm:$0xf]
    %v1205 = vld [vmem:[%s6 + $0x1c] sm:$0xf]
    %v1206 = vld [vmem:[%s6 + $0x20] sm:$0xf]
    %v1207 = vld [vmem:[%s6 + $0x24] sm:$0xf]
    %v1208 = vld [vmem:[%s6 + $0x28] sm:$0xf]
    %v1209 = vld [vmem:[%s6 + $0x2c] sm:$0xf]
    %v1210 = vld [vmem:[%s6 + $0x30] sm:$0xf]
    %v1211 = vld [vmem:[%s6 + $0x34] sm:$0xf]
    %v1212 = vld [vmem:[%s6 + $0x38] sm:$0xf]
    %v1213 = vld [vmem:[%s6 + $0x3c] sm:$0xf]
    %v1214 = vld [vmem:[%s7] sm:$0x1]
    %v1216 = vlaneseq
    %v1217 = vshrl.u32 %v1216, 7
    %v1218 = vsub.s32 0, %v1217
    %v1219 = vrot.slane %v1214, %v1218
    %v1237 = vunpack.c.l.b16 %v1198
    %v1238 = vunpack.c.l.b16 %v1199
    %v1239 = vunpack.c.l.b16 %v1200
    %v1240 = vunpack.c.l.b16 %v1201
    %v1241 = vunpack.c.l.b16 %v1202
    %v1242 = vunpack.c.l.b16 %v1203
    %v1243 = vunpack.c.l.b16 %v1204
    %v1244 = vunpack.c.l.b16 %v1205
    %v1245 = vunpack.c.l.b16 %v1206
    %v1246 = vunpack.c.l.b16 %v1207
    %v1247 = vunpack.c.l.b16 %v1208
    %v1248 = vunpack.c.l.b16 %v1209
    %v1249 = vunpack.c.l.b16 %v1210
    %v1250 = vunpack.c.l.b16 %v1211
    %v1251 = vunpack.c.l.b16 %v1212
    %v1252 = vunpack.c.l.b16 %v1213
    %v1253 = vpack.c.b16 %v1238, %v1237
    %v1254 = vpack.c.b16 %v1240, %v1239
    %v1255 = vpack.c.b16 %v1242, %v1241
    %v1256 = vpack.c.b16 %v1244, %v1243
    %v1257 = vpack.c.b16 %v1246, %v1245
    %v1258 = vpack.c.b16 %v1248, %v1247
    %v1259 = vpack.c.b16 %v1250, %v1249
    %v1260 = vpack.c.b16 %v1252, %v1251
    %1269 = vmatprep.subr.bf16.mxu0 0
    %1270 = vmatpush1.bf16.msra.mxu0 %v1260
    %1271 = vmatprep.subr.bf16.mxu0 0
    %1272 = vmatpush1.bf16.msra.mxu0 %v1259
    %1273 = vmatprep.subr.bf16.mxu0 0
    %1274 = vmatpush1.bf16.msra.mxu0 %v1258
    %1275 = vmatprep.subr.bf16.mxu0 0
    %1276 = vmatpush1.bf16.msra.mxu0 %v1257
    %1277 = vmatprep.subr.bf16.mxu0 0
    %1278 = vmatpush1.bf16.msra.mxu0 %v1256
    %1279 = vmatprep.subr.bf16.mxu0 0
    %1280 = vmatpush1.bf16.msra.mxu0 %v1255
    %1281 = vmatprep.subr.bf16.mxu0 0
    %1282 = vmatpush1.bf16.msra.mxu0 %v1254
    %1283 = vmatprep.subr.bf16.mxu0 0
    %1284 = vmatpush1.bf16.msra.mxu0 %v1253
    %1285 = vmatprep.subr.bf16.mxu0 0
    %1286 = vmatpush2.bf16.msra.mxu0 0
    %1287 = vmatprep.subr.bf16.mxu0 0
    %1288 = vmatpush2.bf16.msra.mxu0 0
    %1289 = vmatprep.subr.bf16.mxu0 0
    %1290 = vmatpush2.bf16.msra.mxu0 0
    %1291 = vmatprep.subr.bf16.mxu0 0
    %1292 = vmatpush2.bf16.msra.mxu0 0
    %1293 = vmatprep.subr.bf16.mxu0 0
    %1294 = vmatpush2.bf16.msra.mxu0 0
    %1295 = vmatprep.subr.bf16.mxu0 0
    %1296 = vmatpush2.bf16.msra.mxu0 0
    %1297 = vmatprep.subr.bf16.mxu0 0
    %1298 = vmatpush2.bf16.msra.mxu0 0
    %1299 = vmatprep.subr.bf16.mxu0 0
    %1300 = vmatpush2.bf16.msra.mxu0 0
    %1301 = vmatprep.mubr.bf16.mxu0 0
    %1302 = vmatmul.mubr.bf16.gmra.mxu0 %v1195
    %v1303 = vpop.f32.mrf.mxu0
    %v1304 = vadd.f32 %v1219, %v1303
    %v1305 = vpop.f32.mrf.mxu0
    %v1306 = vpop.f32.mrf.mxu0
    %v1307 = vadd.f32 %v1219, %v1306
    %v1308 = vpop.f32.mrf.mxu0
    %1309 = vmatprep.mubr.bf16.mxu0 0
    %1310 = vmatmul.mubr.bf16.gmra.mxu0 %v1196
    %v1311 = vpop.f32.mrf.mxu0
    %v1312 = vadd.f32 %v1219, %v1311
    %v1313 = vpop.f32.mrf.mxu0
    %v1314 = vpop.f32.mrf.mxu0
    %v1315 = vadd.f32 %v1219, %v1314
    %v1316 = vpop.f32.mrf.mxu0
    %1317 = vmatprep.mubr.bf16.mxu0 0
    %1318 = vmatmul.mubr.bf16.gmra.mxu0 %v1197
    %v1319 = vpop.f32.mrf.mxu0
    %v1320 = vadd.f32 %v1219, %v1319
    %v1321 = vpop.f32.mrf.mxu0
    %v1322 = vpop.f32.mrf.mxu0
    %v1323 = vadd.f32 %v1219, %v1322
    %v1324 = vpop.f32.mrf.mxu0
    %1325 = vdwg.mxu0
    %v1326 = vtanh.pop %v1304
    %v1327 = vtanh.pop %v1307
    %v1328 = vtanh.pop %v1312
    %v1329 = vtanh.pop %v1315
    %v1330 = vtanh.pop %v1320
    %v1331 = vtanh.pop %v1323
    %1332 = vst [vmem:[%s8] sm:$0xff] %v1326
    %1333 = vst [vmem:[%s8 + $0x8] sm:$0xff] %v1327
    %1334 = vst [vmem:[%s8 + $0x10] sm:$0xff] %v1328
    %1335 = vst [vmem:[%s8 + $0x18] sm:$0xff] %v1329
    %1336 = vst [vmem:[%s8 + $0x20] sm:$0xff] %v1330
    %1337 = vst [vmem:[%s8 + $0x28] sm:$0xff] %v1331
    // Predicated region
    $region34: #{seq2seq_forward.4} parent=1 // pred_check
      _
    $region35: #{seq2seq_forward.4} parent=1 // pred_check_branch
      %1339 = sbr.rel (0) target = $region37
    $region36: #{seq2seq_forward.4} parent=1 // pred_region
      _
    $region37: #{seq2seq_forward.4} parent=1 // pred_fallthru
      _
    // Predicated region
    $region38: #{seq2seq_forward.4} parent=1 // pred_check
      _
    $region39: #{seq2seq_forward.4} parent=1 // pred_check_branch
      %1341 = sbr.rel (0) target = $region41
    $region40: #{seq2seq_forward.4} parent=1 // pred_region
      %s1343 = ssub.s32 128, 128
      %1344 = vsyncadd [#allocation5], %s1343
      %s1346 = sshll.u32 [#allocation4], 4
      %s1347 = int_to_ptr.vmem [resolvable:$true] %s1346
      %1349 = dma.vmem_to_hbm [thread:$0]  %s1347, 128, %s9, [#allocation5]
    $region41: #{seq2seq_forward.4} parent=1 // pred_fallthru
      _
    // Predicated region
    $region42: #{seq2seq_forward.4} parent=1 // pred_check
      _
    $region43: #{seq2seq_forward.4} parent=1 // pred_check_branch
      %1351 = sbr.rel (0) target = $region45
    $region44: #{seq2seq_forward.4} parent=1 // pred_region
      _
    $region45: #{seq2seq_forward.4} parent=1 // pred_fallthru
      _
    // Predicated region
    $region46: #{seq2seq_forward.4} parent=1 // pred_check
      _
    $region47: #{seq2seq_forward.4} parent=1 // pred_check_branch
      %1353 = sbr.rel (0) target = $region49
    $region48: #{seq2seq_forward.4} parent=1 // pred_region
      %1354 = dma.done [#allocation5], 128
    $region49: #{seq2seq_forward.4} parent=1 // pred_fallthru
      _
    %1355 = vsyncpa [#allocation5], 1

// kernel: seq2seq_forward.3
$region0: #{seq2seq_forward.3}
  #allocation0 [shape = 'u32[]', space=smem, size = 0x4, offset = 0x4, fixed_abs, tag = 'smem constant byte address 0x4 - core index']
  #allocation1 [shape = 'u32[144,128]{1,0:T(1,128)}', space=vmem, size = 0x12000, scoped, tag = 'internal scratch']
  #allocation2 [shape = 'f32[64,384]{1,0:T(8,128)}', space=vmem, size = 0x18000, scoped, tag = 'scratch operand']
  %s0 = inlined_call_operand.vmem [shape: bf16[64,128], index: 0, kind: input, shape index: {}]
  %s1 = inlined_call_operand.vmem [shape: bf16[128,384], index: 1, kind: input, shape index: {}]
  %s2 = inlined_call_operand.vmem [shape: bf16[128,384], index: 2, kind: input, shape index: {}]
  %s3 = inlined_call_operand.vmem [shape: f32[1,384], index: 3, kind: input, shape index: {}]
  %s4 = inlined_call_operand.vmem [shape: f32[1,128], index: 4, kind: input, shape index: {}]
  %s5 = inlined_call_operand.vmem [shape: f32[8,128], index: 5, kind: input, shape index: {}]
  %s6 = inlined_call_operand.vmem [shape: f32[8,128], index: 6, kind: output, shape index: {}]
  %s7 = sld [smem:[#allocation0]]
  $region34: #{seq2seq_forward.3} parent=0
    _
  %s9 = ssub.s32 1, %s7
  %s10 = scalar_select 0, %s9, %s7
  // Predicated region
  $region2: #{seq2seq_forward.3} parent=0 // pred_check
    _
  $region3: #{seq2seq_forward.3} parent=0 // pred_check_branch
    %12 = sbr.rel (0) target = $region5
  $region4: #{seq2seq_forward.3} parent=0 // pred_region
    _
  $region5: #{seq2seq_forward.3} parent=0 // pred_fallthru
    _
  // Predicated region
  $region6: #{seq2seq_forward.3} parent=0 // pred_check
    _
  $region7: #{seq2seq_forward.3} parent=0 // pred_check_branch
    %14 = sbr.rel (0) target = $region9
  $region8: #{seq2seq_forward.3} parent=0 // pred_region
    _
  $region9: #{seq2seq_forward.3} parent=0 // pred_fallthru
    _
  // Predicated region
  $region10: #{seq2seq_forward.3} parent=0 // pred_check
    _
  $region11: #{seq2seq_forward.3} parent=0 // pred_check_branch
    %16 = sbr.rel (0) target = $region13
  $region12: #{seq2seq_forward.3} parent=0 // pred_region
    _
  $region13: #{seq2seq_forward.3} parent=0 // pred_fallthru
    _
  // Predicated region
  $region14: #{seq2seq_forward.3} parent=0 // pred_check
    _
  $region15: #{seq2seq_forward.3} parent=0 // pred_check_branch
    %18 = sbr.rel (0) target = $region17
  $region16: #{seq2seq_forward.3} parent=0 // pred_region
    _
  $region17: #{seq2seq_forward.3} parent=0 // pred_fallthru
    _
  // Predicated region
  $region18: #{seq2seq_forward.3} parent=0 // pred_check
    _
  $region19: #{seq2seq_forward.3} parent=0 // pred_check_branch
    %20 = sbr.rel (0) target = $region21
  $region20: #{seq2seq_forward.3} parent=0 // pred_region
    _
  $region21: #{seq2seq_forward.3} parent=0 // pred_fallthru
    _
  // Predicated region
  $region22: #{seq2seq_forward.3} parent=0 // pred_check
    _
  $region23: #{seq2seq_forward.3} parent=0 // pred_check_branch
    %22 = sbr.rel (0) target = $region25
  $region24: #{seq2seq_forward.3} parent=0 // pred_region
    _
  $region25: #{seq2seq_forward.3} parent=0 // pred_fallthru
    _
  %v24 = vld [vmem:[%s0] sm:$0xf]
  %v25 = vld [vmem:[%s0 + $0x4] sm:$0xf]
  %v26 = vld [vmem:[%s0 + $0x8] sm:$0xf]
  %v27 = vld [vmem:[%s0 + $0xc] sm:$0xf]
  %v28 = vld [vmem:[%s0 + $0x10] sm:$0xf]
  %v29 = vld [vmem:[%s0 + $0x14] sm:$0xf]
  %v30 = vld [vmem:[%s0 + $0x18] sm:$0xf]
  %v31 = vld [vmem:[%s0 + $0x1c] sm:$0xf]
  %v32 = vld [vmem:[%s1] sm:$0xff]
  %v33 = vld [vmem:[%s1 + $0x8] sm:$0xf]
  %v34 = vld [vmem:[%s1 + $0xc] sm:$0xff]
  %v35 = vld [vmem:[%s1 + $0x14] sm:$0xf]
  %v36 = vld [vmem:[%s1 + $0x18] sm:$0xff]
  %v37 = vld [vmem:[%s1 + $0x20] sm:$0xf]
  %v38 = vld [vmem:[%s1 + $0x24] sm:$0xff]
  %v39 = vld [vmem:[%s1 + $0x2c] sm:$0xf]
  %v40 = vld [vmem:[%s1 + $0x30] sm:$0xff]
  %v41 = vld [vmem:[%s1 + $0x38] sm:$0xf]
  %v42 = vld [vmem:[%s1 + $0x3c] sm:$0xff]
  %v43 = vld [vmem:[%s1 + $0x44] sm:$0xf]
  %v44 = vld [vmem:[%s1 + $0x48] sm:$0xff]
  %v45 = vld [vmem:[%s1 + $0x50] sm:$0xf]
  %v46 = vld [vmem:[%s1 + $0x54] sm:$0xff]
  %v47 = vld [vmem:[%s1 + $0x5c] sm:$0xf]
  %v48 = vld [vmem:[%s1 + $0x60] sm:$0xff]
  %v49 = vld [vmem:[%s1 + $0x68] sm:$0xf]
  %v50 = vld [vmem:[%s1 + $0x6c] sm:$0xff]
  %v51 = vld [vmem:[%s1 + $0x74] sm:$0xf]
  %v52 = vld [vmem:[%s1 + $0x78] sm:$0xff]
  %v53 = vld [vmem:[%s1 + $0x80] sm:$0xf]
  %v54 = vld [vmem:[%s1 + $0x84] sm:$0xff]
  %v55 = vld [vmem:[%s1 + $0x8c] sm:$0xf]
  %v56 = vld [vmem:[%s1 + $0x90] sm:$0xff]
  %v57 = vld [vmem:[%s1 + $0x98] sm:$0xf]
  %v58 = vld [vmem:[%s1 + $0x9c] sm:$0xff]
  %v59 = vld [vmem:[%s1 + $0xa4] sm:$0xf]
  %v60 = vld [vmem:[%s1 + $0xa8] sm:$0xff]
  %v61 = vld [vmem:[%s1 + $0xb0] sm:$0xf]
  %v62 = vld [vmem:[%s1 + $0xb4] sm:$0xff]
  %v63 = vld [vmem:[%s1 + $0xbc] sm:$0xf]
  %v64 = vld [vmem:[%s3] sm:$0x7]
  %v66 = vlaneseq
  %v67 = vshrl.u32 %v66, 7
  %v68 = vsub.s32 0, %v67
  %v69 = vrot.slane %v64, %v68
  %v70 = vlaneseq
  %v71 = vshrl.u32 %v70, 7
  %v72 = vsub.s32 1, %v71
  %v73 = vrot.slane %v64, %v72
  %v74 = vlaneseq
  %v75 = vshrl.u32 %v74, 7
  %v76 = vsub.s32 2, %v75
  %v77 = vrot.slane %v64, %v76
  %v89 = vunpack.c.l.b16 %v24
  %v90 = vunpack.c.l.b16 %v25
  %v91 = vunpack.c.l.b16 %v26
  %v92 = vunpack.c.l.b16 %v27
  %v93 = vunpack.c.l.b16 %v28
  %v94 = vunpack.c.l.b16 %v29
  %v95 = vunpack.c.l.b16 %v30
  %v96 = vunpack.c.l.b16 %v31
  %v97 = vpack.c.b16 %v90, %v89
  %v98 = vpack.c.b16 %v92, %v91
  %v99 = vpack.c.b16 %v94, %v93
  %v100 = vpack.c.b16 %v96, %v95
  %v137 = vunpack.c.l.b16 %v32
  %v138 = vunpack.c.h.b16 %v32
  %v139 = vunpack.c.l.b16 %v33
  %v140 = vunpack.c.l.b16 %v34
  %v141 = vunpack.c.h.b16 %v34
  %v142 = vunpack.c.l.b16 %v35
  %v143 = vunpack.c.l.b16 %v36
  %v144 = vunpack.c.h.b16 %v36
  %v145 = vunpack.c.l.b16 %v37
  %v146 = vunpack.c.l.b16 %v38
  %v147 = vunpack.c.h.b16 %v38
  %v148 = vunpack.c.l.b16 %v39
  %v149 = vunpack.c.l.b16 %v40
  %v150 = vunpack.c.h.b16 %v40
  %v151 = vunpack.c.l.b16 %v41
  %v152 = vunpack.c.l.b16 %v42
  %v153 = vunpack.c.h.b16 %v42
  %v154 = vunpack.c.l.b16 %v43
  %v155 = vunpack.c.l.b16 %v44
  %v156 = vunpack.c.h.b16 %v44
  %v157 = vunpack.c.l.b16 %v45
  %v158 = vunpack.c.l.b16 %v46
  %v159 = vunpack.c.h.b16 %v46
  %v160 = vunpack.c.l.b16 %v47
  %v161 = vunpack.c.l.b16 %v48
  %v162 = vunpack.c.h.b16 %v48
  %v163 = vunpack.c.l.b16 %v49
  %v164 = vunpack.c.l.b16 %v50
  %v165 = vunpack.c.h.b16 %v50
  %v166 = vunpack.c.l.b16 %v51
  %v167 = vunpack.c.l.b16 %v52
  %v168 = vunpack.c.h.b16 %v52
  %v169 = vunpack.c.l.b16 %v53
  %v170 = vunpack.c.l.b16 %v54
  %v171 = vunpack.c.h.b16 %v54
  %v172 = vunpack.c.l.b16 %v55
  %v173 = vunpack.c.l.b16 %v56
  %v174 = vunpack.c.h.b16 %v56
  %v175 = vunpack.c.l.b16 %v57
  %v176 = vunpack.c.l.b16 %v58
  %v177 = vunpack.c.h.b16 %v58
  %v178 = vunpack.c.l.b16 %v59
  %v179 = vunpack.c.l.b16 %v60
  %v180 = vunpack.c.h.b16 %v60
  %v181 = vunpack.c.l.b16 %v61
  %v182 = vunpack.c.l.b16 %v62
  %v183 = vunpack.c.h.b16 %v62
  %v184 = vunpack.c.l.b16 %v63
  %v185 = vpack.c.b16 %v140, %v137
  %v186 = vpack.c.b16 %v141, %v138
  %v187 = vpack.c.b16 %v142, %v139
  %v188 = vpack.c.b16 %v146, %v143
  %v189 = vpack.c.b16 %v147, %v144
  %v190 = vpack.c.b16 %v148, %v145
  %v191 = vpack.c.b16 %v152, %v149
  %v192 = vpack.c.b16 %v153, %v150
  %v193 = vpack.c.b16 %v154, %v151
  %v194 = vpack.c.b16 %v158, %v155
  %v195 = vpack.c.b16 %v159, %v156
  %v196 = vpack.c.b16 %v160, %v157
  %v197 = vpack.c.b16 %v164, %v161
  %v198 = vpack.c.b16 %v165, %v162
  %v199 = vpack.c.b16 %v166, %v163
  %v200 = vpack.c.b16 %v170, %v167
  %v201 = vpack.c.b16 %v171, %v168
  %v202 = vpack.c.b16 %v172, %v169
  %v203 = vpack.c.b16 %v176, %v173
  %v204 = vpack.c.b16 %v177, %v174
  %v205 = vpack.c.b16 %v178, %v175
  %v206 = vpack.c.b16 %v182, %v179
  %v207 = vpack.c.b16 %v183, %v180
  %v208 = vpack.c.b16 %v184, %v181
  %233 = vmatprep.subr.bf16.mxu0 %v207
  %234 = vmatpush1.bf16.msra.mxu0 %v206
  %235 = vmatprep.subr.bf16.mxu0 %v204
  %236 = vmatpush1.bf16.msra.mxu0 %v203
  %237 = vmatprep.subr.bf16.mxu0 %v201
  %238 = vmatpush1.bf16.msra.mxu0 %v200
  %239 = vmatprep.subr.bf16.mxu0 %v198
  %240 = vmatpush1.bf16.msra.mxu0 %v197
  %241 = vmatprep.subr.bf16.mxu0 %v195
  %242 = vmatpush1.bf16.msra.mxu0 %v194
  %243 = vmatprep.subr.bf16.mxu0 %v192
  %244 = vmatpush1.bf16.msra.mxu0 %v191
  %245 = vmatprep.subr.bf16.mxu0 %v189
  %246 = vmatpush1.bf16.msra.mxu0 %v188
  %247 = vmatprep.subr.bf16.mxu0 %v186
  %248 = vmatpush1.bf16.msra.mxu0 %v185
  %249 = vmatprep.subr.bf16.mxu0 0
  %250 = vmatpush2.bf16.msra.mxu0 0
  %251 = vmatprep.subr.bf16.mxu0 0
  %252 = vmatpush2.bf16.msra.mxu0 0
  %253 = vmatprep.subr.bf16.mxu0 0
  %254 = vmatpush2.bf16.msra.mxu0 0
  %255 = vmatprep.subr.bf16.mxu0 0
  %256 = vmatpush2.bf16.msra.mxu0 0
  %257 = vmatprep.subr.bf16.mxu0 0
  %258 = vmatpush2.bf16.msra.mxu0 0
  %259 = vmatprep.subr.bf16.mxu0 0
  %260 = vmatpush2.bf16.msra.mxu0 0
  %261 = vmatprep.subr.bf16.mxu0 0
  %262 = vmatpush2.bf16.msra.mxu0 0
  %263 = vmatprep.subr.bf16.mxu0 0
  %264 = vmatpush2.bf16.msra.mxu0 0
  %265 = vmatprep.mubr.bf16.mxu0 0
  %266 = vmatmul.mubr.bf16.gmra.mxu0 %v97
  %v267 = vpop.f32.mrf.mxu0
  %v268 = vadd.f32 %v69, %v267
  %v269 = vpop.f32.mrf.mxu0
  %v270 = vadd.f32 %v73, %v269
  %v271 = vpop.f32.mrf.mxu0
  %v272 = vadd.f32 %v69, %v271
  %v273 = vpop.f32.mrf.mxu0
  %v274 = vadd.f32 %v73, %v273
  %275 = vmatprep.mubr.bf16.mxu0 0
  %276 = vmatmul.mubr.bf16.gmra.mxu0 %v98
  %v277 = vpop.f32.mrf.mxu0
  %v278 = vadd.f32 %v69, %v277
  %v279 = vpop.f32.mrf.mxu0
  %v280 = vadd.f32 %v73, %v279
  %v281 = vpop.f32.mrf.mxu0
  %v282 = vadd.f32 %v69, %v281
  %v283 = vpop.f32.mrf.mxu0
  %v284 = vadd.f32 %v73, %v283
  %285 = vmatprep.mubr.bf16.mxu0 0
  %286 = vmatmul.mubr.bf16.gmra.mxu0 %v99
  %v287 = vpop.f32.mrf.mxu0
  %v288 = vadd.f32 %v69, %v287
  %v289 = vpop.f32.mrf.mxu0
  %v290 = vadd.f32 %v73, %v289
  %v291 = vpop.f32.mrf.mxu0
  %v292 = vadd.f32 %v69, %v291
  %v293 = vpop.f32.mrf.mxu0
  %v294 = vadd.f32 %v73, %v293
  %295 = vmatprep.mubr.bf16.mxu0 0
  %296 = vmatmul.mubr.bf16.gmra.mxu0 %v100
  %v297 = vpop.f32.mrf.mxu0
  %v298 = vadd.f32 %v69, %v297
  %v299 = vpop.f32.mrf.mxu0
  %v300 = vadd.f32 %v73, %v299
  %v301 = vpop.f32.mrf.mxu0
  %v302 = vadd.f32 %v69, %v301
  %v303 = vpop.f32.mrf.mxu0
  %v304 = vadd.f32 %v73, %v303
  %305 = vdwg.mxu0
  %306 = vmatprep.subr.bf16.mxu0 0
  %307 = vmatpush1.bf16.msra.mxu0 %v208
  %308 = vmatprep.subr.bf16.mxu0 0
  %309 = vmatpush1.bf16.msra.mxu0 %v205
  %310 = vmatprep.subr.bf16.mxu0 0
  %311 = vmatpush1.bf16.msra.mxu0 %v202
  %312 = vmatprep.subr.bf16.mxu0 0
  %313 = vmatpush1.bf16.msra.mxu0 %v199
  %314 = vmatprep.subr.bf16.mxu0 0
  %315 = vmatpush1.bf16.msra.mxu0 %v196
  %316 = vmatprep.subr.bf16.mxu0 0
  %317 = vmatpush1.bf16.msra.mxu0 %v193
  %318 = vmatprep.subr.bf16.mxu0 0
  %319 = vmatpush1.bf16.msra.mxu0 %v190
  %320 = vmatprep.subr.bf16.mxu0 0
  %321 = vmatpush1.bf16.msra.mxu0 %v187
  %322 = vmatprep.subr.bf16.mxu0 0
  %323 = vmatpush2.bf16.msra.mxu0 0
  %324 = vmatprep.subr.bf16.mxu0 0
  %325 = vmatpush2.bf16.msra.mxu0 0
  %326 = vmatprep.subr.bf16.mxu0 0
  %327 = vmatpush2.bf16.msra.mxu0 0
  %328 = vmatprep.subr.bf16.mxu0 0
  %329 = vmatpush2.bf16.msra.mxu0 0
  %330 = vmatprep.subr.bf16.mxu0 0
  %331 = vmatpush2.bf16.msra.mxu0 0
  %332 = vmatprep.subr.bf16.mxu0 0
  %333 = vmatpush2.bf16.msra.mxu0 0
  %334 = vmatprep.subr.bf16.mxu0 0
  %335 = vmatpush2.bf16.msra.mxu0 0
  %336 = vmatprep.subr.bf16.mxu0 0
  %337 = vmatpush2.bf16.msra.mxu0 0
  %338 = vmatprep.mubr.bf16.mxu0 0
  %339 = vmatmul.mubr.bf16.gmra.mxu0 %v97
  %v340 = vpop.f32.mrf.mxu0
  %v341 = vadd.f32 %v77, %v340
  %v342 = vpop.f32.mrf.mxu0
  %v343 = vpop.f32.mrf.mxu0
  %v344 = vadd.f32 %v77, %v343
  %v345 = vpop.f32.mrf.mxu0
  %346 = vmatprep.mubr.bf16.mxu0 0
  %347 = vmatmul.mubr.bf16.gmra.mxu0 %v98
  %v348 = vpop.f32.mrf.mxu0
  %v349 = vadd.f32 %v77, %v348
  %v350 = vpop.f32.mrf.mxu0
  %v351 = vpop.f32.mrf.mxu0
  %v352 = vadd.f32 %v77, %v351
  %v353 = vpop.f32.mrf.mxu0
  %354 = vmatprep.mubr.bf16.mxu0 0
  %355 = vmatmul.mubr.bf16.gmra.mxu0 %v99
  %v356 = vpop.f32.mrf.mxu0
  %v357 = vadd.f32 %v77, %v356
  %v358 = vpop.f32.mrf.mxu0
  %v359 = vpop.f32.mrf.mxu0
  %v360 = vadd.f32 %v77, %v359
  %v361 = vpop.f32.mrf.mxu0
  %362 = vmatprep.mubr.bf16.mxu0 0
  %363 = vmatmul.mubr.bf16.gmra.mxu0 %v100
  %v364 = vpop.f32.mrf.mxu0
  %v365 = vadd.f32 %v77, %v364
  %v366 = vpop.f32.mrf.mxu0
  %v367 = vpop.f32.mrf.mxu0
  %v368 = vadd.f32 %v77, %v367
  %v369 = vpop.f32.mrf.mxu0
  %370 = vdwg.mxu0
  %371 = vst [vmem:[#allocation2] sm:$0xff] %v268
  %372 = vst [vmem:[#allocation2 + $0x8] sm:$0xff] %v270
  %373 = vst [vmem:[#allocation2 + $0x10] sm:$0xff] %v341
  %374 = vst [vmem:[#allocation2 + $0x18] sm:$0xff] %v272
  %375 = vst [vmem:[#allocation2 + $0x20] sm:$0xff] %v274
  %376 = vst [vmem:[#allocation2 + $0x28] sm:$0xff] %v344
  %377 = vst [vmem:[#allocation2 + $0x30] sm:$0xff] %v278
  %378 = vst [vmem:[#allocation2 + $0x38] sm:$0xff] %v280
  %379 = vst [vmem:[#allocation2 + $0x40] sm:$0xff] %v349
  %380 = vst [vmem:[#allocation2 + $0x48] sm:$0xff] %v282
  %381 = vst [vmem:[#allocation2 + $0x50] sm:$0xff] %v284
  %382 = vst [vmem:[#allocation2 + $0x58] sm:$0xff] %v352
  %383 = vst [vmem:[#allocation2 + $0x60] sm:$0xff] %v288
  %384 = vst [vmem:[#allocation2 + $0x68] sm:$0xff] %v290
  %385 = vst [vmem:[#allocation2 + $0x70] sm:$0xff] %v357
  %386 = vst [vmem:[#allocation2 + $0x78] sm:$0xff] %v292
  %387 = vst [vmem:[#allocation2 + $0x80] sm:$0xff] %v294
  %388 = vst [vmem:[#allocation2 + $0x88] sm:$0xff] %v360
  %389 = vst [vmem:[#allocation2 + $0x90] sm:$0xff] %v298
  %390 = vst [vmem:[#allocation2 + $0x98] sm:$0xff] %v300
  %391 = vst [vmem:[#allocation2 + $0xa0] sm:$0xff] %v365
  %392 = vst [vmem:[#allocation2 + $0xa8] sm:$0xff] %v302
  %393 = vst [vmem:[#allocation2 + $0xb0] sm:$0xff] %v304
  %394 = vst [vmem:[#allocation2 + $0xb8] sm:$0xff] %v368
  %v395 = vld [vmem:[%s2] sm:$0xff]
  %v396 = vld [vmem:[%s2 + $0x8] sm:$0xf]
  %v397 = vld [vmem:[%s2 + $0xc] sm:$0xff]
  %v398 = vld [vmem:[%s2 + $0x14] sm:$0xf]
  %v399 = vld [vmem:[%s2 + $0x18] sm:$0xff]
  %v400 = vld [vmem:[%s2 + $0x20] sm:$0xf]
  %v401 = vld [vmem:[%s2 + $0x24] sm:$0xff]
  %v402 = vld [vmem:[%s2 + $0x2c] sm:$0xf]
  %v403 = vld [vmem:[%s2 + $0x30] sm:$0xff]
  %v404 = vld [vmem:[%s2 + $0x38] sm:$0xf]
  %v405 = vld [vmem:[%s2 + $0x3c] sm:$0xff]
  %v406 = vld [vmem:[%s2 + $0x44] sm:$0xf]
  %v407 = vld [vmem:[%s2 + $0x48] sm:$0xff]
  %v408 = vld [vmem:[%s2 + $0x50] sm:$0xf]
  %v409 = vld [vmem:[%s2 + $0x54] sm:$0xff]
  %v410 = vld [vmem:[%s2 + $0x5c] sm:$0xf]
  %v411 = vld [vmem:[%s2 + $0x60] sm:$0xff]
  %v412 = vld [vmem:[%s2 + $0x68] sm:$0xf]
  %v413 = vld [vmem:[%s2 + $0x6c] sm:$0xff]
  %v414 = vld [vmem:[%s2 + $0x74] sm:$0xf]
  %v415 = vld [vmem:[%s2 + $0x78] sm:$0xff]
  %v416 = vld [vmem:[%s2 + $0x80] sm:$0xf]
  %v417 = vld [vmem:[%s2 + $0x84] sm:$0xff]
  %v418 = vld [vmem:[%s2 + $0x8c] sm:$0xf]
  %v419 = vld [vmem:[%s2 + $0x90] sm:$0xff]
  %v420 = vld [vmem:[%s2 + $0x98] sm:$0xf]
  %v421 = vld [vmem:[%s2 + $0x9c] sm:$0xff]
  %v422 = vld [vmem:[%s2 + $0xa4] sm:$0xf]
  %v423 = vld [vmem:[%s2 + $0xa8] sm:$0xff]
  %v424 = vld [vmem:[%s2 + $0xb0] sm:$0xf]
  %v425 = vld [vmem:[%s2 + $0xb4] sm:$0xff]
  %v426 = vld [vmem:[%s2 + $0xbc] sm:$0xf]
  %v427 = vld [vmem:[%s4] sm:$0x1]
  %v428 = vld [vmem:[%s5] sm:$0xff]
  %v429 = vld [vmem:[#allocation2] sm:$0xff]
  %v430 = vld [vmem:[#allocation2 + $0x8] sm:$0xff]
  %v431 = vld [vmem:[#allocation2 + $0x10] sm:$0xff]
  %v432 = vpack.c.bf16 %v428, %v428
  %v465 = vunpack.c.l.b16 %v395
  %v466 = vunpack.c.h.b16 %v395
  %v467 = vunpack.c.l.b16 %v396
  %v468 = vunpack.c.l.b16 %v397
  %v469 = vunpack.c.h.b16 %v397
  %v470 = vunpack.c.l.b16 %v398
  %v471 = vunpack.c.l.b16 %v399
  %v472 = vunpack.c.h.b16 %v399
  %v473 = vunpack.c.l.b16 %v400
  %v474 = vunpack.c.l.b16 %v401
  %v475 = vunpack.c.h.b16 %v401
  %v476 = vunpack.c.l.b16 %v402
  %v477 = vunpack.c.l.b16 %v403
  %v478 = vunpack.c.h.b16 %v403
  %v479 = vunpack.c.l.b16 %v404
  %v480 = vunpack.c.l.b16 %v405
  %v481 = vunpack.c.h.b16 %v405
  %v482 = vunpack.c.l.b16 %v406
  %v483 = vunpack.c.l.b16 %v407
  %v484 = vunpack.c.h.b16 %v407
  %v485 = vunpack.c.l.b16 %v408
  %v486 = vunpack.c.l.b16 %v409
  %v487 = vunpack.c.h.b16 %v409
  %v488 = vunpack.c.l.b16 %v410
  %v489 = vunpack.c.l.b16 %v411
  %v490 = vunpack.c.h.b16 %v411
  %v491 = vunpack.c.l.b16 %v412
  %v492 = vunpack.c.l.b16 %v413
  %v493 = vunpack.c.h.b16 %v413
  %v494 = vunpack.c.l.b16 %v414
  %v495 = vunpack.c.l.b16 %v415
  %v496 = vunpack.c.h.b16 %v415
  %v497 = vunpack.c.l.b16 %v416
  %v498 = vunpack.c.l.b16 %v417
  %v499 = vunpack.c.h.b16 %v417
  %v500 = vunpack.c.l.b16 %v418
  %v501 = vunpack.c.l.b16 %v419
  %v502 = vunpack.c.h.b16 %v419
  %v503 = vunpack.c.l.b16 %v420
  %v504 = vunpack.c.l.b16 %v421
  %v505 = vunpack.c.h.b16 %v421
  %v506 = vunpack.c.l.b16 %v422
  %v507 = vunpack.c.l.b16 %v423
  %v508 = vunpack.c.h.b16 %v423
  %v509 = vunpack.c.l.b16 %v424
  %v510 = vunpack.c.l.b16 %v425
  %v511 = vunpack.c.h.b16 %v425
  %v512 = vunpack.c.l.b16 %v426
  %v513 = vpack.c.b16 %v468, %v465
  %v514 = vpack.c.b16 %v469, %v466
  %v515 = vpack.c.b16 %v470, %v467
  %v516 = vpack.c.b16 %v474, %v471
  %v517 = vpack.c.b16 %v475, %v472
  %v518 = vpack.c.b16 %v476, %v473
  %v519 = vpack.c.b16 %v480, %v477
  %v520 = vpack.c.b16 %v481, %v478
  %v521 = vpack.c.b16 %v482, %v479
  %v522 = vpack.c.b16 %v486, %v483
  %v523 = vpack.c.b16 %v487, %v484
  %v524 = vpack.c.b16 %v488, %v485
  %v525 = vpack.c.b16 %v492, %v489
  %v526 = vpack.c.b16 %v493, %v490
  %v527 = vpack.c.b16 %v494, %v491
  %v528 = vpack.c.b16 %v498, %v495
  %v529 = vpack.c.b16 %v499, %v496
  %v530 = vpack.c.b16 %v500, %v497
  %v531 = vpack.c.b16 %v504, %v501
  %v532 = vpack.c.b16 %v505, %v502
  %v533 = vpack.c.b16 %v506, %v503
  %v534 = vpack.c.b16 %v510, %v507
  %v535 = vpack.c.b16 %v511, %v508
  %v536 = vpack.c.b16 %v512, %v509
  %561 = vmatprep.subr.bf16.mxu0 %v535
  %562 = vmatpush1.bf16.msra.mxu0 %v534
  %563 = vmatprep.subr.bf16.mxu0 %v532
  %564 = vmatpush1.bf16.msra.mxu0 %v531
  %565 = vmatprep.subr.bf16.mxu0 %v529
  %566 = vmatpush1.bf16.msra.mxu0 %v528
  %567 = vmatprep.subr.bf16.mxu0 %v526
  %568 = vmatpush1.bf16.msra.mxu0 %v525
  %569 = vmatprep.subr.bf16.mxu0 %v523
  %570 = vmatpush1.bf16.msra.mxu0 %v522
  %571 = vmatprep.subr.bf16.mxu0 %v520
  %572 = vmatpush1.bf16.msra.mxu0 %v519
  %573 = vmatprep.subr.bf16.mxu0 %v517
  %574 = vmatpush1.bf16.msra.mxu0 %v516
  %575 = vmatprep.subr.bf16.mxu0 %v514
  %576 = vmatpush1.bf16.msra.mxu0 %v513
  %577 = vmatprep.subr.bf16.mxu0 0
  %578 = vmatpush2.bf16.msra.mxu0 0
  %579 = vmatprep.subr.bf16.mxu0 0
  %580 = vmatpush2.bf16.msra.mxu0 0
  %581 = vmatprep.subr.bf16.mxu0 0
  %582 = vmatpush2.bf16.msra.mxu0 0
  %583 = vmatprep.subr.bf16.mxu0 0
  %584 = vmatpush2.bf16.msra.mxu0 0
  %585 = vmatprep.subr.bf16.mxu0 0
  %586 = vmatpush2.bf16.msra.mxu0 0
  %587 = vmatprep.subr.bf16.mxu0 0
  %588 = vmatpush2.bf16.msra.mxu0 0
  %589 = vmatprep.subr.bf16.mxu0 0
  %590 = vmatpush2.bf16.msra.mxu0 0
  %591 = vmatprep.subr.bf16.mxu0 0
  %592 = vmatpush2.bf16.msra.mxu0 0
  %593 = vmatprep.mubr.bf16.mxu0 0
  %594 = vmatmul.mubr.bf16.gmra.mxu0 %v432
  %v595 = vpop.f32.mrf.mxu0
  %v596 = vadd.f32 0.0, %v595
  %v597 = vpop.f32.mrf.mxu0
  %v598 = vadd.f32 0.0, %v597
  %v599 = vpop.f32.mrf.mxu0
  %v600 = vpop.f32.mrf.mxu0
  %601 = vdwg.mxu0
  %602 = vmatprep.subr.bf16.mxu0 0
  %603 = vmatpush1.bf16.msra.mxu0 %v536
  %604 = vmatprep.subr.bf16.mxu0 0
  %605 = vmatpush1.bf16.msra.mxu0 %v533
  %606 = vmatprep.subr.bf16.mxu0 0
  %607 = vmatpush1.bf16.msra.mxu0 %v530
  %608 = vmatprep.subr.bf16.mxu0 0
  %609 = vmatpush1.bf16.msra.mxu0 %v527
  %610 = vmatprep.subr.bf16.mxu0 0
  %611 = vmatpush1.bf16.msra.mxu0 %v524
  %612 = vmatprep.subr.bf16.mxu0 0
  %613 = vmatpush1.bf16.msra.mxu0 %v521
  %614 = vmatprep.subr.bf16.mxu0 0
  %615 = vmatpush1.bf16.msra.mxu0 %v518
  %616 = vmatprep.subr.bf16.mxu0 0
  %617 = vmatpush1.bf16.msra.mxu0 %v515
  %618 = vmatprep.subr.bf16.mxu0 0
  %619 = vmatpush2.bf16.msra.mxu0 0
  %620 = vmatprep.subr.bf16.mxu0 0
  %621 = vmatpush2.bf16.msra.mxu0 0
  %622 = vmatprep.subr.bf16.mxu0 0
  %623 = vmatpush2.bf16.msra.mxu0 0
  %624 = vmatprep.subr.bf16.mxu0 0
  %625 = vmatpush2.bf16.msra.mxu0 0
  %626 = vmatprep.subr.bf16.mxu0 0
  %627 = vmatpush2.bf16.msra.mxu0 0
  %628 = vmatprep.subr.bf16.mxu0 0
  %629 = vmatpush2.bf16.msra.mxu0 0
  %630 = vmatprep.subr.bf16.mxu0 0
  %631 = vmatpush2.bf16.msra.mxu0 0
  %632 = vmatprep.subr.bf16.mxu0 0
  %633 = vmatpush2.bf16.msra.mxu0 0
  %634 = vmatprep.mubr.bf16.mxu0 0
  %635 = vmatmul.mubr.bf16.gmra.mxu0 %v432
  %v636 = vpop.f32.mrf.mxu0
  %v637 = vadd.f32 0.0, %v636
  %v638 = vpop.f32.mrf.mxu0
  %v639 = vpop.f32.mrf.mxu0
  %v640 = vpop.f32.mrf.mxu0
  %641 = vdwg.mxu0
  %v642 = vadd.f32 %v429, %v596
  %v643 = vxor.u32 %v642, 2147483648
  %v644 = vmul.f32 %v643, 1.442695
  %v645 = vpow.pop %v644
  %v646 = vadd.f32 %v645, 1.0
  %v647 = vrcp.pop %v646
  %v648 = vmul.f32 1.0, %v647
  %v649 = vadd.f32 %v430, %v598
  %v650 = vxor.u32 %v649, 2147483648
  %v651 = vmul.f32 %v650, 1.442695
  %v652 = vpow.pop %v651
  %v653 = vadd.f32 %v652, 1.0
  %v654 = vrcp.pop %v653
  %v655 = vmul.f32 1.0, %v654
  %v657 = vlaneseq
  %v658 = vshrl.u32 %v657, 7
  %v659 = vsub.s32 0, %v658
  %v660 = vrot.slane %v427, %v659
  %v662 = vadd.f32 %v637, %v660
  %v663 = vmul.f32 %v648, %v662
  %v664 = vadd.f32 %v431, %v663
  %v665 = vtanh.pop %v664
  %v666 = vsub.f32 1.0, %v655
  %v667 = vmul.f32 %v666, %v665
  %v668 = vmul.f32 %v655, %v428
  %v669 = vadd.f32 %v667, %v668
  %v670 = vld [vmem:[#allocation2 + $0x18] sm:$0xff]
  %v671 = vld [vmem:[#allocation2 + $0x20] sm:$0xff]
  %v672 = vld [vmem:[#allocation2 + $0x28] sm:$0xff]
  %v673 = vpack.c.bf16 %v669, %v669
  %674 = vmatprep.subr.bf16.mxu0 %v535
  %675 = vmatpush1.bf16.msra.mxu0 %v534
  %676 = vmatprep.subr.bf16.mxu0 %v532
  %677 = vmatpush1.bf16.msra.mxu0 %v531
  %678 = vmatprep.subr.bf16.mxu0 %v529
  %679 = vmatpush1.bf16.msra.mxu0 %v528
  %680 = vmatprep.subr.bf16.mxu0 %v526
  %681 = vmatpush1.bf16.msra.mxu0 %v525
  %682 = vmatprep.subr.bf16.mxu0 %v523
  %683 = vmatpush1.bf16.msra.mxu0 %v522
  %684 = vmatprep.subr.bf16.mxu0 %v520
  %685 = vmatpush1.bf16.msra.mxu0 %v519
  %686 = vmatprep.subr.bf16.mxu0 %v517
  %687 = vmatpush1.bf16.msra.mxu0 %v516
  %688 = vmatprep.subr.bf16.mxu0 %v514
  %689 = vmatpush1.bf16.msra.mxu0 %v513
  %690 = vmatprep.subr.bf16.mxu0 0
  %691 = vmatpush2.bf16.msra.mxu0 0
  %692 = vmatprep.subr.bf16.mxu0 0
  %693 = vmatpush2.bf16.msra.mxu0 0
  %694 = vmatprep.subr.bf16.mxu0 0
  %695 = vmatpush2.bf16.msra.mxu0 0
  %696 = vmatprep.subr.bf16.mxu0 0
  %697 = vmatpush2.bf16.msra.mxu0 0
  %698 = vmatprep.subr.bf16.mxu0 0
  %699 = vmatpush2.bf16.msra.mxu0 0
  %700 = vmatprep.subr.bf16.mxu0 0
  %701 = vmatpush2.bf16.msra.mxu0 0
  %702 = vmatprep.subr.bf16.mxu0 0
  %703 = vmatpush2.bf16.msra.mxu0 0
  %704 = vmatprep.subr.bf16.mxu0 0
  %705 = vmatpush2.bf16.msra.mxu0 0
  %706 = vmatprep.mubr.bf16.mxu0 0
  %707 = vmatmul.mubr.bf16.gmra.mxu0 %v673
  %v708 = vpop.f32.mrf.mxu0
  %v709 = vadd.f32 0.0, %v708
  %v710 = vpop.f32.mrf.mxu0
  %v711 = vadd.f32 0.0, %v710
  %v712 = vpop.f32.mrf.mxu0
  %v713 = vpop.f32.mrf.mxu0
  %714 = vdwg.mxu0
  %715 = vmatprep.subr.bf16.mxu0 0
  %716 = vmatpush1.bf16.msra.mxu0 %v536
  %717 = vmatprep.subr.bf16.mxu0 0
  %718 = vmatpush1.bf16.msra.mxu0 %v533
  %719 = vmatprep.subr.bf16.mxu0 0
  %720 = vmatpush1.bf16.msra.mxu0 %v530
  %721 = vmatprep.subr.bf16.mxu0 0
  %722 = vmatpush1.bf16.msra.mxu0 %v527
  %723 = vmatprep.subr.bf16.mxu0 0
  %724 = vmatpush1.bf16.msra.mxu0 %v524
  %725 = vmatprep.subr.bf16.mxu0 0
  %726 = vmatpush1.bf16.msra.mxu0 %v521
  %727 = vmatprep.subr.bf16.mxu0 0
  %728 = vmatpush1.bf16.msra.mxu0 %v518
  %729 = vmatprep.subr.bf16.mxu0 0
  %730 = vmatpush1.bf16.msra.mxu0 %v515
  %731 = vmatprep.subr.bf16.mxu0 0
  %732 = vmatpush2.bf16.msra.mxu0 0
  %733 = vmatprep.subr.bf16.mxu0 0
  %734 = vmatpush2.bf16.msra.mxu0 0
  %735 = vmatprep.subr.bf16.mxu0 0
  %736 = vmatpush2.bf16.msra.mxu0 0
  %737 = vmatprep.subr.bf16.mxu0 0
  %738 = vmatpush2.bf16.msra.mxu0 0
  %739 = vmatprep.subr.bf16.mxu0 0
  %740 = vmatpush2.bf16.msra.mxu0 0
  %741 = vmatprep.subr.bf16.mxu0 0
  %742 = vmatpush2.bf16.msra.mxu0 0
  %743 = vmatprep.subr.bf16.mxu0 0
  %744 = vmatpush2.bf16.msra.mxu0 0
  %745 = vmatprep.subr.bf16.mxu0 0
  %746 = vmatpush2.bf16.msra.mxu0 0
  %747 = vmatprep.mubr.bf16.mxu0 0
  %748 = vmatmul.mubr.bf16.gmra.mxu0 %v673
  %v749 = vpop.f32.mrf.mxu0
  %v750 = vadd.f32 0.0, %v749
  %v751 = vpop.f32.mrf.mxu0
  %v752 = vpop.f32.mrf.mxu0
  %v753 = vpop.f32.mrf.mxu0
  %754 = vdwg.mxu0
  %v755 = vadd.f32 %v670, %v709
  %v756 = vxor.u32 %v755, 2147483648
  %v757 = vmul.f32 %v756, 1.442695
  %v758 = vpow.pop %v757
  %v759 = vadd.f32 %v758, 1.0
  %v760 = vrcp.pop %v759
  %v761 = vmul.f32 1.0, %v760
  %v762 = vadd.f32 %v671, %v711
  %v763 = vxor.u32 %v762, 2147483648
  %v764 = vmul.f32 %v763, 1.442695
  %v765 = vpow.pop %v764
  %v766 = vadd.f32 %v765, 1.0
  %v767 = vrcp.pop %v766
  %v768 = vmul.f32 1.0, %v767
  %v769 = vadd.f32 %v750, %v660
  %v770 = vmul.f32 %v761, %v769
  %v771 = vadd.f32 %v672, %v770
  %v772 = vtanh.pop %v771
  %v773 = vsub.f32 1.0, %v768
  %v774 = vmul.f32 %v773, %v772
  %v775 = vmul.f32 %v768, %v669
  %v776 = vadd.f32 %v774, %v775
  %v777 = vld [vmem:[#allocation2 + $0x30] sm:$0xff]
  %v778 = vld [vmem:[#allocation2 + $0x38] sm:$0xff]
  %v779 = vld [vmem:[#allocation2 + $0x40] sm:$0xff]
  %v780 = vpack.c.bf16 %v776, %v776
  %781 = vmatprep.subr.bf16.mxu0 %v535
  %782 = vmatpush1.bf16.msra.mxu0 %v534
  %783 = vmatprep.subr.bf16.mxu0 %v532
  %784 = vmatpush1.bf16.msra.mxu0 %v531
  %785 = vmatprep.subr.bf16.mxu0 %v529
  %786 = vmatpush1.bf16.msra.mxu0 %v528
  %787 = vmatprep.subr.bf16.mxu0 %v526
  %788 = vmatpush1.bf16.msra.mxu0 %v525
  %789 = vmatprep.subr.bf16.mxu0 %v523
  %790 = vmatpush1.bf16.msra.mxu0 %v522
  %791 = vmatprep.subr.bf16.mxu0 %v520
  %792 = vmatpush1.bf16.msra.mxu0 %v519
  %793 = vmatprep.subr.bf16.mxu0 %v517
  %794 = vmatpush1.bf16.msra.mxu0 %v516
  %795 = vmatprep.subr.bf16.mxu0 %v514
  %796 = vmatpush1.bf16.msra.mxu0 %v513
  %797 = vmatprep.subr.bf16.mxu0 0
  %798 = vmatpush2.bf16.msra.mxu0 0
  %799 = vmatprep.subr.bf16.mxu0 0
  %800 = vmatpush2.bf16.msra.mxu0 0
  %801 = vmatprep.subr.bf16.mxu0 0
  %802 = vmatpush2.bf16.msra.mxu0 0
  %803 = vmatprep.subr.bf16.mxu0 0
  %804 = vmatpush2.bf16.msra.mxu0 0
  %805 = vmatprep.subr.bf16.mxu0 0
  %806 = vmatpush2.bf16.msra.mxu0 0
  %807 = vmatprep.subr.bf16.mxu0 0
  %808 = vmatpush2.bf16.msra.mxu0 0
  %809 = vmatprep.subr.bf16.mxu0 0
  %810 = vmatpush2.bf16.msra.mxu0 0
  %811 = vmatprep.subr.bf16.mxu0 0
  %812 = vmatpush2.bf16.msra.mxu0 0
  %813 = vmatprep.mubr.bf16.mxu0 0
  %814 = vmatmul.mubr.bf16.gmra.mxu0 %v780
  %v815 = vpop.f32.mrf.mxu0
  %v816 = vadd.f32 0.0, %v815
  %v817 = vpop.f32.mrf.mxu0
  %v818 = vadd.f32 0.0, %v817
  %v819 = vpop.f32.mrf.mxu0
  %v820 = vpop.f32.mrf.mxu0
  %821 = vdwg.mxu0
  %822 = vmatprep.subr.bf16.mxu0 0
  %823 = vmatpush1.bf16.msra.mxu0 %v536
  %824 = vmatprep.subr.bf16.mxu0 0
  %825 = vmatpush1.bf16.msra.mxu0 %v533
  %826 = vmatprep.subr.bf16.mxu0 0
  %827 = vmatpush1.bf16.msra.mxu0 %v530
  %828 = vmatprep.subr.bf16.mxu0 0
  %829 = vmatpush1.bf16.msra.mxu0 %v527
  %830 = vmatprep.subr.bf16.mxu0 0
  %831 = vmatpush1.bf16.msra.mxu0 %v524
  %832 = vmatprep.subr.bf16.mxu0 0
  %833 = vmatpush1.bf16.msra.mxu0 %v521
  %834 = vmatprep.subr.bf16.mxu0 0
  %835 = vmatpush1.bf16.msra.mxu0 %v518
  %836 = vmatprep.subr.bf16.mxu0 0
  %837 = vmatpush1.bf16.msra.mxu0 %v515
  %838 = vmatprep.subr.bf16.mxu0 0
  %839 = vmatpush2.bf16.msra.mxu0 0
  %840 = vmatprep.subr.bf16.mxu0 0
  %841 = vmatpush2.bf16.msra.mxu0 0
  %842 = vmatprep.subr.bf16.mxu0 0
  %843 = vmatpush2.bf16.msra.mxu0 0
  %844 = vmatprep.subr.bf16.mxu0 0
  %845 = vmatpush2.bf16.msra.mxu0 0
  %846 = vmatprep.subr.bf16.mxu0 0
  %847 = vmatpush2.bf16.msra.mxu0 0
  %848 = vmatprep.subr.bf16.mxu0 0
  %849 = vmatpush2.bf16.msra.mxu0 0
  %850 = vmatprep.subr.bf16.mxu0 0
  %851 = vmatpush2.bf16.msra.mxu0 0
  %852 = vmatprep.subr.bf16.mxu0 0
  %853 = vmatpush2.bf16.msra.mxu0 0
  %854 = vmatprep.mubr.bf16.mxu0 0
  %855 = vmatmul.mubr.bf16.gmra.mxu0 %v780
  %v856 = vpop.f32.mrf.mxu0
  %v857 = vadd.f32 0.0, %v856
  %v858 = vpop.f32.mrf.mxu0
  %v859 = vpop.f32.mrf.mxu0
  %v860 = vpop.f32.mrf.mxu0
  %861 = vdwg.mxu0
  %v862 = vadd.f32 %v777, %v816
  %v863 = vxor.u32 %v862, 2147483648
  %v864 = vmul.f32 %v863, 1.442695
  %v865 = vpow.pop %v864
  %v866 = vadd.f32 %v865, 1.0
  %v867 = vrcp.pop %v866
  %v868 = vmul.f32 1.0, %v867
  %v869 = vadd.f32 %v778, %v818
  %v870 = vxor.u32 %v869, 2147483648
  %v871 = vmul.f32 %v870, 1.442695
  %v872 = vpow.pop %v871
  %v873 = vadd.f32 %v872, 1.0
  %v874 = vrcp.pop %v873
  %v875 = vmul.f32 1.0, %v874
  %v876 = vadd.f32 %v857, %v660
  %v877 = vmul.f32 %v868, %v876
  %v878 = vadd.f32 %v779, %v877
  %v879 = vtanh.pop %v878
  %v880 = vsub.f32 1.0, %v875
  %v881 = vmul.f32 %v880, %v879
  %v882 = vmul.f32 %v875, %v776
  %v883 = vadd.f32 %v881, %v882
  %v884 = vld [vmem:[#allocation2 + $0x48] sm:$0xff]
  %v885 = vld [vmem:[#allocation2 + $0x50] sm:$0xff]
  %v886 = vld [vmem:[#allocation2 + $0x58] sm:$0xff]
  %v887 = vpack.c.bf16 %v883, %v883
  %888 = vmatprep.subr.bf16.mxu0 %v535
  %889 = vmatpush1.bf16.msra.mxu0 %v534
  %890 = vmatprep.subr.bf16.mxu0 %v532
  %891 = vmatpush1.bf16.msra.mxu0 %v531
  %892 = vmatprep.subr.bf16.mxu0 %v529
  %893 = vmatpush1.bf16.msra.mxu0 %v528
  %894 = vmatprep.subr.bf16.mxu0 %v526
  %895 = vmatpush1.bf16.msra.mxu0 %v525
  %896 = vmatprep.subr.bf16.mxu0 %v523
  %897 = vmatpush1.bf16.msra.mxu0 %v522
  %898 = vmatprep.subr.bf16.mxu0 %v520
  %899 = vmatpush1.bf16.msra.mxu0 %v519
  %900 = vmatprep.subr.bf16.mxu0 %v517
  %901 = vmatpush1.bf16.msra.mxu0 %v516
  %902 = vmatprep.subr.bf16.mxu0 %v514
  %903 = vmatpush1.bf16.msra.mxu0 %v513
  %904 = vmatprep.subr.bf16.mxu0 0
  %905 = vmatpush2.bf16.msra.mxu0 0
  %906 = vmatprep.subr.bf16.mxu0 0
  %907 = vmatpush2.bf16.msra.mxu0 0
  %908 = vmatprep.subr.bf16.mxu0 0
  %909 = vmatpush2.bf16.msra.mxu0 0
  %910 = vmatprep.subr.bf16.mxu0 0
  %911 = vmatpush2.bf16.msra.mxu0 0
  %912 = vmatprep.subr.bf16.mxu0 0
  %913 = vmatpush2.bf16.msra.mxu0 0
  %914 = vmatprep.subr.bf16.mxu0 0
  %915 = vmatpush2.bf16.msra.mxu0 0
  %916 = vmatprep.subr.bf16.mxu0 0
  %917 = vmatpush2.bf16.msra.mxu0 0
  %918 = vmatprep.subr.bf16.mxu0 0
  %919 = vmatpush2.bf16.msra.mxu0 0
  %920 = vmatprep.mubr.bf16.mxu0 0
  %921 = vmatmul.mubr.bf16.gmra.mxu0 %v887
  %v922 = vpop.f32.mrf.mxu0
  %v923 = vadd.f32 0.0, %v922
  %v924 = vpop.f32.mrf.mxu0
  %v925 = vadd.f32 0.0, %v924
  %v926 = vpop.f32.mrf.mxu0
  %v927 = vpop.f32.mrf.mxu0
  %928 = vdwg.mxu0
  %929 = vmatprep.subr.bf16.mxu0 0
  %930 = vmatpush1.bf16.msra.mxu0 %v536
  %931 = vmatprep.subr.bf16.mxu0 0
  %932 = vmatpush1.bf16.msra.mxu0 %v533
  %933 = vmatprep.subr.bf16.mxu0 0
  %934 = vmatpush1.bf16.msra.mxu0 %v530
  %935 = vmatprep.subr.bf16.mxu0 0
  %936 = vmatpush1.bf16.msra.mxu0 %v527
  %937 = vmatprep.subr.bf16.mxu0 0
  %938 = vmatpush1.bf16.msra.mxu0 %v524
  %939 = vmatprep.subr.bf16.mxu0 0
  %940 = vmatpush1.bf16.msra.mxu0 %v521
  %941 = vmatprep.subr.bf16.mxu0 0
  %942 = vmatpush1.bf16.msra.mxu0 %v518
  %943 = vmatprep.subr.bf16.mxu0 0
  %944 = vmatpush1.bf16.msra.mxu0 %v515
  %945 = vmatprep.subr.bf16.mxu0 0
  %946 = vmatpush2.bf16.msra.mxu0 0
  %947 = vmatprep.subr.bf16.mxu0 0
  %948 = vmatpush2.bf16.msra.mxu0 0
  %949 = vmatprep.subr.bf16.mxu0 0
  %950 = vmatpush2.bf16.msra.mxu0 0
  %951 = vmatprep.subr.bf16.mxu0 0
  %952 = vmatpush2.bf16.msra.mxu0 0
  %953 = vmatprep.subr.bf16.mxu0 0
  %954 = vmatpush2.bf16.msra.mxu0 0
  %955 = vmatprep.subr.bf16.mxu0 0
  %956 = vmatpush2.bf16.msra.mxu0 0
  %957 = vmatprep.subr.bf16.mxu0 0
  %958 = vmatpush2.bf16.msra.mxu0 0
  %959 = vmatprep.subr.bf16.mxu0 0
  %960 = vmatpush2.bf16.msra.mxu0 0
  %961 = vmatprep.mubr.bf16.mxu0 0
  %962 = vmatmul.mubr.bf16.gmra.mxu0 %v887
  %v963 = vpop.f32.mrf.mxu0
  %v964 = vadd.f32 0.0, %v963
  %v965 = vpop.f32.mrf.mxu0
  %v966 = vpop.f32.mrf.mxu0
  %v967 = vpop.f32.mrf.mxu0
  %968 = vdwg.mxu0
  %v969 = vadd.f32 %v884, %v923
  %v970 = vxor.u32 %v969, 2147483648
  %v971 = vmul.f32 %v970, 1.442695
  %v972 = vpow.pop %v971
  %v973 = vadd.f32 %v972, 1.0
  %v974 = vrcp.pop %v973
  %v975 = vmul.f32 1.0, %v974
  %v976 = vadd.f32 %v885, %v925
  %v977 = vxor.u32 %v976, 2147483648
  %v978 = vmul.f32 %v977, 1.442695
  %v979 = vpow.pop %v978
  %v980 = vadd.f32 %v979, 1.0
  %v981 = vrcp.pop %v980
  %v982 = vmul.f32 1.0, %v981
  %v983 = vadd.f32 %v964, %v660
  %v984 = vmul.f32 %v975, %v983
  %v985 = vadd.f32 %v886, %v984
  %v986 = vtanh.pop %v985
  %v987 = vsub.f32 1.0, %v982
  %v988 = vmul.f32 %v987, %v986
  %v989 = vmul.f32 %v982, %v883
  %v990 = vadd.f32 %v988, %v989
  %v991 = vld [vmem:[#allocation2 + $0x60] sm:$0xff]
  %v992 = vld [vmem:[#allocation2 + $0x68] sm:$0xff]
  %v993 = vld [vmem:[#allocation2 + $0x70] sm:$0xff]
  %v994 = vpack.c.bf16 %v990, %v990
  %995 = vmatprep.subr.bf16.mxu0 %v535
  %996 = vmatpush1.bf16.msra.mxu0 %v534
  %997 = vmatprep.subr.bf16.mxu0 %v532
  %998 = vmatpush1.bf16.msra.mxu0 %v531
  %999 = vmatprep.subr.bf16.mxu0 %v529
  %1000 = vmatpush1.bf16.msra.mxu0 %v528
  %1001 = vmatprep.subr.bf16.mxu0 %v526
  %1002 = vmatpush1.bf16.msra.mxu0 %v525
  %1003 = vmatprep.subr.bf16.mxu0 %v523
  %1004 = vmatpush1.bf16.msra.mxu0 %v522
  %1005 = vmatprep.subr.bf16.mxu0 %v520
  %1006 = vmatpush1.bf16.msra.mxu0 %v519
  %1007 = vmatprep.subr.bf16.mxu0 %v517
  %1008 = vmatpush1.bf16.msra.mxu0 %v516
  %1009 = vmatprep.subr.bf16.mxu0 %v514
  %1010 = vmatpush1.bf16.msra.mxu0 %v513
  %1011 = vmatprep.subr.bf16.mxu0 0
  %1012 = vmatpush2.bf16.msra.mxu0 0
  %1013 = vmatprep.subr.bf16.mxu0 0
  %1014 = vmatpush2.bf16.msra.mxu0 0
  %1015 = vmatprep.subr.bf16.mxu0 0
  %1016 = vmatpush2.bf16.msra.mxu0 0
  %1017 = vmatprep.subr.bf16.mxu0 0
  %1018 = vmatpush2.bf16.msra.mxu0 0
  %1019 = vmatprep.subr.bf16.mxu0 0
  %1020 = vmatpush2.bf16.msra.mxu0 0
  %1021 = vmatprep.subr.bf16.mxu0 0
  %1022 = vmatpush2.bf16.msra.mxu0 0
  %1023 = vmatprep.subr.bf16.mxu0 0
  %1024 = vmatpush2.bf16.msra.mxu0 0
  %1025 = vmatprep.subr.bf16.mxu0 0
  %1026 = vmatpush2.bf16.msra.mxu0 0
  %1027 = vmatprep.mubr.bf16.mxu0 0
  %1028 = vmatmul.mubr.bf16.gmra.mxu0 %v994
  %v1029 = vpop.f32.mrf.mxu0
  %v1030 = vadd.f32 0.0, %v1029
  %v1031 = vpop.f32.mrf.mxu0
  %v1032 = vadd.f32 0.0, %v1031
  %v1033 = vpop.f32.mrf.mxu0
  %v1034 = vpop.f32.mrf.mxu0
  %1035 = vdwg.mxu0
  %1036 = vmatprep.subr.bf16.mxu0 0
  %1037 = vmatpush1.bf16.msra.mxu0 %v536
  %1038 = vmatprep.subr.bf16.mxu0 0
  %1039 = vmatpush1.bf16.msra.mxu0 %v533
  %1040 = vmatprep.subr.bf16.mxu0 0
  %1041 = vmatpush1.bf16.msra.mxu0 %v530
  %1042 = vmatprep.subr.bf16.mxu0 0
  %1043 = vmatpush1.bf16.msra.mxu0 %v527
  %1044 = vmatprep.subr.bf16.mxu0 0
  %1045 = vmatpush1.bf16.msra.mxu0 %v524
  %1046 = vmatprep.subr.bf16.mxu0 0
  %1047 = vmatpush1.bf16.msra.mxu0 %v521
  %1048 = vmatprep.subr.bf16.mxu0 0
  %1049 = vmatpush1.bf16.msra.mxu0 %v518
  %1050 = vmatprep.subr.bf16.mxu0 0
  %1051 = vmatpush1.bf16.msra.mxu0 %v515
  %1052 = vmatprep.subr.bf16.mxu0 0
  %1053 = vmatpush2.bf16.msra.mxu0 0
  %1054 = vmatprep.subr.bf16.mxu0 0
  %1055 = vmatpush2.bf16.msra.mxu0 0
  %1056 = vmatprep.subr.bf16.mxu0 0
  %1057 = vmatpush2.bf16.msra.mxu0 0
  %1058 = vmatprep.subr.bf16.mxu0 0
  %1059 = vmatpush2.bf16.msra.mxu0 0
  %1060 = vmatprep.subr.bf16.mxu0 0
  %1061 = vmatpush2.bf16.msra.mxu0 0
  %1062 = vmatprep.subr.bf16.mxu0 0
  %1063 = vmatpush2.bf16.msra.mxu0 0
  %1064 = vmatprep.subr.bf16.mxu0 0
  %1065 = vmatpush2.bf16.msra.mxu0 0
  %1066 = vmatprep.subr.bf16.mxu0 0
  %1067 = vmatpush2.bf16.msra.mxu0 0
  %1068 = vmatprep.mubr.bf16.mxu0 0
  %1069 = vmatmul.mubr.bf16.gmra.mxu0 %v994
  %v1070 = vpop.f32.mrf.mxu0
  %v1071 = vadd.f32 0.0, %v1070
  %v1072 = vpop.f32.mrf.mxu0
  %v1073 = vpop.f32.mrf.mxu0
  %v1074 = vpop.f32.mrf.mxu0
  %1075 = vdwg.mxu0
  %v1076 = vadd.f32 %v991, %v1030
  %v1077 = vxor.u32 %v1076, 2147483648
  %v1078 = vmul.f32 %v1077, 1.442695
  %v1079 = vpow.pop %v1078
  %v1080 = vadd.f32 %v1079, 1.0
  %v1081 = vrcp.pop %v1080
  %v1082 = vmul.f32 1.0, %v1081
  %v1083 = vadd.f32 %v992, %v1032
  %v1084 = vxor.u32 %v1083, 2147483648
  %v1085 = vmul.f32 %v1084, 1.442695
  %v1086 = vpow.pop %v1085
  %v1087 = vadd.f32 %v1086, 1.0
  %v1088 = vrcp.pop %v1087
  %v1089 = vmul.f32 1.0, %v1088
  %v1090 = vadd.f32 %v1071, %v660
  %v1091 = vmul.f32 %v1082, %v1090
  %v1092 = vadd.f32 %v993, %v1091
  %v1093 = vtanh.pop %v1092
  %v1094 = vsub.f32 1.0, %v1089
  %v1095 = vmul.f32 %v1094, %v1093
  %v1096 = vmul.f32 %v1089, %v990
  %v1097 = vadd.f32 %v1095, %v1096
  %v1098 = vld [vmem:[#allocation2 + $0x78] sm:$0xff]
  %v1099 = vld [vmem:[#allocation2 + $0x80] sm:$0xff]
  %v1100 = vld [vmem:[#allocation2 + $0x88] sm:$0xff]
  %v1101 = vpack.c.bf16 %v1097, %v1097
  %1102 = vmatprep.subr.bf16.mxu0 %v535
  %1103 = vmatpush1.bf16.msra.mxu0 %v534
  %1104 = vmatprep.subr.bf16.mxu0 %v532
  %1105 = vmatpush1.bf16.msra.mxu0 %v531
  %1106 = vmatprep.subr.bf16.mxu0 %v529
  %1107 = vmatpush1.bf16.msra.mxu0 %v528
  %1108 = vmatprep.subr.bf16.mxu0 %v526
  %1109 = vmatpush1.bf16.msra.mxu0 %v525
  %1110 = vmatprep.subr.bf16.mxu0 %v523
  %1111 = vmatpush1.bf16.msra.mxu0 %v522
  %1112 = vmatprep.subr.bf16.mxu0 %v520
  %1113 = vmatpush1.bf16.msra.mxu0 %v519
  %1114 = vmatprep.subr.bf16.mxu0 %v517
  %1115 = vmatpush1.bf16.msra.mxu0 %v516
  %1116 = vmatprep.subr.bf16.mxu0 %v514
  %1117 = vmatpush1.bf16.msra.mxu0 %v513
  %1118 = vmatprep.subr.bf16.mxu0 0
  %1119 = vmatpush2.bf16.msra.mxu0 0
  %1120 = vmatprep.subr.bf16.mxu0 0
  %1121 = vmatpush2.bf16.msra.mxu0 0
  %1122 = vmatprep.subr.bf16.mxu0 0
  %1123 = vmatpush2.bf16.msra.mxu0 0
  %1124 = vmatprep.subr.bf16.mxu0 0
  %1125 = vmatpush2.bf16.msra.mxu0 0
  %1126 = vmatprep.subr.bf16.mxu0 0
  %1127 = vmatpush2.bf16.msra.mxu0 0
  %1128 = vmatprep.subr.bf16.mxu0 0
  %1129 = vmatpush2.bf16.msra.mxu0 0
  %1130 = vmatprep.subr.bf16.mxu0 0
  %1131 = vmatpush2.bf16.msra.mxu0 0
  %1132 = vmatprep.subr.bf16.mxu0 0
  %1133 = vmatpush2.bf16.msra.mxu0 0
  %1134 = vmatprep.mubr.bf16.mxu0 0
  %1135 = vmatmul.mubr.bf16.gmra.mxu0 %v1101
  %v1136 = vpop.f32.mrf.mxu0
  %v1137 = vadd.f32 0.0, %v1136
  %v1138 = vpop.f32.mrf.mxu0
  %v1139 = vadd.f32 0.0, %v1138
  %v1140 = vpop.f32.mrf.mxu0
  %v1141 = vpop.f32.mrf.mxu0
  %1142 = vdwg.mxu0
  %1143 = vmatprep.subr.bf16.mxu0 0
  %1144 = vmatpush1.bf16.msra.mxu0 %v536
  %1145 = vmatprep.subr.bf16.mxu0 0
  %1146 = vmatpush1.bf16.msra.mxu0 %v533
  %1147 = vmatprep.subr.bf16.mxu0 0
  %1148 = vmatpush1.bf16.msra.mxu0 %v530
  %1149 = vmatprep.subr.bf16.mxu0 0
  %1150 = vmatpush1.bf16.msra.mxu0 %v527
  %1151 = vmatprep.subr.bf16.mxu0 0
  %1152 = vmatpush1.bf16.msra.mxu0 %v524
  %1153 = vmatprep.subr.bf16.mxu0 0
  %1154 = vmatpush1.bf16.msra.mxu0 %v521
  %1155 = vmatprep.subr.bf16.mxu0 0
  %1156 = vmatpush1.bf16.msra.mxu0 %v518
  %1157 = vmatprep.subr.bf16.mxu0 0
  %1158 = vmatpush1.bf16.msra.mxu0 %v515
  %1159 = vmatprep.subr.bf16.mxu0 0
  %1160 = vmatpush2.bf16.msra.mxu0 0
  %1161 = vmatprep.subr.bf16.mxu0 0
  %1162 = vmatpush2.bf16.msra.mxu0 0
  %1163 = vmatprep.subr.bf16.mxu0 0
  %1164 = vmatpush2.bf16.msra.mxu0 0
  %1165 = vmatprep.subr.bf16.mxu0 0
  %1166 = vmatpush2.bf16.msra.mxu0 0
  %1167 = vmatprep.subr.bf16.mxu0 0
  %1168 = vmatpush2.bf16.msra.mxu0 0
  %1169 = vmatprep.subr.bf16.mxu0 0
  %1170 = vmatpush2.bf16.msra.mxu0 0
  %1171 = vmatprep.subr.bf16.mxu0 0
  %1172 = vmatpush2.bf16.msra.mxu0 0
  %1173 = vmatprep.subr.bf16.mxu0 0
  %1174 = vmatpush2.bf16.msra.mxu0 0
  %1175 = vmatprep.mubr.bf16.mxu0 0
  %1176 = vmatmul.mubr.bf16.gmra.mxu0 %v1101
  %v1177 = vpop.f32.mrf.mxu0
  %v1178 = vadd.f32 0.0, %v1177
  %v1179 = vpop.f32.mrf.mxu0
  %v1180 = vpop.f32.mrf.mxu0
  %v1181 = vpop.f32.mrf.mxu0
  %1182 = vdwg.mxu0
  %v1183 = vadd.f32 %v1098, %v1137
  %v1184 = vxor.u32 %v1183, 2147483648
  %v1185 = vmul.f32 %v1184, 1.442695
  %v1186 = vpow.pop %v1185
  %v1187 = vadd.f32 %v1186, 1.0
  %v1188 = vrcp.pop %v1187
  %v1189 = vmul.f32 1.0, %v1188
  %v1190 = vadd.f32 %v1099, %v1139
  %v1191 = vxor.u32 %v1190, 2147483648
  %v1192 = vmul.f32 %v1191, 1.442695
  %v1193 = vpow.pop %v1192
  %v1194 = vadd.f32 %v1193, 1.0
  %v1195 = vrcp.pop %v1194
  %v1196 = vmul.f32 1.0, %v1195
  %v1197 = vadd.f32 %v1178, %v660
  %v1198 = vmul.f32 %v1189, %v1197
  %v1199 = vadd.f32 %v1100, %v1198
  %v1200 = vtanh.pop %v1199
  %v1201 = vsub.f32 1.0, %v1196
  %v1202 = vmul.f32 %v1201, %v1200
  %v1203 = vmul.f32 %v1196, %v1097
  %v1204 = vadd.f32 %v1202, %v1203
  %v1205 = vld [vmem:[#allocation2 + $0x90] sm:$0xff]
  %v1206 = vld [vmem:[#allocation2 + $0x98] sm:$0xff]
  %v1207 = vld [vmem:[#allocation2 + $0xa0] sm:$0xff]
  %v1208 = vpack.c.bf16 %v1204, %v1204
  %1209 = vmatprep.subr.bf16.mxu0 %v535
  %1210 = vmatpush1.bf16.msra.mxu0 %v534
  %1211 = vmatprep.subr.bf16.mxu0 %v532
  %1212 = vmatpush1.bf16.msra.mxu0 %v531
  %1213 = vmatprep.subr.bf16.mxu0 %v529
  %1214 = vmatpush1.bf16.msra.mxu0 %v528
  %1215 = vmatprep.subr.bf16.mxu0 %v526
  %1216 = vmatpush1.bf16.msra.mxu0 %v525
  %1217 = vmatprep.subr.bf16.mxu0 %v523
  %1218 = vmatpush1.bf16.msra.mxu0 %v522
  %1219 = vmatprep.subr.bf16.mxu0 %v520
  %1220 = vmatpush1.bf16.msra.mxu0 %v519
  %1221 = vmatprep.subr.bf16.mxu0 %v517
  %1222 = vmatpush1.bf16.msra.mxu0 %v516
  %1223 = vmatprep.subr.bf16.mxu0 %v514
  %1224 = vmatpush1.bf16.msra.mxu0 %v513
  %1225 = vmatprep.subr.bf16.mxu0 0
  %1226 = vmatpush2.bf16.msra.mxu0 0
  %1227 = vmatprep.subr.bf16.mxu0 0
  %1228 = vmatpush2.bf16.msra.mxu0 0
  %1229 = vmatprep.subr.bf16.mxu0 0
  %1230 = vmatpush2.bf16.msra.mxu0 0
  %1231 = vmatprep.subr.bf16.mxu0 0
  %1232 = vmatpush2.bf16.msra.mxu0 0
  %1233 = vmatprep.subr.bf16.mxu0 0
  %1234 = vmatpush2.bf16.msra.mxu0 0
  %1235 = vmatprep.subr.bf16.mxu0 0
  %1236 = vmatpush2.bf16.msra.mxu0 0
  %1237 = vmatprep.subr.bf16.mxu0 0
  %1238 = vmatpush2.bf16.msra.mxu0 0
  %1239 = vmatprep.subr.bf16.mxu0 0
  %1240 = vmatpush2.bf16.msra.mxu0 0
  %1241 = vmatprep.mubr.bf16.mxu0 0
  %1242 = vmatmul.mubr.bf16.gmra.mxu0 %v1208
  %v1243 = vpop.f32.mrf.mxu0
  %v1244 = vadd.f32 0.0, %v1243
  %v1245 = vpop.f32.mrf.mxu0
  %v1246 = vadd.f32 0.0, %v1245
  %v1247 = vpop.f32.mrf.mxu0
  %v1248 = vpop.f32.mrf.mxu0
  %1249 = vdwg.mxu0
  %1250 = vmatprep.subr.bf16.mxu0 0
  %1251 = vmatpush1.bf16.msra.mxu0 %v536
  %1252 = vmatprep.subr.bf16.mxu0 0
  %1253 = vmatpush1.bf16.msra.mxu0 %v533
  %1254 = vmatprep.subr.bf16.mxu0 0
  %1255 = vmatpush1.bf16.msra.mxu0 %v530
  %1256 = vmatprep.subr.bf16.mxu0 0
  %1257 = vmatpush1.bf16.msra.mxu0 %v527
  %1258 = vmatprep.subr.bf16.mxu0 0
  %1259 = vmatpush1.bf16.msra.mxu0 %v524
  %1260 = vmatprep.subr.bf16.mxu0 0
  %1261 = vmatpush1.bf16.msra.mxu0 %v521
  %1262 = vmatprep.subr.bf16.mxu0 0
  %1263 = vmatpush1.bf16.msra.mxu0 %v518
  %1264 = vmatprep.subr.bf16.mxu0 0
  %1265 = vmatpush1.bf16.msra.mxu0 %v515
  %1266 = vmatprep.subr.bf16.mxu0 0
  %1267 = vmatpush2.bf16.msra.mxu0 0
  %1268 = vmatprep.subr.bf16.mxu0 0
  %1269 = vmatpush2.bf16.msra.mxu0 0
  %1270 = vmatprep.subr.bf16.mxu0 0
  %1271 = vmatpush2.bf16.msra.mxu0 0
  %1272 = vmatprep.subr.bf16.mxu0 0
  %1273 = vmatpush2.bf16.msra.mxu0 0
  %1274 = vmatprep.subr.bf16.mxu0 0
  %1275 = vmatpush2.bf16.msra.mxu0 0
  %1276 = vmatprep.subr.bf16.mxu0 0
  %1277 = vmatpush2.bf16.msra.mxu0 0
  %1278 = vmatprep.subr.bf16.mxu0 0
  %1279 = vmatpush2.bf16.msra.mxu0 0
  %1280 = vmatprep.subr.bf16.mxu0 0
  %1281 = vmatpush2.bf16.msra.mxu0 0
  %1282 = vmatprep.mubr.bf16.mxu0 0
  %1283 = vmatmul.mubr.bf16.gmra.mxu0 %v1208
  %v1284 = vpop.f32.mrf.mxu0
  %v1285 = vadd.f32 0.0, %v1284
  %v1286 = vpop.f32.mrf.mxu0
  %v1287 = vpop.f32.mrf.mxu0
  %v1288 = vpop.f32.mrf.mxu0
  %1289 = vdwg.mxu0
  %v1290 = vadd.f32 %v1205, %v1244
  %v1291 = vxor.u32 %v1290, 2147483648
  %v1292 = vmul.f32 %v1291, 1.442695
  %v1293 = vpow.pop %v1292
  %v1294 = vadd.f32 %v1293, 1.0
  %v1295 = vrcp.pop %v1294
  %v1296 = vmul.f32 1.0, %v1295
  %v1297 = vadd.f32 %v1206, %v1246
  %v1298 = vxor.u32 %v1297, 2147483648
  %v1299 = vmul.f32 %v1298, 1.442695
  %v1300 = vpow.pop %v1299
  %v1301 = vadd.f32 %v1300, 1.0
  %v1302 = vrcp.pop %v1301
  %v1303 = vmul.f32 1.0, %v1302
  %v1304 = vadd.f32 %v1285, %v660
  %v1305 = vmul.f32 %v1296, %v1304
  %v1306 = vadd.f32 %v1207, %v1305
  %v1307 = vtanh.pop %v1306
  %v1308 = vsub.f32 1.0, %v1303
  %v1309 = vmul.f32 %v1308, %v1307
  %v1310 = vmul.f32 %v1303, %v1204
  %v1311 = vadd.f32 %v1309, %v1310
  %v1312 = vld [vmem:[#allocation2 + $0xa8] sm:$0xff]
  %v1313 = vld [vmem:[#allocation2 + $0xb0] sm:$0xff]
  %v1314 = vld [vmem:[#allocation2 + $0xb8] sm:$0xff]
  %v1315 = vpack.c.bf16 %v1311, %v1311
  %1316 = vmatprep.subr.bf16.mxu0 %v535
  %1317 = vmatpush1.bf16.msra.mxu0 %v534
  %1318 = vmatprep.subr.bf16.mxu0 %v532
  %1319 = vmatpush1.bf16.msra.mxu0 %v531
  %1320 = vmatprep.subr.bf16.mxu0 %v529
  %1321 = vmatpush1.bf16.msra.mxu0 %v528
  %1322 = vmatprep.subr.bf16.mxu0 %v526
  %1323 = vmatpush1.bf16.msra.mxu0 %v525
  %1324 = vmatprep.subr.bf16.mxu0 %v523
  %1325 = vmatpush1.bf16.msra.mxu0 %v522
  %1326 = vmatprep.subr.bf16.mxu0 %v520
  %1327 = vmatpush1.bf16.msra.mxu0 %v519
  %1328 = vmatprep.subr.bf16.mxu0 %v517
  %1329 = vmatpush1.bf16.msra.mxu0 %v516
  %1330 = vmatprep.subr.bf16.mxu0 %v514
  %1331 = vmatpush1.bf16.msra.mxu0 %v513
  %1332 = vmatprep.subr.bf16.mxu0 0
  %1333 = vmatpush2.bf16.msra.mxu0 0
  %1334 = vmatprep.subr.bf16.mxu0 0
  %1335 = vmatpush2.bf16.msra.mxu0 0
  %1336 = vmatprep.subr.bf16.mxu0 0
  %1337 = vmatpush2.bf16.msra.mxu0 0
  %1338 = vmatprep.subr.bf16.mxu0 0
  %1339 = vmatpush2.bf16.msra.mxu0 0
  %1340 = vmatprep.subr.bf16.mxu0 0
  %1341 = vmatpush2.bf16.msra.mxu0 0
  %1342 = vmatprep.subr.bf16.mxu0 0
  %1343 = vmatpush2.bf16.msra.mxu0 0
  %1344 = vmatprep.subr.bf16.mxu0 0
  %1345 = vmatpush2.bf16.msra.mxu0 0
  %1346 = vmatprep.subr.bf16.mxu0 0
  %1347 = vmatpush2.bf16.msra.mxu0 0
  %1348 = vmatprep.mubr.bf16.mxu0 0
  %1349 = vmatmul.mubr.bf16.gmra.mxu0 %v1315
  %v1350 = vpop.f32.mrf.mxu0
  %v1351 = vadd.f32 0.0, %v1350
  %v1352 = vpop.f32.mrf.mxu0
  %v1353 = vadd.f32 0.0, %v1352
  %v1354 = vpop.f32.mrf.mxu0
  %v1355 = vpop.f32.mrf.mxu0
  %1356 = vdwg.mxu0
  %1357 = vmatprep.subr.bf16.mxu0 0
  %1358 = vmatpush1.bf16.msra.mxu0 %v536
  %1359 = vmatprep.subr.bf16.mxu0 0
  %1360 = vmatpush1.bf16.msra.mxu0 %v533
  %1361 = vmatprep.subr.bf16.mxu0 0
  %1362 = vmatpush1.bf16.msra.mxu0 %v530
  %1363 = vmatprep.subr.bf16.mxu0 0
  %1364 = vmatpush1.bf16.msra.mxu0 %v527
  %1365 = vmatprep.subr.bf16.mxu0 0
  %1366 = vmatpush1.bf16.msra.mxu0 %v524
  %1367 = vmatprep.subr.bf16.mxu0 0
  %1368 = vmatpush1.bf16.msra.mxu0 %v521
  %1369 = vmatprep.subr.bf16.mxu0 0
  %1370 = vmatpush1.bf16.msra.mxu0 %v518
  %1371 = vmatprep.subr.bf16.mxu0 0
  %1372 = vmatpush1.bf16.msra.mxu0 %v515
  %1373 = vmatprep.subr.bf16.mxu0 0
  %1374 = vmatpush2.bf16.msra.mxu0 0
  %1375 = vmatprep.subr.bf16.mxu0 0
  %1376 = vmatpush2.bf16.msra.mxu0 0
  %1377 = vmatprep.subr.bf16.mxu0 0
  %1378 = vmatpush2.bf16.msra.mxu0 0
  %1379 = vmatprep.subr.bf16.mxu0 0
  %1380 = vmatpush2.bf16.msra.mxu0 0
  %1381 = vmatprep.subr.bf16.mxu0 0
  %1382 = vmatpush2.bf16.msra.mxu0 0
  %1383 = vmatprep.subr.bf16.mxu0 0
  %1384 = vmatpush2.bf16.msra.mxu0 0
  %1385 = vmatprep.subr.bf16.mxu0 0
  %1386 = vmatpush2.bf16.msra.mxu0 0
  %1387 = vmatprep.subr.bf16.mxu0 0
  %1388 = vmatpush2.bf16.msra.mxu0 0
  %1389 = vmatprep.mubr.bf16.mxu0 0
  %1390 = vmatmul.mubr.bf16.gmra.mxu0 %v1315
  %v1391 = vpop.f32.mrf.mxu0
  %v1392 = vadd.f32 0.0, %v1391
  %v1393 = vpop.f32.mrf.mxu0
  %v1394 = vpop.f32.mrf.mxu0
  %v1395 = vpop.f32.mrf.mxu0
  %1396 = vdwg.mxu0
  %v1397 = vadd.f32 %v1312, %v1351
  %v1398 = vxor.u32 %v1397, 2147483648
  %v1399 = vmul.f32 %v1398, 1.442695
  %v1400 = vpow.pop %v1399
  %v1401 = vadd.f32 %v1400, 1.0
  %v1402 = vrcp.pop %v1401
  %v1403 = vmul.f32 1.0, %v1402
  %v1404 = vadd.f32 %v1313, %v1353
  %v1405 = vxor.u32 %v1404, 2147483648
  %v1406 = vmul.f32 %v1405, 1.442695
  %v1407 = vpow.pop %v1406
  %v1408 = vadd.f32 %v1407, 1.0
  %v1409 = vrcp.pop %v1408
  %v1410 = vmul.f32 1.0, %v1409
  %v1411 = vadd.f32 %v1392, %v660
  %v1412 = vmul.f32 %v1403, %v1411
  %v1413 = vadd.f32 %v1314, %v1412
  %v1414 = vtanh.pop %v1413
  %v1415 = vsub.f32 1.0, %v1410
  %v1416 = vmul.f32 %v1415, %v1414
  %v1417 = vmul.f32 %v1410, %v1311
  %v1418 = vadd.f32 %v1416, %v1417
  %1419 = vst [vmem:[%s6] sm:$0xff] %v1418
  // Predicated region
  $region26: #{seq2seq_forward.3} parent=0 // pred_check
    _
  $region27: #{seq2seq_forward.3} parent=0 // pred_check_branch
    %1421 = sbr.rel (0) target = $region29
  $region28: #{seq2seq_forward.3} parent=0 // pred_region
    _
  $region29: #{seq2seq_forward.3} parent=0 // pred_fallthru
    _
  // Predicated region
  $region30: #{seq2seq_forward.3} parent=0 // pred_check
    _
  $region31: #{seq2seq_forward.3} parent=0 // pred_check_branch
    %1423 = sbr.rel (0) target = $region33
  $region32: #{seq2seq_forward.3} parent=0 // pred_region
    _
  $region33: #{seq2seq_forward.3} parent=0 // pred_fallthru
    _

// kernel: seq2seq_forward.5
$region0: #{seq2seq_forward.5}
  #allocation0 [shape = 'u32[]', space=smem, size = 0x4, offset = 0x4, fixed_abs, tag = 'smem constant byte address 0x4 - core index']
  #allocation1 [shape = 'u32[144,128]{1,0:T(1,128)}', space=vmem, size = 0x12000, scoped, tag = 'internal scratch']
  #allocation2 [shape = 'f32[40,384]{1,0:T(8,128)}', space=vmem, size = 0xf000, scoped, tag = 'scratch operand']
  #allocation3 [shape = 'f32[40,128]{1,0:T(8,128)}', space=vmem, size = 0x5000, scoped, tag = 'scratch operand']
  %s0 = inlined_call_operand.vmem [shape: bf16[40,128], index: 0, kind: input, shape index: {}]
  %s1 = inlined_call_operand.vmem [shape: bf16[128,384], index: 1, kind: input, shape index: {}]
  %s2 = inlined_call_operand.vmem [shape: bf16[128,384], index: 2, kind: input, shape index: {}]
  %s3 = inlined_call_operand.vmem [shape: f32[1,384], index: 3, kind: input, shape index: {}]
  %s4 = inlined_call_operand.vmem [shape: f32[1,128], index: 4, kind: input, shape index: {}]
  %s5 = inlined_call_operand.vmem [shape: f32[8,128], index: 5, kind: input, shape index: {}]
  %s6 = inlined_call_operand.vmem [shape: bf16[128,128], index: 6, kind: input, shape index: {}]
  %s7 = inlined_call_operand.vmem [shape: f32[1,128], index: 7, kind: input, shape index: {}]
  %s8 = inlined_call_operand.vmem [shape: f32[40,128], index: 8, kind: output, shape index: {0}]
  %s9 = inlined_call_operand.hbm [shape: f32[8,128], index: 9, kind: output, shape index: {1}]
  %10 = xla_tuple %s8, %s9
  %s11 = sld [smem:[#allocation0]]
  $region50: #{seq2seq_forward.5} parent=0
    _
  %s13 = ssub.s32 1, %s11
  %s14 = scalar_select 0, %s13, %s11
  $region1: #{seq2seq_forward.5} parent=0
    #allocation4 [shape = 'u8[4096]{0}', space=vmem, size = 0x1000, scoped, tag = 'output window, operand 1, single buffered']
    #allocation5 [shape = 's32[1]{0}', space=sflag, size = 0x4, scoped, tag = 'scoped memory for seq2seq_forward.5']
    %15 = vsyncpa [#allocation5], 0
    // Predicated region
    $region2: #{seq2seq_forward.5} parent=1 // pred_check
      _
    $region3: #{seq2seq_forward.5} parent=1 // pred_check_branch
      %17 = sbr.rel (0) target = $region5
    $region4: #{seq2seq_forward.5} parent=1 // pred_region
      _
    $region5: #{seq2seq_forward.5} parent=1 // pred_fallthru
      _
    // Predicated region
    $region6: #{seq2seq_forward.5} parent=1 // pred_check
      _
    $region7: #{seq2seq_forward.5} parent=1 // pred_check_branch
      %19 = sbr.rel (0) target = $region9
    $region8: #{seq2seq_forward.5} parent=1 // pred_region
      _
    $region9: #{seq2seq_forward.5} parent=1 // pred_fallthru
      _
    // Predicated region
    $region10: #{seq2seq_forward.5} parent=1 // pred_check
      _
    $region11: #{seq2seq_forward.5} parent=1 // pred_check_branch
      %21 = sbr.rel (0) target = $region13
    $region12: #{seq2seq_forward.5} parent=1 // pred_region
      _
    $region13: #{seq2seq_forward.5} parent=1 // pred_fallthru
      _
    // Predicated region
    $region14: #{seq2seq_forward.5} parent=1 // pred_check
      _
    $region15: #{seq2seq_forward.5} parent=1 // pred_check_branch
      %23 = sbr.rel (0) target = $region17
    $region16: #{seq2seq_forward.5} parent=1 // pred_region
      _
    $region17: #{seq2seq_forward.5} parent=1 // pred_fallthru
      _
    // Predicated region
    $region18: #{seq2seq_forward.5} parent=1 // pred_check
      _
    $region19: #{seq2seq_forward.5} parent=1 // pred_check_branch
      %25 = sbr.rel (0) target = $region21
    $region20: #{seq2seq_forward.5} parent=1 // pred_region
      _
    $region21: #{seq2seq_forward.5} parent=1 // pred_fallthru
      _
    // Predicated region
    $region22: #{seq2seq_forward.5} parent=1 // pred_check
      _
    $region23: #{seq2seq_forward.5} parent=1 // pred_check_branch
      %27 = sbr.rel (0) target = $region25
    $region24: #{seq2seq_forward.5} parent=1 // pred_region
      _
    $region25: #{seq2seq_forward.5} parent=1 // pred_fallthru
      _
    // Predicated region
    $region26: #{seq2seq_forward.5} parent=1 // pred_check
      _
    $region27: #{seq2seq_forward.5} parent=1 // pred_check_branch
      %29 = sbr.rel (0) target = $region29
    $region28: #{seq2seq_forward.5} parent=1 // pred_region
      _
    $region29: #{seq2seq_forward.5} parent=1 // pred_fallthru
      _
    // Predicated region
    $region30: #{seq2seq_forward.5} parent=1 // pred_check
      _
    $region31: #{seq2seq_forward.5} parent=1 // pred_check_branch
      %31 = sbr.rel (0) target = $region33
    $region32: #{seq2seq_forward.5} parent=1 // pred_region
      _
    $region33: #{seq2seq_forward.5} parent=1 // pred_fallthru
      _
    %v33 = vld [vmem:[%s0] sm:$0xf]
    %v34 = vld [vmem:[%s0 + $0x4] sm:$0xf]
    %v35 = vld [vmem:[%s0 + $0x8] sm:$0xf]
    %v36 = vld [vmem:[%s0 + $0xc] sm:$0xf]
    %v37 = vld [vmem:[%s0 + $0x10] sm:$0xf]
    %v38 = vld [vmem:[%s1] sm:$0xff]
    %v39 = vld [vmem:[%s1 + $0x8] sm:$0xf]
    %v40 = vld [vmem:[%s1 + $0xc] sm:$0xff]
    %v41 = vld [vmem:[%s1 + $0x14] sm:$0xf]
    %v42 = vld [vmem:[%s1 + $0x18] sm:$0xff]
    %v43 = vld [vmem:[%s1 + $0x20] sm:$0xf]
    %v44 = vld [vmem:[%s1 + $0x24] sm:$0xff]
    %v45 = vld [vmem:[%s1 + $0x2c] sm:$0xf]
    %v46 = vld [vmem:[%s1 + $0x30] sm:$0xff]
    %v47 = vld [vmem:[%s1 + $0x38] sm:$0xf]
    %v48 = vld [vmem:[%s1 + $0x3c] sm:$0xff]
    %v49 = vld [vmem:[%s1 + $0x44] sm:$0xf]
    %v50 = vld [vmem:[%s1 + $0x48] sm:$0xff]
    %v51 = vld [vmem:[%s1 + $0x50] sm:$0xf]
    %v52 = vld [vmem:[%s1 + $0x54] sm:$0xff]
    %v53 = vld [vmem:[%s1 + $0x5c] sm:$0xf]
    %v54 = vld [vmem:[%s1 + $0x60] sm:$0xff]
    %v55 = vld [vmem:[%s1 + $0x68] sm:$0xf]
    %v56 = vld [vmem:[%s1 + $0x6c] sm:$0xff]
    %v57 = vld [vmem:[%s1 + $0x74] sm:$0xf]
    %v58 = vld [vmem:[%s1 + $0x78] sm:$0xff]
    %v59 = vld [vmem:[%s1 + $0x80] sm:$0xf]
    %v60 = vld [vmem:[%s1 + $0x84] sm:$0xff]
    %v61 = vld [vmem:[%s1 + $0x8c] sm:$0xf]
    %v62 = vld [vmem:[%s1 + $0x90] sm:$0xff]
    %v63 = vld [vmem:[%s1 + $0x98] sm:$0xf]
    %v64 = vld [vmem:[%s1 + $0x9c] sm:$0xff]
    %v65 = vld [vmem:[%s1 + $0xa4] sm:$0xf]
    %v66 = vld [vmem:[%s1 + $0xa8] sm:$0xff]
    %v67 = vld [vmem:[%s1 + $0xb0] sm:$0xf]
    %v68 = vld [vmem:[%s1 + $0xb4] sm:$0xff]
    %v69 = vld [vmem:[%s1 + $0xbc] sm:$0xf]
    %v70 = vld [vmem:[%s3] sm:$0x7]
    %v72 = vlaneseq
    %v73 = vshrl.u32 %v72, 7
    %v74 = vsub.s32 0, %v73
    %v75 = vrot.slane %v70, %v74
    %v76 = vlaneseq
    %v77 = vshrl.u32 %v76, 7
    %v78 = vsub.s32 1, %v77
    %v79 = vrot.slane %v70, %v78
    %v80 = vlaneseq
    %v81 = vshrl.u32 %v80, 7
    %v82 = vsub.s32 2, %v81
    %v83 = vrot.slane %v70, %v82
    %v92 = vunpack.c.l.b16 %v33
    %v93 = vunpack.c.l.b16 %v34
    %v94 = vunpack.c.l.b16 %v35
    %v95 = vunpack.c.l.b16 %v36
    %v96 = vunpack.c.l.b16 %v37
    %v97 = vpack.c.b16 %v93, %v92
    %v98 = vpack.c.b16 %v95, %v94
    %v99 = vpack.c.b16 %v96, %v96
    %v135 = vunpack.c.l.b16 %v38
    %v136 = vunpack.c.h.b16 %v38
    %v137 = vunpack.c.l.b16 %v39
    %v138 = vunpack.c.l.b16 %v40
    %v139 = vunpack.c.h.b16 %v40
    %v140 = vunpack.c.l.b16 %v41
    %v141 = vunpack.c.l.b16 %v42
    %v142 = vunpack.c.h.b16 %v42
    %v143 = vunpack.c.l.b16 %v43
    %v144 = vunpack.c.l.b16 %v44
    %v145 = vunpack.c.h.b16 %v44
    %v146 = vunpack.c.l.b16 %v45
    %v147 = vunpack.c.l.b16 %v46
    %v148 = vunpack.c.h.b16 %v46
    %v149 = vunpack.c.l.b16 %v47
    %v150 = vunpack.c.l.b16 %v48
    %v151 = vunpack.c.h.b16 %v48
    %v152 = vunpack.c.l.b16 %v49
    %v153 = vunpack.c.l.b16 %v50
    %v154 = vunpack.c.h.b16 %v50
    %v155 = vunpack.c.l.b16 %v51
    %v156 = vunpack.c.l.b16 %v52
    %v157 = vunpack.c.h.b16 %v52
    %v158 = vunpack.c.l.b16 %v53
    %v159 = vunpack.c.l.b16 %v54
    %v160 = vunpack.c.h.b16 %v54
    %v161 = vunpack.c.l.b16 %v55
    %v162 = vunpack.c.l.b16 %v56
    %v163 = vunpack.c.h.b16 %v56
    %v164 = vunpack.c.l.b16 %v57
    %v165 = vunpack.c.l.b16 %v58
    %v166 = vunpack.c.h.b16 %v58
    %v167 = vunpack.c.l.b16 %v59
    %v168 = vunpack.c.l.b16 %v60
    %v169 = vunpack.c.h.b16 %v60
    %v170 = vunpack.c.l.b16 %v61
    %v171 = vunpack.c.l.b16 %v62
    %v172 = vunpack.c.h.b16 %v62
    %v173 = vunpack.c.l.b16 %v63
    %v174 = vunpack.c.l.b16 %v64
    %v175 = vunpack.c.h.b16 %v64
    %v176 = vunpack.c.l.b16 %v65
    %v177 = vunpack.c.l.b16 %v66
    %v178 = vunpack.c.h.b16 %v66
    %v179 = vunpack.c.l.b16 %v67
    %v180 = vunpack.c.l.b16 %v68
    %v181 = vunpack.c.h.b16 %v68
    %v182 = vunpack.c.l.b16 %v69
    %v183 = vpack.c.b16 %v138, %v135
    %v184 = vpack.c.b16 %v139, %v136
    %v185 = vpack.c.b16 %v140, %v137
    %v186 = vpack.c.b16 %v144, %v141
    %v187 = vpack.c.b16 %v145, %v142
    %v188 = vpack.c.b16 %v146, %v143
    %v189 = vpack.c.b16 %v150, %v147
    %v190 = vpack.c.b16 %v151, %v148
    %v191 = vpack.c.b16 %v152, %v149
    %v192 = vpack.c.b16 %v156, %v153
    %v193 = vpack.c.b16 %v157, %v154
    %v194 = vpack.c.b16 %v158, %v155
    %v195 = vpack.c.b16 %v162, %v159
    %v196 = vpack.c.b16 %v163, %v160
    %v197 = vpack.c.b16 %v164, %v161
    %v198 = vpack.c.b16 %v168, %v165
    %v199 = vpack.c.b16 %v169, %v166
    %v200 = vpack.c.b16 %v170, %v167
    %v201 = vpack.c.b16 %v174, %v171
    %v202 = vpack.c.b16 %v175, %v172
    %v203 = vpack.c.b16 %v176, %v173
    %v204 = vpack.c.b16 %v180, %v177
    %v205 = vpack.c.b16 %v181, %v178
    %v206 = vpack.c.b16 %v182, %v179
    %231 = vmatprep.subr.bf16.mxu0 %v205
    %232 = vmatpush1.bf16.msra.mxu0 %v204
    %233 = vmatprep.subr.bf16.mxu0 %v202
    %234 = vmatpush1.bf16.msra.mxu0 %v201
    %235 = vmatprep.subr.bf16.mxu0 %v199
    %236 = vmatpush1.bf16.msra.mxu0 %v198
    %237 = vmatprep.subr.bf16.mxu0 %v196
    %238 = vmatpush1.bf16.msra.mxu0 %v195
    %239 = vmatprep.subr.bf16.mxu0 %v193
    %240 = vmatpush1.bf16.msra.mxu0 %v192
    %241 = vmatprep.subr.bf16.mxu0 %v190
    %242 = vmatpush1.bf16.msra.mxu0 %v189
    %243 = vmatprep.subr.bf16.mxu0 %v187
    %244 = vmatpush1.bf16.msra.mxu0 %v186
    %245 = vmatprep.subr.bf16.mxu0 %v184
    %246 = vmatpush1.bf16.msra.mxu0 %v183
    %247 = vmatprep.subr.bf16.mxu0 0
    %248 = vmatpush2.bf16.msra.mxu0 0
    %249 = vmatprep.subr.bf16.mxu0 0
    %250 = vmatpush2.bf16.msra.mxu0 0
    %251 = vmatprep.subr.bf16.mxu0 0
    %252 = vmatpush2.bf16.msra.mxu0 0
    %253 = vmatprep.subr.bf16.mxu0 0
    %254 = vmatpush2.bf16.msra.mxu0 0
    %255 = vmatprep.subr.bf16.mxu0 0
    %256 = vmatpush2.bf16.msra.mxu0 0
    %257 = vmatprep.subr.bf16.mxu0 0
    %258 = vmatpush2.bf16.msra.mxu0 0
    %259 = vmatprep.subr.bf16.mxu0 0
    %260 = vmatpush2.bf16.msra.mxu0 0
    %261 = vmatprep.subr.bf16.mxu0 0
    %262 = vmatpush2.bf16.msra.mxu0 0
    %263 = vmatprep.mubr.bf16.mxu0 0
    %264 = vmatmul.mubr.bf16.gmra.mxu0 %v97
    %v265 = vpop.f32.mrf.mxu0
    %v266 = vadd.f32 %v75, %v265
    %v267 = vpop.f32.mrf.mxu0
    %v268 = vadd.f32 %v79, %v267
    %v269 = vpop.f32.mrf.mxu0
    %v270 = vadd.f32 %v75, %v269
    %v271 = vpop.f32.mrf.mxu0
    %v272 = vadd.f32 %v79, %v271
    %273 = vmatprep.mubr.bf16.mxu0 0
    %274 = vmatmul.mubr.bf16.gmra.mxu0 %v98
    %v275 = vpop.f32.mrf.mxu0
    %v276 = vadd.f32 %v75, %v275
    %v277 = vpop.f32.mrf.mxu0
    %v278 = vadd.f32 %v79, %v277
    %v279 = vpop.f32.mrf.mxu0
    %v280 = vadd.f32 %v75, %v279
    %v281 = vpop.f32.mrf.mxu0
    %v282 = vadd.f32 %v79, %v281
    %283 = vmatprep.mubr.bf16.mxu0 0
    %284 = vmatmul.mubr.bf16.gmra.mxu0 %v99
    %v285 = vpop.f32.mrf.mxu0
    %v286 = vadd.f32 %v75, %v285
    %v287 = vpop.f32.mrf.mxu0
    %v288 = vadd.f32 %v79, %v287
    %v289 = vpop.f32.mrf.mxu0
    %v290 = vpop.f32.mrf.mxu0
    %291 = vdwg.mxu0
    %292 = vmatprep.subr.bf16.mxu0 0
    %293 = vmatpush1.bf16.msra.mxu0 %v206
    %294 = vmatprep.subr.bf16.mxu0 0
    %295 = vmatpush1.bf16.msra.mxu0 %v203
    %296 = vmatprep.subr.bf16.mxu0 0
    %297 = vmatpush1.bf16.msra.mxu0 %v200
    %298 = vmatprep.subr.bf16.mxu0 0
    %299 = vmatpush1.bf16.msra.mxu0 %v197
    %300 = vmatprep.subr.bf16.mxu0 0
    %301 = vmatpush1.bf16.msra.mxu0 %v194
    %302 = vmatprep.subr.bf16.mxu0 0
    %303 = vmatpush1.bf16.msra.mxu0 %v191
    %304 = vmatprep.subr.bf16.mxu0 0
    %305 = vmatpush1.bf16.msra.mxu0 %v188
    %306 = vmatprep.subr.bf16.mxu0 0
    %307 = vmatpush1.bf16.msra.mxu0 %v185
    %308 = vmatprep.subr.bf16.mxu0 0
    %309 = vmatpush2.bf16.msra.mxu0 0
    %310 = vmatprep.subr.bf16.mxu0 0
    %311 = vmatpush2.bf16.msra.mxu0 0
    %312 = vmatprep.subr.bf16.mxu0 0
    %313 = vmatpush2.bf16.msra.mxu0 0
    %314 = vmatprep.subr.bf16.mxu0 0
    %315 = vmatpush2.bf16.msra.mxu0 0
    %316 = vmatprep.subr.bf16.mxu0 0
    %317 = vmatpush2.bf16.msra.mxu0 0
    %318 = vmatprep.subr.bf16.mxu0 0
    %319 = vmatpush2.bf16.msra.mxu0 0
    %320 = vmatprep.subr.bf16.mxu0 0
    %321 = vmatpush2.bf16.msra.mxu0 0
    %322 = vmatprep.subr.bf16.mxu0 0
    %323 = vmatpush2.bf16.msra.mxu0 0
    %324 = vmatprep.mubr.bf16.mxu0 0
    %325 = vmatmul.mubr.bf16.gmra.mxu0 %v97
    %v326 = vpop.f32.mrf.mxu0
    %v327 = vadd.f32 %v83, %v326
    %v328 = vpop.f32.mrf.mxu0
    %v329 = vpop.f32.mrf.mxu0
    %v330 = vadd.f32 %v83, %v329
    %v331 = vpop.f32.mrf.mxu0
    %332 = vmatprep.mubr.bf16.mxu0 0
    %333 = vmatmul.mubr.bf16.gmra.mxu0 %v98
    %v334 = vpop.f32.mrf.mxu0
    %v335 = vadd.f32 %v83, %v334
    %v336 = vpop.f32.mrf.mxu0
    %v337 = vpop.f32.mrf.mxu0
    %v338 = vadd.f32 %v83, %v337
    %v339 = vpop.f32.mrf.mxu0
    %340 = vmatprep.mubr.bf16.mxu0 0
    %341 = vmatmul.mubr.bf16.gmra.mxu0 %v99
    %v342 = vpop.f32.mrf.mxu0
    %v343 = vadd.f32 %v83, %v342
    %v344 = vpop.f32.mrf.mxu0
    %v345 = vpop.f32.mrf.mxu0
    %v346 = vpop.f32.mrf.mxu0
    %347 = vdwg.mxu0
    %348 = vst [vmem:[#allocation2] sm:$0xff] %v266
    %349 = vst [vmem:[#allocation2 + $0x8] sm:$0xff] %v268
    %350 = vst [vmem:[#allocation2 + $0x10] sm:$0xff] %v327
    %351 = vst [vmem:[#allocation2 + $0x18] sm:$0xff] %v270
    %352 = vst [vmem:[#allocation2 + $0x20] sm:$0xff] %v272
    %353 = vst [vmem:[#allocation2 + $0x28] sm:$0xff] %v330
    %354 = vst [vmem:[#allocation2 + $0x30] sm:$0xff] %v276
    %355 = vst [vmem:[#allocation2 + $0x38] sm:$0xff] %v278
    %356 = vst [vmem:[#allocation2 + $0x40] sm:$0xff] %v335
    %357 = vst [vmem:[#allocation2 + $0x48] sm:$0xff] %v280
    %358 = vst [vmem:[#allocation2 + $0x50] sm:$0xff] %v282
    %359 = vst [vmem:[#allocation2 + $0x58] sm:$0xff] %v338
    %360 = vst [vmem:[#allocation2 + $0x60] sm:$0xff] %v286
    %361 = vst [vmem:[#allocation2 + $0x68] sm:$0xff] %v288
    %362 = vst [vmem:[#allocation2 + $0x70] sm:$0xff] %v343
    %v363 = vld [vmem:[%s2] sm:$0xff]
    %v364 = vld [vmem:[%s2 + $0x8] sm:$0xf]
    %v365 = vld [vmem:[%s2 + $0xc] sm:$0xff]
    %v366 = vld [vmem:[%s2 + $0x14] sm:$0xf]
    %v367 = vld [vmem:[%s2 + $0x18] sm:$0xff]
    %v368 = vld [vmem:[%s2 + $0x20] sm:$0xf]
    %v369 = vld [vmem:[%s2 + $0x24] sm:$0xff]
    %v370 = vld [vmem:[%s2 + $0x2c] sm:$0xf]
    %v371 = vld [vmem:[%s2 + $0x30] sm:$0xff]
    %v372 = vld [vmem:[%s2 + $0x38] sm:$0xf]
    %v373 = vld [vmem:[%s2 + $0x3c] sm:$0xff]
    %v374 = vld [vmem:[%s2 + $0x44] sm:$0xf]
    %v375 = vld [vmem:[%s2 + $0x48] sm:$0xff]
    %v376 = vld [vmem:[%s2 + $0x50] sm:$0xf]
    %v377 = vld [vmem:[%s2 + $0x54] sm:$0xff]
    %v378 = vld [vmem:[%s2 + $0x5c] sm:$0xf]
    %v379 = vld [vmem:[%s2 + $0x60] sm:$0xff]
    %v380 = vld [vmem:[%s2 + $0x68] sm:$0xf]
    %v381 = vld [vmem:[%s2 + $0x6c] sm:$0xff]
    %v382 = vld [vmem:[%s2 + $0x74] sm:$0xf]
    %v383 = vld [vmem:[%s2 + $0x78] sm:$0xff]
    %v384 = vld [vmem:[%s2 + $0x80] sm:$0xf]
    %v385 = vld [vmem:[%s2 + $0x84] sm:$0xff]
    %v386 = vld [vmem:[%s2 + $0x8c] sm:$0xf]
    %v387 = vld [vmem:[%s2 + $0x90] sm:$0xff]
    %v388 = vld [vmem:[%s2 + $0x98] sm:$0xf]
    %v389 = vld [vmem:[%s2 + $0x9c] sm:$0xff]
    %v390 = vld [vmem:[%s2 + $0xa4] sm:$0xf]
    %v391 = vld [vmem:[%s2 + $0xa8] sm:$0xff]
    %v392 = vld [vmem:[%s2 + $0xb0] sm:$0xf]
    %v393 = vld [vmem:[%s2 + $0xb4] sm:$0xff]
    %v394 = vld [vmem:[%s2 + $0xbc] sm:$0xf]
    %v395 = vld [vmem:[%s4] sm:$0x1]
    %v396 = vld [vmem:[%s5] sm:$0xff]
    %v397 = vld [vmem:[#allocation2] sm:$0xff]
    %v398 = vld [vmem:[#allocation2 + $0x8] sm:$0xff]
    %v399 = vld [vmem:[#allocation2 + $0x10] sm:$0xff]
    %v400 = vpack.c.bf16 %v396, %v396
    %v433 = vunpack.c.l.b16 %v363
    %v434 = vunpack.c.h.b16 %v363
    %v435 = vunpack.c.l.b16 %v364
    %v436 = vunpack.c.l.b16 %v365
    %v437 = vunpack.c.h.b16 %v365
    %v438 = vunpack.c.l.b16 %v366
    %v439 = vunpack.c.l.b16 %v367
    %v440 = vunpack.c.h.b16 %v367
    %v441 = vunpack.c.l.b16 %v368
    %v442 = vunpack.c.l.b16 %v369
    %v443 = vunpack.c.h.b16 %v369
    %v444 = vunpack.c.l.b16 %v370
    %v445 = vunpack.c.l.b16 %v371
    %v446 = vunpack.c.h.b16 %v371
    %v447 = vunpack.c.l.b16 %v372
    %v448 = vunpack.c.l.b16 %v373
    %v449 = vunpack.c.h.b16 %v373
    %v450 = vunpack.c.l.b16 %v374
    %v451 = vunpack.c.l.b16 %v375
    %v452 = vunpack.c.h.b16 %v375
    %v453 = vunpack.c.l.b16 %v376
    %v454 = vunpack.c.l.b16 %v377
    %v455 = vunpack.c.h.b16 %v377
    %v456 = vunpack.c.l.b16 %v378
    %v457 = vunpack.c.l.b16 %v379
    %v458 = vunpack.c.h.b16 %v379
    %v459 = vunpack.c.l.b16 %v380
    %v460 = vunpack.c.l.b16 %v381
    %v461 = vunpack.c.h.b16 %v381
    %v462 = vunpack.c.l.b16 %v382
    %v463 = vunpack.c.l.b16 %v383
    %v464 = vunpack.c.h.b16 %v383
    %v465 = vunpack.c.l.b16 %v384
    %v466 = vunpack.c.l.b16 %v385
    %v467 = vunpack.c.h.b16 %v385
    %v468 = vunpack.c.l.b16 %v386
    %v469 = vunpack.c.l.b16 %v387
    %v470 = vunpack.c.h.b16 %v387
    %v471 = vunpack.c.l.b16 %v388
    %v472 = vunpack.c.l.b16 %v389
    %v473 = vunpack.c.h.b16 %v389
    %v474 = vunpack.c.l.b16 %v390
    %v475 = vunpack.c.l.b16 %v391
    %v476 = vunpack.c.h.b16 %v391
    %v477 = vunpack.c.l.b16 %v392
    %v478 = vunpack.c.l.b16 %v393
    %v479 = vunpack.c.h.b16 %v393
    %v480 = vunpack.c.l.b16 %v394
    %v481 = vpack.c.b16 %v436, %v433
    %v482 = vpack.c.b16 %v437, %v434
    %v483 = vpack.c.b16 %v438, %v435
    %v484 = vpack.c.b16 %v442, %v439
    %v485 = vpack.c.b16 %v443, %v440
    %v486 = vpack.c.b16 %v444, %v441
    %v487 = vpack.c.b16 %v448, %v445
    %v488 = vpack.c.b16 %v449, %v446
    %v489 = vpack.c.b16 %v450, %v447
    %v490 = vpack.c.b16 %v454, %v451
    %v491 = vpack.c.b16 %v455, %v452
    %v492 = vpack.c.b16 %v456, %v453
    %v493 = vpack.c.b16 %v460, %v457
    %v494 = vpack.c.b16 %v461, %v458
    %v495 = vpack.c.b16 %v462, %v459
    %v496 = vpack.c.b16 %v466, %v463
    %v497 = vpack.c.b16 %v467, %v464
    %v498 = vpack.c.b16 %v468, %v465
    %v499 = vpack.c.b16 %v472, %v469
    %v500 = vpack.c.b16 %v473, %v470
    %v501 = vpack.c.b16 %v474, %v471
    %v502 = vpack.c.b16 %v478, %v475
    %v503 = vpack.c.b16 %v479, %v476
    %v504 = vpack.c.b16 %v480, %v477
    %529 = vmatprep.subr.bf16.mxu0 %v503
    %530 = vmatpush1.bf16.msra.mxu0 %v502
    %531 = vmatprep.subr.bf16.mxu0 %v500
    %532 = vmatpush1.bf16.msra.mxu0 %v499
    %533 = vmatprep.subr.bf16.mxu0 %v497
    %534 = vmatpush1.bf16.msra.mxu0 %v496
    %535 = vmatprep.subr.bf16.mxu0 %v494
    %536 = vmatpush1.bf16.msra.mxu0 %v493
    %537 = vmatprep.subr.bf16.mxu0 %v491
    %538 = vmatpush1.bf16.msra.mxu0 %v490
    %539 = vmatprep.subr.bf16.mxu0 %v488
    %540 = vmatpush1.bf16.msra.mxu0 %v487
    %541 = vmatprep.subr.bf16.mxu0 %v485
    %542 = vmatpush1.bf16.msra.mxu0 %v484
    %543 = vmatprep.subr.bf16.mxu0 %v482
    %544 = vmatpush1.bf16.msra.mxu0 %v481
    %545 = vmatprep.subr.bf16.mxu0 0
    %546 = vmatpush2.bf16.msra.mxu0 0
    %547 = vmatprep.subr.bf16.mxu0 0
    %548 = vmatpush2.bf16.msra.mxu0 0
    %549 = vmatprep.subr.bf16.mxu0 0
    %550 = vmatpush2.bf16.msra.mxu0 0
    %551 = vmatprep.subr.bf16.mxu0 0
    %552 = vmatpush2.bf16.msra.mxu0 0
    %553 = vmatprep.subr.bf16.mxu0 0
    %554 = vmatpush2.bf16.msra.mxu0 0
    %555 = vmatprep.subr.bf16.mxu0 0
    %556 = vmatpush2.bf16.msra.mxu0 0
    %557 = vmatprep.subr.bf16.mxu0 0
    %558 = vmatpush2.bf16.msra.mxu0 0
    %559 = vmatprep.subr.bf16.mxu0 0
    %560 = vmatpush2.bf16.msra.mxu0 0
    %561 = vmatprep.mubr.bf16.mxu0 0
    %562 = vmatmul.mubr.bf16.gmra.mxu0 %v400
    %v563 = vpop.f32.mrf.mxu0
    %v564 = vadd.f32 0.0, %v563
    %v565 = vpop.f32.mrf.mxu0
    %v566 = vadd.f32 0.0, %v565
    %v567 = vpop.f32.mrf.mxu0
    %v568 = vpop.f32.mrf.mxu0
    %569 = vdwg.mxu0
    %570 = vmatprep.subr.bf16.mxu0 0
    %571 = vmatpush1.bf16.msra.mxu0 %v504
    %572 = vmatprep.subr.bf16.mxu0 0
    %573 = vmatpush1.bf16.msra.mxu0 %v501
    %574 = vmatprep.subr.bf16.mxu0 0
    %575 = vmatpush1.bf16.msra.mxu0 %v498
    %576 = vmatprep.subr.bf16.mxu0 0
    %577 = vmatpush1.bf16.msra.mxu0 %v495
    %578 = vmatprep.subr.bf16.mxu0 0
    %579 = vmatpush1.bf16.msra.mxu0 %v492
    %580 = vmatprep.subr.bf16.mxu0 0
    %581 = vmatpush1.bf16.msra.mxu0 %v489
    %582 = vmatprep.subr.bf16.mxu0 0
    %583 = vmatpush1.bf16.msra.mxu0 %v486
    %584 = vmatprep.subr.bf16.mxu0 0
    %585 = vmatpush1.bf16.msra.mxu0 %v483
    %586 = vmatprep.subr.bf16.mxu0 0
    %587 = vmatpush2.bf16.msra.mxu0 0
    %588 = vmatprep.subr.bf16.mxu0 0
    %589 = vmatpush2.bf16.msra.mxu0 0
    %590 = vmatprep.subr.bf16.mxu0 0
    %591 = vmatpush2.bf16.msra.mxu0 0
    %592 = vmatprep.subr.bf16.mxu0 0
    %593 = vmatpush2.bf16.msra.mxu0 0
    %594 = vmatprep.subr.bf16.mxu0 0
    %595 = vmatpush2.bf16.msra.mxu0 0
    %596 = vmatprep.subr.bf16.mxu0 0
    %597 = vmatpush2.bf16.msra.mxu0 0
    %598 = vmatprep.subr.bf16.mxu0 0
    %599 = vmatpush2.bf16.msra.mxu0 0
    %600 = vmatprep.subr.bf16.mxu0 0
    %601 = vmatpush2.bf16.msra.mxu0 0
    %602 = vmatprep.mubr.bf16.mxu0 0
    %603 = vmatmul.mubr.bf16.gmra.mxu0 %v400
    %v604 = vpop.f32.mrf.mxu0
    %v605 = vadd.f32 0.0, %v604
    %v606 = vpop.f32.mrf.mxu0
    %v607 = vpop.f32.mrf.mxu0
    %v608 = vpop.f32.mrf.mxu0
    %609 = vdwg.mxu0
    %v610 = vadd.f32 %v397, %v564
    %v611 = vxor.u32 %v610, 2147483648
    %v612 = vmul.f32 %v611, 1.442695
    %v613 = vpow.pop %v612
    %v614 = vadd.f32 %v613, 1.0
    %v615 = vrcp.pop %v614
    %v616 = vmul.f32 1.0, %v615
    %v617 = vadd.f32 %v398, %v566
    %v618 = vxor.u32 %v617, 2147483648
    %v619 = vmul.f32 %v618, 1.442695
    %v620 = vpow.pop %v619
    %v621 = vadd.f32 %v620, 1.0
    %v622 = vrcp.pop %v621
    %v623 = vmul.f32 1.0, %v622
    %v625 = vlaneseq
    %v626 = vshrl.u32 %v625, 7
    %v627 = vsub.s32 0, %v626
    %v628 = vrot.slane %v395, %v627
    %v630 = vadd.f32 %v605, %v628
    %v631 = vmul.f32 %v616, %v630
    %v632 = vadd.f32 %v399, %v631
    %v633 = vtanh.pop %v632
    %v634 = vsub.f32 1.0, %v623
    %v635 = vmul.f32 %v634, %v633
    %v636 = vmul.f32 %v623, %v396
    %v637 = vadd.f32 %v635, %v636
    %638 = vst [vmem:[#allocation3] sm:$0xff] %v637
    %v639 = vld [vmem:[#allocation2 + $0x18] sm:$0xff]
    %v640 = vld [vmem:[#allocation2 + $0x20] sm:$0xff]
    %v641 = vld [vmem:[#allocation2 + $0x28] sm:$0xff]
    %v642 = vpack.c.bf16 %v637, %v637
    %643 = vmatprep.subr.bf16.mxu0 %v503
    %644 = vmatpush1.bf16.msra.mxu0 %v502
    %645 = vmatprep.subr.bf16.mxu0 %v500
    %646 = vmatpush1.bf16.msra.mxu0 %v499
    %647 = vmatprep.subr.bf16.mxu0 %v497
    %648 = vmatpush1.bf16.msra.mxu0 %v496
    %649 = vmatprep.subr.bf16.mxu0 %v494
    %650 = vmatpush1.bf16.msra.mxu0 %v493
    %651 = vmatprep.subr.bf16.mxu0 %v491
    %652 = vmatpush1.bf16.msra.mxu0 %v490
    %653 = vmatprep.subr.bf16.mxu0 %v488
    %654 = vmatpush1.bf16.msra.mxu0 %v487
    %655 = vmatprep.subr.bf16.mxu0 %v485
    %656 = vmatpush1.bf16.msra.mxu0 %v484
    %657 = vmatprep.subr.bf16.mxu0 %v482
    %658 = vmatpush1.bf16.msra.mxu0 %v481
    %659 = vmatprep.subr.bf16.mxu0 0
    %660 = vmatpush2.bf16.msra.mxu0 0
    %661 = vmatprep.subr.bf16.mxu0 0
    %662 = vmatpush2.bf16.msra.mxu0 0
    %663 = vmatprep.subr.bf16.mxu0 0
    %664 = vmatpush2.bf16.msra.mxu0 0
    %665 = vmatprep.subr.bf16.mxu0 0
    %666 = vmatpush2.bf16.msra.mxu0 0
    %667 = vmatprep.subr.bf16.mxu0 0
    %668 = vmatpush2.bf16.msra.mxu0 0
    %669 = vmatprep.subr.bf16.mxu0 0
    %670 = vmatpush2.bf16.msra.mxu0 0
    %671 = vmatprep.subr.bf16.mxu0 0
    %672 = vmatpush2.bf16.msra.mxu0 0
    %673 = vmatprep.subr.bf16.mxu0 0
    %674 = vmatpush2.bf16.msra.mxu0 0
    %675 = vmatprep.mubr.bf16.mxu0 0
    %676 = vmatmul.mubr.bf16.gmra.mxu0 %v642
    %v677 = vpop.f32.mrf.mxu0
    %v678 = vadd.f32 0.0, %v677
    %v679 = vpop.f32.mrf.mxu0
    %v680 = vadd.f32 0.0, %v679
    %v681 = vpop.f32.mrf.mxu0
    %v682 = vpop.f32.mrf.mxu0
    %683 = vdwg.mxu0
    %684 = vmatprep.subr.bf16.mxu0 0
    %685 = vmatpush1.bf16.msra.mxu0 %v504
    %686 = vmatprep.subr.bf16.mxu0 0
    %687 = vmatpush1.bf16.msra.mxu0 %v501
    %688 = vmatprep.subr.bf16.mxu0 0
    %689 = vmatpush1.bf16.msra.mxu0 %v498
    %690 = vmatprep.subr.bf16.mxu0 0
    %691 = vmatpush1.bf16.msra.mxu0 %v495
    %692 = vmatprep.subr.bf16.mxu0 0
    %693 = vmatpush1.bf16.msra.mxu0 %v492
    %694 = vmatprep.subr.bf16.mxu0 0
    %695 = vmatpush1.bf16.msra.mxu0 %v489
    %696 = vmatprep.subr.bf16.mxu0 0
    %697 = vmatpush1.bf16.msra.mxu0 %v486
    %698 = vmatprep.subr.bf16.mxu0 0
    %699 = vmatpush1.bf16.msra.mxu0 %v483
    %700 = vmatprep.subr.bf16.mxu0 0
    %701 = vmatpush2.bf16.msra.mxu0 0
    %702 = vmatprep.subr.bf16.mxu0 0
    %703 = vmatpush2.bf16.msra.mxu0 0
    %704 = vmatprep.subr.bf16.mxu0 0
    %705 = vmatpush2.bf16.msra.mxu0 0
    %706 = vmatprep.subr.bf16.mxu0 0
    %707 = vmatpush2.bf16.msra.mxu0 0
    %708 = vmatprep.subr.bf16.mxu0 0
    %709 = vmatpush2.bf16.msra.mxu0 0
    %710 = vmatprep.subr.bf16.mxu0 0
    %711 = vmatpush2.bf16.msra.mxu0 0
    %712 = vmatprep.subr.bf16.mxu0 0
    %713 = vmatpush2.bf16.msra.mxu0 0
    %714 = vmatprep.subr.bf16.mxu0 0
    %715 = vmatpush2.bf16.msra.mxu0 0
    %716 = vmatprep.mubr.bf16.mxu0 0
    %717 = vmatmul.mubr.bf16.gmra.mxu0 %v642
    %v718 = vpop.f32.mrf.mxu0
    %v719 = vadd.f32 0.0, %v718
    %v720 = vpop.f32.mrf.mxu0
    %v721 = vpop.f32.mrf.mxu0
    %v722 = vpop.f32.mrf.mxu0
    %723 = vdwg.mxu0
    %v724 = vadd.f32 %v639, %v678
    %v725 = vxor.u32 %v724, 2147483648
    %v726 = vmul.f32 %v725, 1.442695
    %v727 = vpow.pop %v726
    %v728 = vadd.f32 %v727, 1.0
    %v729 = vrcp.pop %v728
    %v730 = vmul.f32 1.0, %v729
    %v731 = vadd.f32 %v640, %v680
    %v732 = vxor.u32 %v731, 2147483648
    %v733 = vmul.f32 %v732, 1.442695
    %v734 = vpow.pop %v733
    %v735 = vadd.f32 %v734, 1.0
    %v736 = vrcp.pop %v735
    %v737 = vmul.f32 1.0, %v736
    %v738 = vadd.f32 %v719, %v628
    %v739 = vmul.f32 %v730, %v738
    %v740 = vadd.f32 %v641, %v739
    %v741 = vtanh.pop %v740
    %v742 = vsub.f32 1.0, %v737
    %v743 = vmul.f32 %v742, %v741
    %v744 = vmul.f32 %v737, %v637
    %v745 = vadd.f32 %v743, %v744
    %746 = vst [vmem:[#allocation3 + $0x8] sm:$0xff] %v745
    %v747 = vld [vmem:[#allocation2 + $0x30] sm:$0xff]
    %v748 = vld [vmem:[#allocation2 + $0x38] sm:$0xff]
    %v749 = vld [vmem:[#allocation2 + $0x40] sm:$0xff]
    %v750 = vpack.c.bf16 %v745, %v745
    %751 = vmatprep.subr.bf16.mxu0 %v503
    %752 = vmatpush1.bf16.msra.mxu0 %v502
    %753 = vmatprep.subr.bf16.mxu0 %v500
    %754 = vmatpush1.bf16.msra.mxu0 %v499
    %755 = vmatprep.subr.bf16.mxu0 %v497
    %756 = vmatpush1.bf16.msra.mxu0 %v496
    %757 = vmatprep.subr.bf16.mxu0 %v494
    %758 = vmatpush1.bf16.msra.mxu0 %v493
    %759 = vmatprep.subr.bf16.mxu0 %v491
    %760 = vmatpush1.bf16.msra.mxu0 %v490
    %761 = vmatprep.subr.bf16.mxu0 %v488
    %762 = vmatpush1.bf16.msra.mxu0 %v487
    %763 = vmatprep.subr.bf16.mxu0 %v485
    %764 = vmatpush1.bf16.msra.mxu0 %v484
    %765 = vmatprep.subr.bf16.mxu0 %v482
    %766 = vmatpush1.bf16.msra.mxu0 %v481
    %767 = vmatprep.subr.bf16.mxu0 0
    %768 = vmatpush2.bf16.msra.mxu0 0
    %769 = vmatprep.subr.bf16.mxu0 0
    %770 = vmatpush2.bf16.msra.mxu0 0
    %771 = vmatprep.subr.bf16.mxu0 0
    %772 = vmatpush2.bf16.msra.mxu0 0
    %773 = vmatprep.subr.bf16.mxu0 0
    %774 = vmatpush2.bf16.msra.mxu0 0
    %775 = vmatprep.subr.bf16.mxu0 0
    %776 = vmatpush2.bf16.msra.mxu0 0
    %777 = vmatprep.subr.bf16.mxu0 0
    %778 = vmatpush2.bf16.msra.mxu0 0
    %779 = vmatprep.subr.bf16.mxu0 0
    %780 = vmatpush2.bf16.msra.mxu0 0
    %781 = vmatprep.subr.bf16.mxu0 0
    %782 = vmatpush2.bf16.msra.mxu0 0
    %783 = vmatprep.mubr.bf16.mxu0 0
    %784 = vmatmul.mubr.bf16.gmra.mxu0 %v750
    %v785 = vpop.f32.mrf.mxu0
    %v786 = vadd.f32 0.0, %v785
    %v787 = vpop.f32.mrf.mxu0
    %v788 = vadd.f32 0.0, %v787
    %v789 = vpop.f32.mrf.mxu0
    %v790 = vpop.f32.mrf.mxu0
    %791 = vdwg.mxu0
    %792 = vmatprep.subr.bf16.mxu0 0
    %793 = vmatpush1.bf16.msra.mxu0 %v504
    %794 = vmatprep.subr.bf16.mxu0 0
    %795 = vmatpush1.bf16.msra.mxu0 %v501
    %796 = vmatprep.subr.bf16.mxu0 0
    %797 = vmatpush1.bf16.msra.mxu0 %v498
    %798 = vmatprep.subr.bf16.mxu0 0
    %799 = vmatpush1.bf16.msra.mxu0 %v495
    %800 = vmatprep.subr.bf16.mxu0 0
    %801 = vmatpush1.bf16.msra.mxu0 %v492
    %802 = vmatprep.subr.bf16.mxu0 0
    %803 = vmatpush1.bf16.msra.mxu0 %v489
    %804 = vmatprep.subr.bf16.mxu0 0
    %805 = vmatpush1.bf16.msra.mxu0 %v486
    %806 = vmatprep.subr.bf16.mxu0 0
    %807 = vmatpush1.bf16.msra.mxu0 %v483
    %808 = vmatprep.subr.bf16.mxu0 0
    %809 = vmatpush2.bf16.msra.mxu0 0
    %810 = vmatprep.subr.bf16.mxu0 0
    %811 = vmatpush2.bf16.msra.mxu0 0
    %812 = vmatprep.subr.bf16.mxu0 0
    %813 = vmatpush2.bf16.msra.mxu0 0
    %814 = vmatprep.subr.bf16.mxu0 0
    %815 = vmatpush2.bf16.msra.mxu0 0
    %816 = vmatprep.subr.bf16.mxu0 0
    %817 = vmatpush2.bf16.msra.mxu0 0
    %818 = vmatprep.subr.bf16.mxu0 0
    %819 = vmatpush2.bf16.msra.mxu0 0
    %820 = vmatprep.subr.bf16.mxu0 0
    %821 = vmatpush2.bf16.msra.mxu0 0
    %822 = vmatprep.subr.bf16.mxu0 0
    %823 = vmatpush2.bf16.msra.mxu0 0
    %824 = vmatprep.mubr.bf16.mxu0 0
    %825 = vmatmul.mubr.bf16.gmra.mxu0 %v750
    %v826 = vpop.f32.mrf.mxu0
    %v827 = vadd.f32 0.0, %v826
    %v828 = vpop.f32.mrf.mxu0
    %v829 = vpop.f32.mrf.mxu0
    %v830 = vpop.f32.mrf.mxu0
    %831 = vdwg.mxu0
    %v832 = vadd.f32 %v747, %v786
    %v833 = vxor.u32 %v832, 2147483648
    %v834 = vmul.f32 %v833, 1.442695
    %v835 = vpow.pop %v834
    %v836 = vadd.f32 %v835, 1.0
    %v837 = vrcp.pop %v836
    %v838 = vmul.f32 1.0, %v837
    %v839 = vadd.f32 %v748, %v788
    %v840 = vxor.u32 %v839, 2147483648
    %v841 = vmul.f32 %v840, 1.442695
    %v842 = vpow.pop %v841
    %v843 = vadd.f32 %v842, 1.0
    %v844 = vrcp.pop %v843
    %v845 = vmul.f32 1.0, %v844
    %v846 = vadd.f32 %v827, %v628
    %v847 = vmul.f32 %v838, %v846
    %v848 = vadd.f32 %v749, %v847
    %v849 = vtanh.pop %v848
    %v850 = vsub.f32 1.0, %v845
    %v851 = vmul.f32 %v850, %v849
    %v852 = vmul.f32 %v845, %v745
    %v853 = vadd.f32 %v851, %v852
    %854 = vst [vmem:[#allocation3 + $0x10] sm:$0xff] %v853
    %v855 = vld [vmem:[#allocation2 + $0x48] sm:$0xff]
    %v856 = vld [vmem:[#allocation2 + $0x50] sm:$0xff]
    %v857 = vld [vmem:[#allocation2 + $0x58] sm:$0xff]
    %v858 = vpack.c.bf16 %v853, %v853
    %859 = vmatprep.subr.bf16.mxu0 %v503
    %860 = vmatpush1.bf16.msra.mxu0 %v502
    %861 = vmatprep.subr.bf16.mxu0 %v500
    %862 = vmatpush1.bf16.msra.mxu0 %v499
    %863 = vmatprep.subr.bf16.mxu0 %v497
    %864 = vmatpush1.bf16.msra.mxu0 %v496
    %865 = vmatprep.subr.bf16.mxu0 %v494
    %866 = vmatpush1.bf16.msra.mxu0 %v493
    %867 = vmatprep.subr.bf16.mxu0 %v491
    %868 = vmatpush1.bf16.msra.mxu0 %v490
    %869 = vmatprep.subr.bf16.mxu0 %v488
    %870 = vmatpush1.bf16.msra.mxu0 %v487
    %871 = vmatprep.subr.bf16.mxu0 %v485
    %872 = vmatpush1.bf16.msra.mxu0 %v484
    %873 = vmatprep.subr.bf16.mxu0 %v482
    %874 = vmatpush1.bf16.msra.mxu0 %v481
    %875 = vmatprep.subr.bf16.mxu0 0
    %876 = vmatpush2.bf16.msra.mxu0 0
    %877 = vmatprep.subr.bf16.mxu0 0
    %878 = vmatpush2.bf16.msra.mxu0 0
    %879 = vmatprep.subr.bf16.mxu0 0
    %880 = vmatpush2.bf16.msra.mxu0 0
    %881 = vmatprep.subr.bf16.mxu0 0
    %882 = vmatpush2.bf16.msra.mxu0 0
    %883 = vmatprep.subr.bf16.mxu0 0
    %884 = vmatpush2.bf16.msra.mxu0 0
    %885 = vmatprep.subr.bf16.mxu0 0
    %886 = vmatpush2.bf16.msra.mxu0 0
    %887 = vmatprep.subr.bf16.mxu0 0
    %888 = vmatpush2.bf16.msra.mxu0 0
    %889 = vmatprep.subr.bf16.mxu0 0
    %890 = vmatpush2.bf16.msra.mxu0 0
    %891 = vmatprep.mubr.bf16.mxu0 0
    %892 = vmatmul.mubr.bf16.gmra.mxu0 %v858
    %v893 = vpop.f32.mrf.mxu0
    %v894 = vadd.f32 0.0, %v893
    %v895 = vpop.f32.mrf.mxu0
    %v896 = vadd.f32 0.0, %v895
    %v897 = vpop.f32.mrf.mxu0
    %v898 = vpop.f32.mrf.mxu0
    %899 = vdwg.mxu0
    %900 = vmatprep.subr.bf16.mxu0 0
    %901 = vmatpush1.bf16.msra.mxu0 %v504
    %902 = vmatprep.subr.bf16.mxu0 0
    %903 = vmatpush1.bf16.msra.mxu0 %v501
    %904 = vmatprep.subr.bf16.mxu0 0
    %905 = vmatpush1.bf16.msra.mxu0 %v498
    %906 = vmatprep.subr.bf16.mxu0 0
    %907 = vmatpush1.bf16.msra.mxu0 %v495
    %908 = vmatprep.subr.bf16.mxu0 0
    %909 = vmatpush1.bf16.msra.mxu0 %v492
    %910 = vmatprep.subr.bf16.mxu0 0
    %911 = vmatpush1.bf16.msra.mxu0 %v489
    %912 = vmatprep.subr.bf16.mxu0 0
    %913 = vmatpush1.bf16.msra.mxu0 %v486
    %914 = vmatprep.subr.bf16.mxu0 0
    %915 = vmatpush1.bf16.msra.mxu0 %v483
    %916 = vmatprep.subr.bf16.mxu0 0
    %917 = vmatpush2.bf16.msra.mxu0 0
    %918 = vmatprep.subr.bf16.mxu0 0
    %919 = vmatpush2.bf16.msra.mxu0 0
    %920 = vmatprep.subr.bf16.mxu0 0
    %921 = vmatpush2.bf16.msra.mxu0 0
    %922 = vmatprep.subr.bf16.mxu0 0
    %923 = vmatpush2.bf16.msra.mxu0 0
    %924 = vmatprep.subr.bf16.mxu0 0
    %925 = vmatpush2.bf16.msra.mxu0 0
    %926 = vmatprep.subr.bf16.mxu0 0
    %927 = vmatpush2.bf16.msra.mxu0 0
    %928 = vmatprep.subr.bf16.mxu0 0
    %929 = vmatpush2.bf16.msra.mxu0 0
    %930 = vmatprep.subr.bf16.mxu0 0
    %931 = vmatpush2.bf16.msra.mxu0 0
    %932 = vmatprep.mubr.bf16.mxu0 0
    %933 = vmatmul.mubr.bf16.gmra.mxu0 %v858
    %v934 = vpop.f32.mrf.mxu0
    %v935 = vadd.f32 0.0, %v934
    %v936 = vpop.f32.mrf.mxu0
    %v937 = vpop.f32.mrf.mxu0
    %v938 = vpop.f32.mrf.mxu0
    %939 = vdwg.mxu0
    %v940 = vadd.f32 %v855, %v894
    %v941 = vxor.u32 %v940, 2147483648
    %v942 = vmul.f32 %v941, 1.442695
    %v943 = vpow.pop %v942
    %v944 = vadd.f32 %v943, 1.0
    %v945 = vrcp.pop %v944
    %v946 = vmul.f32 1.0, %v945
    %v947 = vadd.f32 %v856, %v896
    %v948 = vxor.u32 %v947, 2147483648
    %v949 = vmul.f32 %v948, 1.442695
    %v950 = vpow.pop %v949
    %v951 = vadd.f32 %v950, 1.0
    %v952 = vrcp.pop %v951
    %v953 = vmul.f32 1.0, %v952
    %v954 = vadd.f32 %v935, %v628
    %v955 = vmul.f32 %v946, %v954
    %v956 = vadd.f32 %v857, %v955
    %v957 = vtanh.pop %v956
    %v958 = vsub.f32 1.0, %v953
    %v959 = vmul.f32 %v958, %v957
    %v960 = vmul.f32 %v953, %v853
    %v961 = vadd.f32 %v959, %v960
    %962 = vst [vmem:[#allocation3 + $0x18] sm:$0xff] %v961
    %v963 = vld [vmem:[#allocation2 + $0x60] sm:$0xff]
    %v964 = vld [vmem:[#allocation2 + $0x68] sm:$0xff]
    %v965 = vld [vmem:[#allocation2 + $0x70] sm:$0xff]
    %v966 = vpack.c.bf16 %v961, %v961
    %967 = vmatprep.subr.bf16.mxu0 %v503
    %968 = vmatpush1.bf16.msra.mxu0 %v502
    %969 = vmatprep.subr.bf16.mxu0 %v500
    %970 = vmatpush1.bf16.msra.mxu0 %v499
    %971 = vmatprep.subr.bf16.mxu0 %v497
    %972 = vmatpush1.bf16.msra.mxu0 %v496
    %973 = vmatprep.subr.bf16.mxu0 %v494
    %974 = vmatpush1.bf16.msra.mxu0 %v493
    %975 = vmatprep.subr.bf16.mxu0 %v491
    %976 = vmatpush1.bf16.msra.mxu0 %v490
    %977 = vmatprep.subr.bf16.mxu0 %v488
    %978 = vmatpush1.bf16.msra.mxu0 %v487
    %979 = vmatprep.subr.bf16.mxu0 %v485
    %980 = vmatpush1.bf16.msra.mxu0 %v484
    %981 = vmatprep.subr.bf16.mxu0 %v482
    %982 = vmatpush1.bf16.msra.mxu0 %v481
    %983 = vmatprep.subr.bf16.mxu0 0
    %984 = vmatpush2.bf16.msra.mxu0 0
    %985 = vmatprep.subr.bf16.mxu0 0
    %986 = vmatpush2.bf16.msra.mxu0 0
    %987 = vmatprep.subr.bf16.mxu0 0
    %988 = vmatpush2.bf16.msra.mxu0 0
    %989 = vmatprep.subr.bf16.mxu0 0
    %990 = vmatpush2.bf16.msra.mxu0 0
    %991 = vmatprep.subr.bf16.mxu0 0
    %992 = vmatpush2.bf16.msra.mxu0 0
    %993 = vmatprep.subr.bf16.mxu0 0
    %994 = vmatpush2.bf16.msra.mxu0 0
    %995 = vmatprep.subr.bf16.mxu0 0
    %996 = vmatpush2.bf16.msra.mxu0 0
    %997 = vmatprep.subr.bf16.mxu0 0
    %998 = vmatpush2.bf16.msra.mxu0 0
    %999 = vmatprep.mubr.bf16.mxu0 0
    %1000 = vmatmul.mubr.bf16.gmra.mxu0 %v966
    %v1001 = vpop.f32.mrf.mxu0
    %v1002 = vadd.f32 0.0, %v1001
    %v1003 = vpop.f32.mrf.mxu0
    %v1004 = vadd.f32 0.0, %v1003
    %v1005 = vpop.f32.mrf.mxu0
    %v1006 = vpop.f32.mrf.mxu0
    %1007 = vdwg.mxu0
    %1008 = vmatprep.subr.bf16.mxu0 0
    %1009 = vmatpush1.bf16.msra.mxu0 %v504
    %1010 = vmatprep.subr.bf16.mxu0 0
    %1011 = vmatpush1.bf16.msra.mxu0 %v501
    %1012 = vmatprep.subr.bf16.mxu0 0
    %1013 = vmatpush1.bf16.msra.mxu0 %v498
    %1014 = vmatprep.subr.bf16.mxu0 0
    %1015 = vmatpush1.bf16.msra.mxu0 %v495
    %1016 = vmatprep.subr.bf16.mxu0 0
    %1017 = vmatpush1.bf16.msra.mxu0 %v492
    %1018 = vmatprep.subr.bf16.mxu0 0
    %1019 = vmatpush1.bf16.msra.mxu0 %v489
    %1020 = vmatprep.subr.bf16.mxu0 0
    %1021 = vmatpush1.bf16.msra.mxu0 %v486
    %1022 = vmatprep.subr.bf16.mxu0 0
    %1023 = vmatpush1.bf16.msra.mxu0 %v483
    %1024 = vmatprep.subr.bf16.mxu0 0
    %1025 = vmatpush2.bf16.msra.mxu0 0
    %1026 = vmatprep.subr.bf16.mxu0 0
    %1027 = vmatpush2.bf16.msra.mxu0 0
    %1028 = vmatprep.subr.bf16.mxu0 0
    %1029 = vmatpush2.bf16.msra.mxu0 0
    %1030 = vmatprep.subr.bf16.mxu0 0
    %1031 = vmatpush2.bf16.msra.mxu0 0
    %1032 = vmatprep.subr.bf16.mxu0 0
    %1033 = vmatpush2.bf16.msra.mxu0 0
    %1034 = vmatprep.subr.bf16.mxu0 0
    %1035 = vmatpush2.bf16.msra.mxu0 0
    %1036 = vmatprep.subr.bf16.mxu0 0
    %1037 = vmatpush2.bf16.msra.mxu0 0
    %1038 = vmatprep.subr.bf16.mxu0 0
    %1039 = vmatpush2.bf16.msra.mxu0 0
    %1040 = vmatprep.mubr.bf16.mxu0 0
    %1041 = vmatmul.mubr.bf16.gmra.mxu0 %v966
    %v1042 = vpop.f32.mrf.mxu0
    %v1043 = vadd.f32 0.0, %v1042
    %v1044 = vpop.f32.mrf.mxu0
    %v1045 = vpop.f32.mrf.mxu0
    %v1046 = vpop.f32.mrf.mxu0
    %1047 = vdwg.mxu0
    %v1048 = vadd.f32 %v963, %v1002
    %v1049 = vxor.u32 %v1048, 2147483648
    %v1050 = vmul.f32 %v1049, 1.442695
    %v1051 = vpow.pop %v1050
    %v1052 = vadd.f32 %v1051, 1.0
    %v1053 = vrcp.pop %v1052
    %v1054 = vmul.f32 1.0, %v1053
    %v1055 = vadd.f32 %v964, %v1004
    %v1056 = vxor.u32 %v1055, 2147483648
    %v1057 = vmul.f32 %v1056, 1.442695
    %v1058 = vpow.pop %v1057
    %v1059 = vadd.f32 %v1058, 1.0
    %v1060 = vrcp.pop %v1059
    %v1061 = vmul.f32 1.0, %v1060
    %v1062 = vadd.f32 %v1043, %v628
    %v1063 = vmul.f32 %v1054, %v1062
    %v1064 = vadd.f32 %v965, %v1063
    %v1065 = vtanh.pop %v1064
    %v1066 = vsub.f32 1.0, %v1061
    %v1067 = vmul.f32 %v1066, %v1065
    %v1068 = vmul.f32 %v1061, %v961
    %v1069 = vadd.f32 %v1067, %v1068
    %1070 = vst [vmem:[#allocation3 + $0x20] sm:$0xff] %v1069
    %1071 = vst [vmem:[#allocation4] sm:$0xff] %v1069
    %v1072 = vld [vmem:[#allocation3] sm:$0xff]
    %v1073 = vld [vmem:[#allocation3 + $0x8] sm:$0xff]
    %v1074 = vld [vmem:[#allocation3 + $0x10] sm:$0xff]
    %v1075 = vld [vmem:[#allocation3 + $0x18] sm:$0xff]
    %v1076 = vld [vmem:[#allocation3 + $0x20] sm:$0xff]
    %v1077 = vpack.c.bf16 %v1073, %v1072
    %v1078 = vpack.c.bf16 %v1075, %v1074
    %v1079 = vpack.c.bf16 %v1076, %v1076
    %v1080 = vld [vmem:[%s6] sm:$0xf]
    %v1081 = vld [vmem:[%s6 + $0x4] sm:$0xf]
    %v1082 = vld [vmem:[%s6 + $0x8] sm:$0xf]
    %v1083 = vld [vmem:[%s6 + $0xc] sm:$0xf]
    %v1084 = vld [vmem:[%s6 + $0x10] sm:$0xf]
    %v1085 = vld [vmem:[%s6 + $0x14] sm:$0xf]
    %v1086 = vld [vmem:[%s6 + $0x18] sm:$0xf]
    %v1087 = vld [vmem:[%s6 + $0x1c] sm:$0xf]
    %v1088 = vld [vmem:[%s6 + $0x20] sm:$0xf]
    %v1089 = vld [vmem:[%s6 + $0x24] sm:$0xf]
    %v1090 = vld [vmem:[%s6 + $0x28] sm:$0xf]
    %v1091 = vld [vmem:[%s6 + $0x2c] sm:$0xf]
    %v1092 = vld [vmem:[%s6 + $0x30] sm:$0xf]
    %v1093 = vld [vmem:[%s6 + $0x34] sm:$0xf]
    %v1094 = vld [vmem:[%s6 + $0x38] sm:$0xf]
    %v1095 = vld [vmem:[%s6 + $0x3c] sm:$0xf]
    %v1096 = vld [vmem:[%s7] sm:$0x1]
    %v1098 = vlaneseq
    %v1099 = vshrl.u32 %v1098, 7
    %v1100 = vsub.s32 0, %v1099
    %v1101 = vrot.slane %v1096, %v1100
    %v1119 = vunpack.c.l.b16 %v1080
    %v1120 = vunpack.c.l.b16 %v1081
    %v1121 = vunpack.c.l.b16 %v1082
    %v1122 = vunpack.c.l.b16 %v1083
    %v1123 = vunpack.c.l.b16 %v1084
    %v1124 = vunpack.c.l.b16 %v1085
    %v1125 = vunpack.c.l.b16 %v1086
    %v1126 = vunpack.c.l.b16 %v1087
    %v1127 = vunpack.c.l.b16 %v1088
    %v1128 = vunpack.c.l.b16 %v1089
    %v1129 = vunpack.c.l.b16 %v1090
    %v1130 = vunpack.c.l.b16 %v1091
    %v1131 = vunpack.c.l.b16 %v1092
    %v1132 = vunpack.c.l.b16 %v1093
    %v1133 = vunpack.c.l.b16 %v1094
    %v1134 = vunpack.c.l.b16 %v1095
    %v1135 = vpack.c.b16 %v1120, %v1119
    %v1136 = vpack.c.b16 %v1122, %v1121
    %v1137 = vpack.c.b16 %v1124, %v1123
    %v1138 = vpack.c.b16 %v1126, %v1125
    %v1139 = vpack.c.b16 %v1128, %v1127
    %v1140 = vpack.c.b16 %v1130, %v1129
    %v1141 = vpack.c.b16 %v1132, %v1131
    %v1142 = vpack.c.b16 %v1134, %v1133
    %1151 = vmatprep.subr.bf16.mxu0 0
    %1152 = vmatpush1.bf16.msra.mxu0 %v1142
    %1153 = vmatprep.subr.bf16.mxu0 0
    %1154 = vmatpush1.bf16.msra.mxu0 %v1141
    %1155 = vmatprep.subr.bf16.mxu0 0
    %1156 = vmatpush1.bf16.msra.mxu0 %v1140
    %1157 = vmatprep.subr.bf16.mxu0 0
    %1158 = vmatpush1.bf16.msra.mxu0 %v1139
    %1159 = vmatprep.subr.bf16.mxu0 0
    %1160 = vmatpush1.bf16.msra.mxu0 %v1138
    %1161 = vmatprep.subr.bf16.mxu0 0
    %1162 = vmatpush1.bf16.msra.mxu0 %v1137
    %1163 = vmatprep.subr.bf16.mxu0 0
    %1164 = vmatpush1.bf16.msra.mxu0 %v1136
    %1165 = vmatprep.subr.bf16.mxu0 0
    %1166 = vmatpush1.bf16.msra.mxu0 %v1135
    %1167 = vmatprep.subr.bf16.mxu0 0
    %1168 = vmatpush2.bf16.msra.mxu0 0
    %1169 = vmatprep.subr.bf16.mxu0 0
    %1170 = vmatpush2.bf16.msra.mxu0 0
    %1171 = vmatprep.subr.bf16.mxu0 0
    %1172 = vmatpush2.bf16.msra.mxu0 0
    %1173 = vmatprep.subr.bf16.mxu0 0
    %1174 = vmatpush2.bf16.msra.mxu0 0
    %1175 = vmatprep.subr.bf16.mxu0 0
    %1176 = vmatpush2.bf16.msra.mxu0 0
    %1177 = vmatprep.subr.bf16.mxu0 0
    %1178 = vmatpush2.bf16.msra.mxu0 0
    %1179 = vmatprep.subr.bf16.mxu0 0
    %1180 = vmatpush2.bf16.msra.mxu0 0
    %1181 = vmatprep.subr.bf16.mxu0 0
    %1182 = vmatpush2.bf16.msra.mxu0 0
    %1183 = vmatprep.mubr.bf16.mxu0 0
    %1184 = vmatmul.mubr.bf16.gmra.mxu0 %v1077
    %v1185 = vpop.f32.mrf.mxu0
    %v1186 = vadd.f32 %v1101, %v1185
    %v1187 = vpop.f32.mrf.mxu0
    %v1188 = vpop.f32.mrf.mxu0
    %v1189 = vadd.f32 %v1101, %v1188
    %v1190 = vpop.f32.mrf.mxu0
    %1191 = vmatprep.mubr.bf16.mxu0 0
    %1192 = vmatmul.mubr.bf16.gmra.mxu0 %v1078
    %v1193 = vpop.f32.mrf.mxu0
    %v1194 = vadd.f32 %v1101, %v1193
    %v1195 = vpop.f32.mrf.mxu0
    %v1196 = vpop.f32.mrf.mxu0
    %v1197 = vadd.f32 %v1101, %v1196
    %v1198 = vpop.f32.mrf.mxu0
    %1199 = vmatprep.mubr.bf16.mxu0 0
    %1200 = vmatmul.mubr.bf16.gmra.mxu0 %v1079
    %v1201 = vpop.f32.mrf.mxu0
    %v1202 = vadd.f32 %v1101, %v1201
    %v1203 = vpop.f32.mrf.mxu0
    %v1204 = vpop.f32.mrf.mxu0
    %v1205 = vpop.f32.mrf.mxu0
    %1206 = vdwg.mxu0
    %v1207 = vxor.u32 %v1186, 2147483648
    %v1208 = vxor.u32 %v1189, 2147483648
    %v1209 = vxor.u32 %v1194, 2147483648
    %v1210 = vxor.u32 %v1197, 2147483648
    %v1211 = vxor.u32 %v1202, 2147483648
    %v1212 = vmul.f32 %v1207, 1.442695
    %v1213 = vpow.pop %v1212
    %v1214 = vmul.f32 %v1208, 1.442695
    %v1215 = vpow.pop %v1214
    %v1216 = vmul.f32 %v1209, 1.442695
    %v1217 = vpow.pop %v1216
    %v1218 = vmul.f32 %v1210, 1.442695
    %v1219 = vpow.pop %v1218
    %v1220 = vmul.f32 %v1211, 1.442695
    %v1221 = vpow.pop %v1220
    %v1222 = vadd.f32 %v1213, 1.0
    %v1223 = vadd.f32 %v1215, 1.0
    %v1224 = vadd.f32 %v1217, 1.0
    %v1225 = vadd.f32 %v1219, 1.0
    %v1226 = vadd.f32 %v1221, 1.0
    %v1227 = vrcp.pop %v1222
    %v1228 = vmul.f32 1.0, %v1227
    %v1229 = vrcp.pop %v1223
    %v1230 = vmul.f32 1.0, %v1229
    %v1231 = vrcp.pop %v1224
    %v1232 = vmul.f32 1.0, %v1231
    %v1233 = vrcp.pop %v1225
    %v1234 = vmul.f32 1.0, %v1233
    %v1235 = vrcp.pop %v1226
    %v1236 = vmul.f32 1.0, %v1235
    %1237 = vst [vmem:[%s8] sm:$0xff] %v1228
    %1238 = vst [vmem:[%s8 + $0x8] sm:$0xff] %v1230
    %1239 = vst [vmem:[%s8 + $0x10] sm:$0xff] %v1232
    %1240 = vst [vmem:[%s8 + $0x18] sm:$0xff] %v1234
    %1241 = vst [vmem:[%s8 + $0x20] sm:$0xff] %v1236
    // Predicated region
    $region34: #{seq2seq_forward.5} parent=1 // pred_check
      _
    $region35: #{seq2seq_forward.5} parent=1 // pred_check_branch
      %1243 = sbr.rel (0) target = $region37
    $region36: #{seq2seq_forward.5} parent=1 // pred_region
      _
    $region37: #{seq2seq_forward.5} parent=1 // pred_fallthru
      _
    // Predicated region
    $region38: #{seq2seq_forward.5} parent=1 // pred_check
      _
    $region39: #{seq2seq_forward.5} parent=1 // pred_check_branch
      %1245 = sbr.rel (0) target = $region41
    $region40: #{seq2seq_forward.5} parent=1 // pred_region
      %s1247 = ssub.s32 128, 128
      %1248 = vsyncadd [#allocation5], %s1247
      %s1250 = sshll.u32 [#allocation4], 4
      %s1251 = int_to_ptr.vmem [resolvable:$true] %s1250
      %1253 = dma.vmem_to_hbm [thread:$0]  %s1251, 128, %s9, [#allocation5]
    $region41: #{seq2seq_forward.5} parent=1 // pred_fallthru
      _
    // Predicated region
    $region42: #{seq2seq_forward.5} parent=1 // pred_check
      _
    $region43: #{seq2seq_forward.5} parent=1 // pred_check_branch
      %1255 = sbr.rel (0) target = $region45
    $region44: #{seq2seq_forward.5} parent=1 // pred_region
      _
    $region45: #{seq2seq_forward.5} parent=1 // pred_fallthru
      _
    // Predicated region
    $region46: #{seq2seq_forward.5} parent=1 // pred_check
      _
    $region47: #{seq2seq_forward.5} parent=1 // pred_check_branch
      %1257 = sbr.rel (0) target = $region49
    $region48: #{seq2seq_forward.5} parent=1 // pred_region
      %1258 = dma.done [#allocation5], 128
    $region49: #{seq2seq_forward.5} parent=1 // pred_fallthru
      _
    %1259 = vsyncpa [#allocation5], 1

</llo_original>
